<compile_context>
chip_gen: v7x
topology: tpu7x:2x2x1
jax: 0.10.0
libtpu: 0.0.40
codegen_flags: <defaults>
</compile_context>

<pallas_src>
import functools

import jax
import jax.numpy as jnp
from jax.experimental import pallas as pl
from jax.experimental.pallas import tpu as pltpu


def _attention_kernel(x_ref, wqkv_ref, wproj_ref, bproj_ref, o_ref,
                      *, B, N, num_heads):
    """Single invocation: full (B*N, C) token slab, all heads, all batches."""
    x = x_ref[...]          # (B*N, C)  bf16
    wqkv = wqkv_ref[...]    # (C, 3C)   bf16, softmax scale pre-folded into Q columns
    wproj = wproj_ref[...]  # (C, Cp)   bf16, output lanes zero-padded to 128-multiple
    bproj = bproj_ref[...]  # (1, Cp)   f32,  zero-padded

    BN, C = x.shape
    H = num_heads
    hd = C // H

    # One fused, lane-dense QKV projection over all B*N token rows (qkv_bias=False).
    qkv = jnp.dot(x, wqkv, preferred_element_type=jnp.float32)      # (B*N, 3C) f32

    def split_heads(i):
        # Static lane slice of Q/K/V, then a single relayout that puts heads on a
        # leading batched-matmul dim: (B*N, C) -> (B*H, N, hd).
        blk = qkv[:, i * C:(i + 1) * C].astype(jnp.bfloat16)
        blk = blk.reshape(B, N, H, hd)          # split rows->(B,N), lanes->(H,hd)
        return blk.transpose(0, 2, 1, 3).reshape(B * H, N, hd)

    q = split_heads(0)      # scale already folded into Wqkv's Q columns
    k = split_heads(1)
    v = split_heads(2)

    # One batched dot_general over the merged (B*H) batch dim (no per-head loop).
    s = jnp.einsum("gnd,gmd->gnm", q, k,
                   preferred_element_type=jnp.float32)              # (B*H, N, N) f32

    # Numerically stable softmax along keys (f32 elementwise math; v5e-safe).
    s = s - jnp.max(s, axis=-1, keepdims=True)
    p = jnp.exp(s)
    p = p * pl.reciprocal(jnp.sum(p, axis=-1, keepdims=True), approx=True)
    # attn_drop is identity (p=0.0 / eval mode).

    o = jnp.einsum("gnm,gmd->gnd", p.astype(jnp.bfloat16), v,
                   preferred_element_type=jnp.float32)              # (B*H, N, hd) f32

    # Merge heads back onto lanes with ONE transpose (no 8-way lane concatenate).
    o = o.reshape(B, H, N, hd).transpose(0, 2, 1, 3).reshape(BN, C)

    # Fused output projection into a lane-dense (zero-padded) slab + bias.
    out = jnp.dot(o.astype(jnp.bfloat16), wproj,
                  preferred_element_type=jnp.float32) + bproj
    # proj_drop is identity (p=0.0 / eval mode).
    o_ref[...] = out.astype(o_ref.dtype)


def prepare_weights(wqkv, wproj, bproj, *, num_heads):
    """One-time weight preparation (amortized to zero across forward calls):
      * fold the softmax scale into the Q columns of Wqkv,
      * cast matmul weights to bf16 (MXU-native on v6e/v7x; halves HBM/VMEM bytes),
      * zero-pad the projection's output dim up to a 128-lane multiple so the kernel's
        final store is an unmasked lane-dense vst.
    """
    C = wproj.shape[0]
    head_dim = C // num_heads
    scale = head_dim ** (-0.5)
    wqkv_p = wqkv.at[:, :C].multiply(scale).astype(jnp.bfloat16)

    c_pad = ((C + 127) // 128) * 128
    wproj_p = jnp.pad(wproj, ((0, 0), (0, c_pad - C))).astype(jnp.bfloat16)
    bproj_p = jnp.pad(bproj, (0, c_pad - C)).reshape(1, c_pad).astype(jnp.float32)
    return wqkv_p, wproj_p, bproj_p


def attention_forward(x, wqkv_p, wproj_p, bproj_p, *, num_heads):
    B, N, C = x.shape
    c_pad = wproj_p.shape[1]

    x2d = x.reshape(B * N, C).astype(jnp.bfloat16)   # lane-dense bf16 token slab

    kernel = functools.partial(_attention_kernel, B=B, N=N, num_heads=num_heads)

    out_padded = pl.pallas_call(
        kernel,
        out_shape=jax.ShapeDtypeStruct((B * N, c_pad), x.dtype),
        grid_spec=pltpu.PrefetchScalarGridSpec(
            num_scalar_prefetch=0,
            grid=(1,),                 # single invocation; no per-step pipeline overhead
            in_specs=[
                pl.BlockSpec((B * N, C), lambda i: (0, 0)),
                pl.BlockSpec((C, 3 * C), lambda i: (0, 0)),
                pl.BlockSpec((C, c_pad), lambda i: (0, 0)),
                pl.BlockSpec((1, c_pad), lambda i: (0, 0)),
            ],
            out_specs=pl.BlockSpec((B * N, c_pad), lambda i: (0, 0)),
        ),
        compiler_params=pltpu.CompilerParams(
            dimension_semantics=("arbitrary",)),
    )(x2d, wqkv_p, wproj_p, bproj_p)

    # TODO(synk): for production ViT shapes replace the single-slab design with a
    # flash-style (B, N//tq) "parallel" grid + (tq, tk) kv tiling, with tile sizes and
    # vmem_limit_bytes re-derived per generation (v7x: 64 MiB VMEM, 2 TCs; v5e/v6e: 128 MiB).
    return out_padded[:, :C].reshape(B, N, C)


def attention_reference(x, wqkv, wproj, bproj, *, num_heads):
    """Pure-JAX (f32) replica of the PyTorch forward, for verification."""
    B, N, C = x.shape
    hd = C // num_heads
    scale = hd ** (-0.5)
    qkv = jnp.einsum("bnc,cd->bnd", x, wqkv).reshape(B, N, 3, num_heads, hd)
    qkv = jnp.transpose(qkv, (2, 0, 3, 1, 4))            # (3, B, H, N, hd)
    q, k, v = qkv[0], qkv[1], qkv[2]
    attn = jnp.einsum("bhnd,bhmd->bhnm", q, k) * scale
    attn = jax.nn.softmax(attn, axis=-1)
    out = jnp.einsum("bhnm,bhmd->bhnd", attn, v)
    out = jnp.transpose(out, (0, 2, 1, 3)).reshape(B, N, C)
    out = jnp.einsum("bnc,cd->bnd", out, wproj) + bproj
    return out


if __name__ == "__main__":
    # Small shapes consistent with the module: dim=32, num_heads=8 -> head_dim=4.
    B, N, C = 2, 8, 32
    num_heads = 8

    key = jax.random.PRNGKey(0)
    kx, kqkv, kproj, kb = jax.random.split(key, 4)

    x = jax.random.normal(kx, (B, N, C), dtype=jnp.float32)
    # Module shapes: qkv Linear(C, 3C, bias=False); proj Linear(C, C) with bias.
    wqkv = jax.random.normal(kqkv, (C, 3 * C), dtype=jnp.float32) * 0.05
    wproj = jax.random.normal(kproj, (C, C), dtype=jnp.float32) * 0.05
    bproj = jax.random.normal(kb, (C,), dtype=jnp.float32) * 0.05

    # One-time weight prep (scale fold + bf16 cast + lane padding).
    wqkv_p, wproj_p, bproj_p = prepare_weights(wqkv, wproj, bproj, num_heads=num_heads)

    out = attention_forward(x, wqkv_p, wproj_p, bproj_p, num_heads=num_heads)
    out = jax.block_until_ready(out)

    ref = attention_reference(x, wqkv, wproj, bproj, num_heads=num_heads)
    assert out.shape == (B, N, C)
    # Tolerance accounts for bf16 MXU operands (f32 accumulation) and the approximate
    # EUP reciprocal in the softmax denominator, compared against an all-f32 reference.
    assert jnp.allclose(out, ref, atol=3e-2, rtol=3e-2), (
        "mismatch vs reference; max abs diff = "
        f"{float(jnp.max(jnp.abs(out - ref)))}")

    print("KERNEL_OK")
</pallas_src>

<mosaic_0001>
module attributes {stable_mosaic.version = 11 : i64} {
  func.func @_attention_kernel(%arg0: i32, %arg1: memref<16x32xbf16, #tpu.memory_space<vmem>>, %arg2: memref<32x96xbf16, #tpu.memory_space<vmem>>, %arg3: memref<32x128xbf16, #tpu.memory_space<vmem>>, %arg4: memref<1x128xf32, #tpu.memory_space<vmem>>, %arg5: memref<16x128xf32, #tpu.memory_space<vmem>>) attributes {dimension_semantics = [#tpu.dimension_semantics<arbitrary>], iteration_bounds = array<i64: 1>, scalar_prefetch = 0 : i64, scratch_operands = 0 : i64, tpu.core_type = #tpu.core_type<tc>, window_params = [{pipeline_mode = #tpu.pipeline_mode<synchronous>, transform_indices = @transform_0, window_bounds = array<i64: 16, 32>}, {pipeline_mode = #tpu.pipeline_mode<synchronous>, transform_indices = @transform_1, window_bounds = array<i64: 32, 96>}, {pipeline_mode = #tpu.pipeline_mode<synchronous>, transform_indices = @transform_2, window_bounds = array<i64: 32, 128>}, {pipeline_mode = #tpu.pipeline_mode<synchronous>, transform_indices = @transform_3, window_bounds = array<i64: 1, 128>}, {pipeline_mode = #tpu.pipeline_mode<synchronous>, transform_indices = @transform_4, window_bounds = array<i64: 16, 128>}]} {
    %c0 = arith.constant 0 : index
    %c0_0 = arith.constant 0 : index
    %0 = vector.load %arg1[%c0, %c0_0] : memref<16x32xbf16, #tpu.memory_space<vmem>>, vector<16x32xbf16>
    %c0_1 = arith.constant 0 : index
    %c0_2 = arith.constant 0 : index
    %1 = vector.load %arg2[%c0_1, %c0_2] : memref<32x96xbf16, #tpu.memory_space<vmem>>, vector<32x96xbf16>
    %c0_3 = arith.constant 0 : index
    %c0_4 = arith.constant 0 : index
    %2 = vector.load %arg3[%c0_3, %c0_4] : memref<32x128xbf16, #tpu.memory_space<vmem>>, vector<32x128xbf16>
    %c0_5 = arith.constant 0 : index
    %c0_6 = arith.constant 0 : index
    %3 = vector.load %arg4[%c0_5, %c0_6] : memref<1x128xf32, #tpu.memory_space<vmem>>, vector<1x128xf32>
    %cst = arith.constant dense<0.000000e+00> : vector<16x96xf32>
    %4 = tpu.matmul %0, %1, %cst {dimension_numbers = #tpu.dot_dimension_numbers<[1], [0], [0], [1], [0, 0, 1, 1], [], []>} : vector<16x32xbf16>, vector<32x96xbf16>, vector<16x96xf32> -> vector<16x96xf32>
    %5 = vector.extract_strided_slice %4 {offsets = [0, 0], sizes = [16, 32], strides = [1, 1]} : vector<16x96xf32> to vector<16x32xf32>
    %6 = arith.truncf %5 : vector<16x32xf32> to vector<16x32xbf16>
    %7 = vector.shape_cast %6 : vector<16x32xbf16> to vector<2x8x8x4xbf16>
    %8 = tpu.transpose %7, [0, 2, 1, 3] : vector<2x8x8x4xbf16> -> vector<2x8x8x4xbf16>
    %9 = vector.shape_cast %8 : vector<2x8x8x4xbf16> to vector<16x8x4xbf16>
    %10 = vector.extract_strided_slice %4 {offsets = [0, 32], sizes = [16, 32], strides = [1, 1]} : vector<16x96xf32> to vector<16x32xf32>
    %11 = arith.truncf %10 : vector<16x32xf32> to vector<16x32xbf16>
    %12 = vector.shape_cast %11 : vector<16x32xbf16> to vector<2x8x8x4xbf16>
    %13 = tpu.transpose %12, [0, 2, 1, 3] : vector<2x8x8x4xbf16> -> vector<2x8x8x4xbf16>
    %14 = vector.shape_cast %13 : vector<2x8x8x4xbf16> to vector<16x8x4xbf16>
    %15 = vector.extract_strided_slice %4 {offsets = [0, 64], sizes = [16, 32], strides = [1, 1]} : vector<16x96xf32> to vector<16x32xf32>
    %16 = arith.truncf %15 : vector<16x32xf32> to vector<16x32xbf16>
    %17 = vector.shape_cast %16 : vector<16x32xbf16> to vector<2x8x8x4xbf16>
    %18 = tpu.transpose %17, [0, 2, 1, 3] : vector<2x8x8x4xbf16> -> vector<2x8x8x4xbf16>
    %19 = vector.shape_cast %18 : vector<2x8x8x4xbf16> to vector<16x8x4xbf16>
    "tpu.trace_start"() <{level = 10 : i32, message = "gnd,gmd->gnm"}> : () -> ()
    %cst_7 = arith.constant dense<0.000000e+00> : vector<16x8x8xf32>
    %20 = tpu.matmul %9, %14, %cst_7 {dimension_numbers = #tpu.dot_dimension_numbers<[2], [2], [1], [1], [0, 0, 0, 1, 1, 1], [0], [0]>} : vector<16x8x4xbf16>, vector<16x8x4xbf16>, vector<16x8x8xf32> -> vector<16x8x8xf32>
    "tpu.trace_stop"() : () -> ()
    %cst_8 = arith.constant dense<0xFF800000> : vector<16x8xf32>
    %21 = vector.multi_reduction <maximumf>, %20, %cst_8 [2] : vector<16x8x8xf32> to vector<16x8xf32>
    %22 = vector.shape_cast %21 : vector<16x8xf32> to vector<16x8x1xf32>
    %23 = vector.broadcast %22 : vector<16x8x1xf32> to vector<16x8x8xf32>
    %24 = arith.subf %20, %23 : vector<16x8x8xf32>
    %25 = math.exp %24 : vector<16x8x8xf32>
    %cst_9 = arith.constant dense<0.000000e+00> : vector<16x8xf32>
    %26 = vector.multi_reduction <add>, %25, %cst_9 [2] : vector<16x8x8xf32> to vector<16x8xf32>
    %27 = vector.shape_cast %26 : vector<16x8xf32> to vector<16x8x1xf32>
    %28 = tpu.reciprocal %27 {approx = true} : vector<16x8x1xf32> -> vector<16x8x1xf32>
    %29 = vector.broadcast %28 : vector<16x8x1xf32> to vector<16x8x8xf32>
    %30 = arith.mulf %25, %29 : vector<16x8x8xf32>
    %31 = arith.truncf %30 : vector<16x8x8xf32> to vector<16x8x8xbf16>
    "tpu.trace_start"() <{level = 10 : i32, message = "gnm,gmd->gnd"}> : () -> ()
    %cst_10 = arith.constant dense<0.000000e+00> : vector<16x8x4xf32>
    %32 = tpu.matmul %31, %19, %cst_10 {dimension_numbers = #tpu.dot_dimension_numbers<[2], [1], [1], [2], [0, 0, 0, 1, 1, 2], [0], [0]>} : vector<16x8x8xbf16>, vector<16x8x4xbf16>, vector<16x8x4xf32> -> vector<16x8x4xf32>
    "tpu.trace_stop"() : () -> ()
    %33 = vector.shape_cast %32 : vector<16x8x4xf32> to vector<2x8x8x4xf32>
    %34 = tpu.transpose %33, [0, 2, 1, 3] : vector<2x8x8x4xf32> -> vector<2x8x8x4xf32>
    %35 = vector.shape_cast %34 : vector<2x8x8x4xf32> to vector<16x32xf32>
    %36 = arith.truncf %35 : vector<16x32xf32> to vector<16x32xbf16>
    %cst_11 = arith.constant dense<0.000000e+00> : vector<16x128xf32>
    %37 = tpu.matmul %36, %2, %cst_11 {dimension_numbers = #tpu.dot_dimension_numbers<[1], [0], [0], [1], [0, 0, 1, 1], [], []>} : vector<16x32xbf16>, vector<32x128xbf16>, vector<16x128xf32> -> vector<16x128xf32>
    %38 = vector.broadcast %3 : vector<1x128xf32> to vector<16x128xf32>
    %39 = arith.addf %37, %38 : vector<16x128xf32>
    %c0_12 = arith.constant 0 : index
    %c0_13 = arith.constant 0 : index
    %40 = vector.load %arg5[%c0_12, %c0_13] : memref<16x128xf32, #tpu.memory_space<vmem>>, vector<16x128xf32>
    tpu.vector_store %arg5[%c0_12, %c0_13], %39 {strides = array<i32>} : memref<16x128xf32, #tpu.memory_space<vmem>>, vector<16x128xf32>,
    return
  }
  func.func @transform_0(%arg0: i32) -> (i32, i32) {
    %c0_i32 = arith.constant 0 : i32
    %c0_i32_0 = arith.constant 0 : i32
    %c0_i32_1 = arith.constant 0 : i32
    return %c0_i32, %c0_i32_0 : i32, i32
  }
  func.func @transform_1(%arg0: i32) -> (i32, i32) {
    %c0_i32 = arith.constant 0 : i32
    %c0_i32_0 = arith.constant 0 : i32
    %c0_i32_1 = arith.constant 0 : i32
    return %c0_i32, %c0_i32_0 : i32, i32
  }
  func.func @transform_2(%arg0: i32) -> (i32, i32) {
    %c0_i32 = arith.constant 0 : i32
    %c0_i32_0 = arith.constant 0 : i32
    %c0_i32_1 = arith.constant 0 : i32
    return %c0_i32, %c0_i32_0 : i32, i32
  }
  func.func @transform_3(%arg0: i32) -> (i32, i32) {
    %c0_i32 = arith.constant 0 : i32
    %c0_i32_0 = arith.constant 0 : i32
    %c0_i32_1 = arith.constant 0 : i32
    return %c0_i32, %c0_i32_0 : i32, i32
  }
  func.func @transform_4(%arg0: i32) -> (i32, i32) {
    %c0_i32 = arith.constant 0 : i32
    %c0_i32_0 = arith.constant 0 : i32
    %c0_i32_1 = arith.constant 0 : i32
    return %c0_i32, %c0_i32_0 : i32, i32
  }
}

</mosaic_0001>

<llo_original>
// kernel: tpu_custom_call.1
$region0: #{tpu_custom_call.1}
  #allocation0 [shape = 'u32[]', space=smem, size = 0x4, offset = 0x4, fixed_abs, tag = 'smem constant byte address 0x4 - core index']
  #allocation1 [shape = 'u32[144,128]{1,0:T(1,128)}', space=vmem, size = 0x12000, scoped, tag = 'internal scratch']
  %s0 = inlined_call_operand.hbm [shape: bf16[16,32], index: 0, kind: input, shape index: {}]
  %s1 = inlined_call_operand.hbm [shape: bf16[32,96], index: 1, kind: input, shape index: {}]
  %s2 = inlined_call_operand.hbm [shape: bf16[32,128], index: 2, kind: input, shape index: {}]
  %s3 = inlined_call_operand.vmem [shape: f32[1,128], index: 3, kind: input, shape index: {}]
  %s4 = inlined_call_operand.hbm [shape: f32[16,128], index: 4, kind: output, shape index: {}]
  %s5 = sld [smem:[#allocation0]]
  $region38: #{tpu_custom_call.1} parent=0
    _
  %s7 = ssub.s32 1, %s5
  %s8 = scalar_select 0, %s7, %s5
  $region1: #{tpu_custom_call.1} parent=0
    #allocation2 [shape = 'u8[4096]{0}', space=vmem, size = 0x1000, scoped, tag = 'input window, operand 0, single buffered']
    #allocation3 [shape = 's32[1]{0}', space=sflag, size = 0x4, scoped, tag = 'scoped memory for tpu_custom_call.1']
    #allocation4 [shape = 's32[1]{0}', space=sflag, size = 0x4, scoped, tag = 'scoped memory for tpu_custom_call.1']
    #allocation5 [shape = 'u8[8192]{0}', space=vmem, size = 0x2000, scoped, tag = 'input window, operand 1, single buffered']
    #allocation6 [shape = 's32[1]{0}', space=sflag, size = 0x4, scoped, tag = 'scoped memory for tpu_custom_call.1']
    #allocation7 [shape = 'u8[8192]{0}', space=vmem, size = 0x2000, scoped, tag = 'input window, operand 2, single buffered']
    #allocation8 [shape = 'u8[8192]{0}', space=vmem, size = 0x2000, scoped, tag = 'output window, operand 0, single buffered']
    %9 = vsyncpa [#allocation3], 0
    %10 = vsyncpa [#allocation6], 0
    %11 = vsyncpa [#allocation4], 0
    // Predicated region
    $region2: #{tpu_custom_call.1} parent=1 // pred_check
      _
    $region3: #{tpu_custom_call.1} parent=1 // pred_check_branch
      %13 = sbr.rel (0) target = $region5
    $region4: #{tpu_custom_call.1} parent=1 // pred_region
      %s15 = ssub.s32 128, 128
      %16 = vsyncadd [#allocation3], %s15
      %s17 = sshll.u32 [#allocation2], 4
      %s18 = int_to_ptr.vmem [resolvable:$true] %s17
      %23 = dma.hbm_to_vmem [thread:$0]  %s0, 128, %s18, [#allocation3], 64, 64, 4
    $region5: #{tpu_custom_call.1} parent=1 // pred_fallthru
      _
    // Predicated region
    $region6: #{tpu_custom_call.1} parent=1 // pred_check
      _
    $region7: #{tpu_custom_call.1} parent=1 // pred_check_branch
      %25 = sbr.rel (0) target = $region9
    $region8: #{tpu_custom_call.1} parent=1 // pred_region
      %s27 = ssub.s32 256, 256
      %28 = vsyncadd [#allocation6], %s27
      %s29 = sshll.u32 [#allocation5], 4
      %s30 = int_to_ptr.vmem [resolvable:$true] %s29
      %35 = dma.hbm_to_vmem [thread:$0]  %s1, 256, %s30, [#allocation6], 64, 64, 4
    $region9: #{tpu_custom_call.1} parent=1 // pred_fallthru
      _
    // Predicated region
    $region10: #{tpu_custom_call.1} parent=1 // pred_check
      _
    $region11: #{tpu_custom_call.1} parent=1 // pred_check_branch
      %37 = sbr.rel (0) target = $region13
    $region12: #{tpu_custom_call.1} parent=1 // pred_region
      %s39 = ssub.s32 256, 256
      %40 = vsyncadd [#allocation6], %s39
      %s41 = sshll.u32 [#allocation7], 4
      %s42 = int_to_ptr.vmem [resolvable:$true] %s41
      %47 = dma.hbm_to_vmem [thread:$0]  %s2, 256, %s42, [#allocation6], 64, 64, 4
    $region13: #{tpu_custom_call.1} parent=1 // pred_fallthru
      _
    // Predicated region
    $region14: #{tpu_custom_call.1} parent=1 // pred_check
      _
    $region15: #{tpu_custom_call.1} parent=1 // pred_check_branch
      %49 = sbr.rel (0) target = $region17
    $region16: #{tpu_custom_call.1} parent=1 // pred_region
      _
    $region17: #{tpu_custom_call.1} parent=1 // pred_fallthru
      _
    // Predicated region
    $region18: #{tpu_custom_call.1} parent=1 // pred_check
      _
    $region19: #{tpu_custom_call.1} parent=1 // pred_check_branch
      %51 = sbr.rel (0) target = $region21
    $region20: #{tpu_custom_call.1} parent=1 // pred_region
      %52 = dma.done [#allocation3], 128
    $region21: #{tpu_custom_call.1} parent=1 // pred_fallthru
      _
    // Predicated region
    $region22: #{tpu_custom_call.1} parent=1 // pred_check
      _
    $region23: #{tpu_custom_call.1} parent=1 // pred_check_branch
      %54 = sbr.rel (0) target = $region25
    $region24: #{tpu_custom_call.1} parent=1 // pred_region
      %55 = dma.done [#allocation6], 256
    $region25: #{tpu_custom_call.1} parent=1 // pred_fallthru
      _
    // Predicated region
    $region26: #{tpu_custom_call.1} parent=1 // pred_check
      _
    $region27: #{tpu_custom_call.1} parent=1 // pred_check_branch
      %57 = sbr.rel (0) target = $region29
    $region28: #{tpu_custom_call.1} parent=1 // pred_region
      %58 = dma.done [#allocation6], 256
    $region29: #{tpu_custom_call.1} parent=1 // pred_fallthru
      _
    %v60 = vld [vmem:[#allocation2] sm:$0xf]
    %v61 = vld [vmem:[#allocation2 + $0x4] sm:$0xf]
    %v62 = vld [vmem:[#allocation5] sm:$0xf]
    %v63 = vld [vmem:[#allocation5 + $0x4] sm:$0xf]
    %v64 = vld [vmem:[#allocation5 + $0x8] sm:$0xf]
    %v65 = vld [vmem:[#allocation5 + $0xc] sm:$0xf]
    %v66 = vld [vmem:[#allocation7] sm:$0xf]
    %v67 = vld [vmem:[#allocation7 + $0x4] sm:$0xf]
    %v68 = vld [vmem:[#allocation7 + $0x8] sm:$0xf]
    %v69 = vld [vmem:[#allocation7 + $0xc] sm:$0xf]
    %v70 = vld [vmem:[%s3] sm:$0x1]
    %v73 = vunpack.c.l.b16 %v60
    %v74 = vunpack.c.l.b16 %v61
    %v75 = vpack.c.b16 %v74, %v73
    %v80 = vunpack.c.l.b16 %v62
    %v81 = vunpack.c.l.b16 %v63
    %v82 = vunpack.c.l.b16 %v64
    %v83 = vunpack.c.l.b16 %v65
    %v84 = vpack.c.b16 %v81, %v80
    %v85 = vpack.c.b16 %v83, %v82
    %vm88 = vcmask 261120
    %v90 = vsel %vm88, %v75, 0
    %92 = vmatprep.subr.bf16.mxu0 0
    %93 = vmatpush1.bf16.msra.mxu0 %v84
    %94 = vmatprep.subr.bf16.mxu0 0
    %95 = vmatpush1.bf16.msra.mxu0 %v85
    %96 = vmatprep.subr.bf16.mxu0 0
    %97 = vmatpush1.bf16.msra.mxu0 0
    %98 = vmatprep.subr.bf16.mxu0 0
    %99 = vmatpush1.bf16.msra.mxu0 0
    %100 = vmatprep.subr.bf16.mxu0 0
    %101 = vmatpush1.bf16.msra.mxu0 0
    %102 = vmatprep.subr.bf16.mxu0 0
    %103 = vmatpush1.bf16.msra.mxu0 0
    %104 = vmatprep.subr.bf16.mxu0 0
    %105 = vmatpush1.bf16.msra.mxu0 0
    %106 = vmatprep.subr.bf16.mxu0 0
    %107 = vmatpush1.bf16.msra.mxu0 0
    %108 = vmatprep.subr.bf16.mxu0 0
    %109 = vmatpush1.bf16.msra.mxu0 0
    %110 = vmatprep.subr.bf16.mxu0 0
    %111 = vmatpush1.bf16.msra.mxu0 0
    %112 = vmatprep.subr.bf16.mxu0 0
    %113 = vmatpush1.bf16.msra.mxu0 0
    %114 = vmatprep.subr.bf16.mxu0 0
    %115 = vmatpush1.bf16.msra.mxu0 0
    %116 = vmatprep.subr.bf16.mxu0 0
    %117 = vmatpush1.bf16.msra.mxu0 0
    %118 = vmatprep.subr.bf16.mxu0 0
    %119 = vmatpush1.bf16.msra.mxu0 0
    %120 = vmatprep.subr.bf16.mxu0 0
    %121 = vmatpush1.bf16.msra.mxu0 0
    %122 = vmatprep.subr.bf16.mxu0 0
    %123 = vmatpush1.bf16.msra.mxu0 0
    %124 = vmatprep.mubr.bf16.mxu0 0
    %125 = vmatmul.mubr.bf16.gmra.mrb[0].mxu0 %v90
    %v126 = vpop.f32.mrb[0].mxu0
    %v127 = vadd.f32 0.0, %v126
    %v128 = vpop.f32.mrb[0].mxu0
    %v129 = vpop.f32.mrb[0].mxu0
    %v130 = vadd.f32 0.0, %v129
    %v131 = vpop.f32.mrb[0].mxu0
    %132 = vdwg.mxu0
    %v133 = vpack.c.bf16 %v130, %v127
    %135 = vrot.lane.b32.xlu0 %v133, 124
    %v136 = vpop.permute.xlu0 %135
    %137 = vrot.lane.b32.xlu0 %v133, 120
    %v138 = vpop.permute.xlu0 %137
    %139 = vrot.lane.b32.xlu0 %v133, 116
    %v140 = vpop.permute.xlu0 %139
    %141 = vrot.lane.b32.xlu0 %v133, 112
    %v142 = vpop.permute.xlu0 %141
    %143 = vrot.lane.b32.xlu0 %v133, 108
    %v144 = vpop.permute.xlu0 %143
    %145 = vrot.lane.b32.xlu0 %v133, 104
    %v146 = vpop.permute.xlu0 %145
    %147 = vrot.lane.b32.xlu0 %v133, 100
    %v148 = vpop.permute.xlu0 %147
    %v151 = vpack.i.b16 %v136, %v133
    %v153 = vshrl.u32 %v133, 16
    %v154 = vshrl.u32 %v136, 16
    %v155 = vpack.i.b16 %v154, %v153
    %v159 = vpack.i.b16 %v140, %v138
    %v161 = vshrl.u32 %v138, 16
    %v162 = vshrl.u32 %v140, 16
    %v163 = vpack.i.b16 %v162, %v161
    %v167 = vpack.i.b16 %v144, %v142
    %v169 = vshrl.u32 %v142, 16
    %v170 = vshrl.u32 %v144, 16
    %v171 = vpack.i.b16 %v170, %v169
    %v175 = vpack.i.b16 %v148, %v146
    %v177 = vshrl.u32 %v146, 16
    %v178 = vshrl.u32 %v148, 16
    %v179 = vpack.i.b16 %v178, %v177
    %v181 = vcombine.low %v151, %v167
    %v182 = vcombine.high %v151, %v167
    %v184 = vunpack.c.l.s4 1983009808
    %v185 = vunpack.c.0.s8 %v184
    %v186 = vlaneseq
    %v187 = vshrl.u32 %v186, 7
    %v188 = vsub.s32 %v185, %v187
    %v189 = vrot.slane %v181, %v188
    %v191 = vunpack.c.l.s4 1983009808
    %v192 = vunpack.c.0.s8 %v191
    %v193 = vlaneseq
    %v194 = vshrl.u32 %v193, 7
    %v195 = vsub.s32 %v192, %v194
    %v196 = vrot.slane %v182, %v195
    %v197 = vcombine.low %v159, %v175
    %v198 = vcombine.high %v159, %v175
    %v200 = vunpack.c.l.s4 1983009808
    %v201 = vunpack.c.0.s8 %v200
    %v202 = vlaneseq
    %v203 = vshrl.u32 %v202, 7
    %v204 = vsub.s32 %v201, %v203
    %v205 = vrot.slane %v197, %v204
    %v207 = vunpack.c.l.s4 1983009808
    %v208 = vunpack.c.0.s8 %v207
    %v209 = vlaneseq
    %v210 = vshrl.u32 %v209, 7
    %v211 = vsub.s32 %v208, %v210
    %v212 = vrot.slane %v198, %v211
    %v213 = vcombine.low %v189, %v205
    %v214 = vcombine.high %v189, %v205
    %v216 = vunpack.c.l.s4 1934713408
    %v217 = vunpack.c.0.s8 %v216
    %v218 = vlaneseq
    %v219 = vshrl.u32 %v218, 7
    %v220 = vsub.s32 %v217, %v219
    %v221 = vrot.slane %v213, %v220
    %v223 = vunpack.c.l.s4 1934713408
    %v224 = vunpack.c.0.s8 %v223
    %v225 = vlaneseq
    %v226 = vshrl.u32 %v225, 7
    %v227 = vsub.s32 %v224, %v226
    %v228 = vrot.slane %v214, %v227
    %v229 = vcombine.low %v196, %v212
    %v230 = vcombine.high %v196, %v212
    %v232 = vunpack.c.l.s4 1934713408
    %v233 = vunpack.c.0.s8 %v232
    %v234 = vlaneseq
    %v235 = vshrl.u32 %v234, 7
    %v236 = vsub.s32 %v233, %v235
    %v237 = vrot.slane %v229, %v236
    %v239 = vunpack.c.l.s4 1934713408
    %v240 = vunpack.c.0.s8 %v239
    %v241 = vlaneseq
    %v242 = vshrl.u32 %v241, 7
    %v243 = vsub.s32 %v240, %v242
    %v244 = vrot.slane %v230, %v243
    %v245 = vcombine.high %v221, 0
    %v246 = vcombine.high %v228, 0
    %v247 = vcombine.high %v237, 0
    %v248 = vcombine.high %v244, 0
    %v249 = vcombine.low %v155, %v171
    %v250 = vcombine.high %v155, %v171
    %v252 = vunpack.c.l.s4 1983009808
    %v253 = vunpack.c.0.s8 %v252
    %v254 = vlaneseq
    %v255 = vshrl.u32 %v254, 7
    %v256 = vsub.s32 %v253, %v255
    %v257 = vrot.slane %v249, %v256
    %v259 = vunpack.c.l.s4 1983009808
    %v260 = vunpack.c.0.s8 %v259
    %v261 = vlaneseq
    %v262 = vshrl.u32 %v261, 7
    %v263 = vsub.s32 %v260, %v262
    %v264 = vrot.slane %v250, %v263
    %v265 = vcombine.low %v163, %v179
    %v266 = vcombine.high %v163, %v179
    %v268 = vunpack.c.l.s4 1983009808
    %v269 = vunpack.c.0.s8 %v268
    %v270 = vlaneseq
    %v271 = vshrl.u32 %v270, 7
    %v272 = vsub.s32 %v269, %v271
    %v273 = vrot.slane %v265, %v272
    %v275 = vunpack.c.l.s4 1983009808
    %v276 = vunpack.c.0.s8 %v275
    %v277 = vlaneseq
    %v278 = vshrl.u32 %v277, 7
    %v279 = vsub.s32 %v276, %v278
    %v280 = vrot.slane %v266, %v279
    %v281 = vcombine.low %v257, %v273
    %v282 = vcombine.high %v257, %v273
    %v284 = vunpack.c.l.s4 1934713408
    %v285 = vunpack.c.0.s8 %v284
    %v286 = vlaneseq
    %v287 = vshrl.u32 %v286, 7
    %v288 = vsub.s32 %v285, %v287
    %v289 = vrot.slane %v281, %v288
    %v291 = vunpack.c.l.s4 1934713408
    %v292 = vunpack.c.0.s8 %v291
    %v293 = vlaneseq
    %v294 = vshrl.u32 %v293, 7
    %v295 = vsub.s32 %v292, %v294
    %v296 = vrot.slane %v282, %v295
    %v297 = vcombine.low %v264, %v280
    %v298 = vcombine.high %v264, %v280
    %v300 = vunpack.c.l.s4 1934713408
    %v301 = vunpack.c.0.s8 %v300
    %v302 = vlaneseq
    %v303 = vshrl.u32 %v302, 7
    %v304 = vsub.s32 %v301, %v303
    %v305 = vrot.slane %v297, %v304
    %v307 = vunpack.c.l.s4 1934713408
    %v308 = vunpack.c.0.s8 %v307
    %v309 = vlaneseq
    %v310 = vshrl.u32 %v309, 7
    %v311 = vsub.s32 %v308, %v310
    %v312 = vrot.slane %v298, %v311
    %v313 = vcombine.high %v289, 0
    %v314 = vcombine.high %v296, 0
    %v315 = vcombine.high %v305, 0
    %v316 = vcombine.high %v312, 0
    %v317 = vcombine.low %v221, %v228
    %v319 = vunpack.c.l.s4 1983009808
    %v320 = vunpack.c.0.s8 %v319
    %v321 = vlaneseq
    %v322 = vshrl.u32 %v321, 7
    %v323 = vsub.s32 %v320, %v322
    %v324 = vrot.slane %v317, %v323
    %v325 = vcombine.low %v245, %v246
    %v327 = vunpack.c.l.s4 1983009808
    %v328 = vunpack.c.0.s8 %v327
    %v329 = vlaneseq
    %v330 = vshrl.u32 %v329, 7
    %v331 = vsub.s32 %v328, %v330
    %v332 = vrot.slane %v325, %v331
    %v333 = vcombine.low %v324, %v332
    %v334 = vcombine.high %v324, %v332
    %v336 = vunpack.c.l.s4 1934713408
    %v337 = vunpack.c.0.s8 %v336
    %v338 = vlaneseq
    %v339 = vshrl.u32 %v338, 7
    %v340 = vsub.s32 %v337, %v339
    %v341 = vrot.slane %v333, %v340
    %v343 = vunpack.c.l.s4 1934713408
    %v344 = vunpack.c.0.s8 %v343
    %v345 = vlaneseq
    %v346 = vshrl.u32 %v345, 7
    %v347 = vsub.s32 %v344, %v346
    %v348 = vrot.slane %v334, %v347
    %v349 = vcombine.high %v341, 0
    %v350 = vcombine.high %v348, 0
    %v351 = vcombine.low %v289, %v296
    %v353 = vunpack.c.l.s4 1983009808
    %v354 = vunpack.c.0.s8 %v353
    %v355 = vlaneseq
    %v356 = vshrl.u32 %v355, 7
    %v357 = vsub.s32 %v354, %v356
    %v358 = vrot.slane %v351, %v357
    %v359 = vcombine.low %v313, %v314
    %v361 = vunpack.c.l.s4 1983009808
    %v362 = vunpack.c.0.s8 %v361
    %v363 = vlaneseq
    %v364 = vshrl.u32 %v363, 7
    %v365 = vsub.s32 %v362, %v364
    %v366 = vrot.slane %v359, %v365
    %v367 = vcombine.low %v358, %v366
    %v368 = vcombine.high %v358, %v366
    %v370 = vunpack.c.l.s4 1934713408
    %v371 = vunpack.c.0.s8 %v370
    %v372 = vlaneseq
    %v373 = vshrl.u32 %v372, 7
    %v374 = vsub.s32 %v371, %v373
    %v375 = vrot.slane %v367, %v374
    %v377 = vunpack.c.l.s4 1934713408
    %v378 = vunpack.c.0.s8 %v377
    %v379 = vlaneseq
    %v380 = vshrl.u32 %v379, 7
    %v381 = vsub.s32 %v378, %v380
    %v382 = vrot.slane %v368, %v381
    %v383 = vcombine.high %v375, 0
    %v384 = vcombine.high %v382, 0
    %v385 = vcombine.low %v237, %v244
    %v387 = vunpack.c.l.s4 1983009808
    %v388 = vunpack.c.0.s8 %v387
    %v389 = vlaneseq
    %v390 = vshrl.u32 %v389, 7
    %v391 = vsub.s32 %v388, %v390
    %v392 = vrot.slane %v385, %v391
    %v393 = vcombine.low %v247, %v248
    %v395 = vunpack.c.l.s4 1983009808
    %v396 = vunpack.c.0.s8 %v395
    %v397 = vlaneseq
    %v398 = vshrl.u32 %v397, 7
    %v399 = vsub.s32 %v396, %v398
    %v400 = vrot.slane %v393, %v399
    %v401 = vcombine.low %v392, %v400
    %v402 = vcombine.high %v392, %v400
    %v404 = vunpack.c.l.s4 1934713408
    %v405 = vunpack.c.0.s8 %v404
    %v406 = vlaneseq
    %v407 = vshrl.u32 %v406, 7
    %v408 = vsub.s32 %v405, %v407
    %v409 = vrot.slane %v401, %v408
    %v411 = vunpack.c.l.s4 1934713408
    %v412 = vunpack.c.0.s8 %v411
    %v413 = vlaneseq
    %v414 = vshrl.u32 %v413, 7
    %v415 = vsub.s32 %v412, %v414
    %v416 = vrot.slane %v402, %v415
    %v417 = vcombine.high %v409, 0
    %v418 = vcombine.high %v416, 0
    %v419 = vcombine.low %v305, %v312
    %v421 = vunpack.c.l.s4 1983009808
    %v422 = vunpack.c.0.s8 %v421
    %v423 = vlaneseq
    %v424 = vshrl.u32 %v423, 7
    %v425 = vsub.s32 %v422, %v424
    %v426 = vrot.slane %v419, %v425
    %v427 = vcombine.low %v315, %v316
    %v429 = vunpack.c.l.s4 1983009808
    %v430 = vunpack.c.0.s8 %v429
    %v431 = vlaneseq
    %v432 = vshrl.u32 %v431, 7
    %v433 = vsub.s32 %v430, %v432
    %v434 = vrot.slane %v427, %v433
    %v435 = vcombine.low %v426, %v434
    %v436 = vcombine.high %v426, %v434
    %v438 = vunpack.c.l.s4 1934713408
    %v439 = vunpack.c.0.s8 %v438
    %v440 = vlaneseq
    %v441 = vshrl.u32 %v440, 7
    %v442 = vsub.s32 %v439, %v441
    %v443 = vrot.slane %v435, %v442
    %v445 = vunpack.c.l.s4 1934713408
    %v446 = vunpack.c.0.s8 %v445
    %v447 = vlaneseq
    %v448 = vshrl.u32 %v447, 7
    %v449 = vsub.s32 %v446, %v448
    %v450 = vrot.slane %v436, %v449
    %v451 = vcombine.high %v443, 0
    %v452 = vcombine.high %v450, 0
    %v455 = vpack.i.b16 %v375, %v341
    %v456 = vshrl.u32 %v341, 16
    %v457 = vshrl.u32 %v375, 16
    %v458 = vpack.i.b16 %v457, %v456
    %v461 = vpack.i.b16 %v383, %v349
    %v462 = vshrl.u32 %v349, 16
    %v463 = vshrl.u32 %v383, 16
    %v464 = vpack.i.b16 %v463, %v462
    %v467 = vpack.i.b16 %v382, %v348
    %v468 = vshrl.u32 %v348, 16
    %v469 = vshrl.u32 %v382, 16
    %v470 = vpack.i.b16 %v469, %v468
    %v473 = vpack.i.b16 %v384, %v350
    %v474 = vshrl.u32 %v350, 16
    %v475 = vshrl.u32 %v384, 16
    %v476 = vpack.i.b16 %v475, %v474
    %v479 = vpack.i.b16 %v443, %v409
    %v480 = vshrl.u32 %v409, 16
    %v481 = vshrl.u32 %v443, 16
    %v482 = vpack.i.b16 %v481, %v480
    %v485 = vpack.i.b16 %v451, %v417
    %v486 = vshrl.u32 %v417, 16
    %v487 = vshrl.u32 %v451, 16
    %v488 = vpack.i.b16 %v487, %v486
    %v491 = vpack.i.b16 %v450, %v416
    %v492 = vshrl.u32 %v416, 16
    %v493 = vshrl.u32 %v450, 16
    %v494 = vpack.i.b16 %v493, %v492
    %v497 = vpack.i.b16 %v452, %v418
    %v498 = vshrl.u32 %v418, 16
    %v499 = vshrl.u32 %v452, 16
    %v500 = vpack.i.b16 %v499, %v498
    %501 = vrot.lane.b32.xlu0 %v133, 96
    %v502 = vpop.permute.xlu0 %501
    %503 = vrot.lane.b32.xlu0 %v136, 96
    %v504 = vpop.permute.xlu0 %503
    %505 = vrot.lane.b32.xlu0 %v138, 96
    %v506 = vpop.permute.xlu0 %505
    %507 = vrot.lane.b32.xlu0 %v140, 96
    %v508 = vpop.permute.xlu0 %507
    %509 = vrot.lane.b32.xlu0 %v142, 96
    %v510 = vpop.permute.xlu0 %509
    %511 = vrot.lane.b32.xlu0 %v144, 96
    %v512 = vpop.permute.xlu0 %511
    %513 = vrot.lane.b32.xlu0 %v146, 96
    %v514 = vpop.permute.xlu0 %513
    %515 = vrot.lane.b32.xlu0 %v148, 96
    %v516 = vpop.permute.xlu0 %515
    %v519 = vpack.i.b16 %v504, %v502
    %v521 = vshrl.u32 %v502, 16
    %v522 = vshrl.u32 %v504, 16
    %v523 = vpack.i.b16 %v522, %v521
    %v527 = vpack.i.b16 %v508, %v506
    %v529 = vshrl.u32 %v506, 16
    %v530 = vshrl.u32 %v508, 16
    %v531 = vpack.i.b16 %v530, %v529
    %v535 = vpack.i.b16 %v512, %v510
    %v537 = vshrl.u32 %v510, 16
    %v538 = vshrl.u32 %v512, 16
    %v539 = vpack.i.b16 %v538, %v537
    %v543 = vpack.i.b16 %v516, %v514
    %v545 = vshrl.u32 %v514, 16
    %v546 = vshrl.u32 %v516, 16
    %v547 = vpack.i.b16 %v546, %v545
    %v549 = vcombine.low %v519, %v535
    %v550 = vcombine.high %v519, %v535
    %v552 = vunpack.c.l.s4 1983009808
    %v553 = vunpack.c.0.s8 %v552
    %v554 = vlaneseq
    %v555 = vshrl.u32 %v554, 7
    %v556 = vsub.s32 %v553, %v555
    %v557 = vrot.slane %v549, %v556
    %v559 = vunpack.c.l.s4 1983009808
    %v560 = vunpack.c.0.s8 %v559
    %v561 = vlaneseq
    %v562 = vshrl.u32 %v561, 7
    %v563 = vsub.s32 %v560, %v562
    %v564 = vrot.slane %v550, %v563
    %v565 = vcombine.low %v527, %v543
    %v566 = vcombine.high %v527, %v543
    %v568 = vunpack.c.l.s4 1983009808
    %v569 = vunpack.c.0.s8 %v568
    %v570 = vlaneseq
    %v571 = vshrl.u32 %v570, 7
    %v572 = vsub.s32 %v569, %v571
    %v573 = vrot.slane %v565, %v572
    %v575 = vunpack.c.l.s4 1983009808
    %v576 = vunpack.c.0.s8 %v575
    %v577 = vlaneseq
    %v578 = vshrl.u32 %v577, 7
    %v579 = vsub.s32 %v576, %v578
    %v580 = vrot.slane %v566, %v579
    %v581 = vcombine.low %v557, %v573
    %v582 = vcombine.high %v557, %v573
    %v584 = vunpack.c.l.s4 1934713408
    %v585 = vunpack.c.0.s8 %v584
    %v586 = vlaneseq
    %v587 = vshrl.u32 %v586, 7
    %v588 = vsub.s32 %v585, %v587
    %v589 = vrot.slane %v581, %v588
    %v591 = vunpack.c.l.s4 1934713408
    %v592 = vunpack.c.0.s8 %v591
    %v593 = vlaneseq
    %v594 = vshrl.u32 %v593, 7
    %v595 = vsub.s32 %v592, %v594
    %v596 = vrot.slane %v582, %v595
    %v597 = vcombine.low %v564, %v580
    %v598 = vcombine.high %v564, %v580
    %v600 = vunpack.c.l.s4 1934713408
    %v601 = vunpack.c.0.s8 %v600
    %v602 = vlaneseq
    %v603 = vshrl.u32 %v602, 7
    %v604 = vsub.s32 %v601, %v603
    %v605 = vrot.slane %v597, %v604
    %v607 = vunpack.c.l.s4 1934713408
    %v608 = vunpack.c.0.s8 %v607
    %v609 = vlaneseq
    %v610 = vshrl.u32 %v609, 7
    %v611 = vsub.s32 %v608, %v610
    %v612 = vrot.slane %v598, %v611
    %v613 = vcombine.high %v589, 0
    %v614 = vcombine.high %v596, 0
    %v615 = vcombine.high %v605, 0
    %v616 = vcombine.high %v612, 0
    %v617 = vcombine.low %v523, %v539
    %v618 = vcombine.high %v523, %v539
    %v620 = vunpack.c.l.s4 1983009808
    %v621 = vunpack.c.0.s8 %v620
    %v622 = vlaneseq
    %v623 = vshrl.u32 %v622, 7
    %v624 = vsub.s32 %v621, %v623
    %v625 = vrot.slane %v617, %v624
    %v627 = vunpack.c.l.s4 1983009808
    %v628 = vunpack.c.0.s8 %v627
    %v629 = vlaneseq
    %v630 = vshrl.u32 %v629, 7
    %v631 = vsub.s32 %v628, %v630
    %v632 = vrot.slane %v618, %v631
    %v633 = vcombine.low %v531, %v547
    %v634 = vcombine.high %v531, %v547
    %v636 = vunpack.c.l.s4 1983009808
    %v637 = vunpack.c.0.s8 %v636
    %v638 = vlaneseq
    %v639 = vshrl.u32 %v638, 7
    %v640 = vsub.s32 %v637, %v639
    %v641 = vrot.slane %v633, %v640
    %v643 = vunpack.c.l.s4 1983009808
    %v644 = vunpack.c.0.s8 %v643
    %v645 = vlaneseq
    %v646 = vshrl.u32 %v645, 7
    %v647 = vsub.s32 %v644, %v646
    %v648 = vrot.slane %v634, %v647
    %v649 = vcombine.low %v625, %v641
    %v650 = vcombine.high %v625, %v641
    %v652 = vunpack.c.l.s4 1934713408
    %v653 = vunpack.c.0.s8 %v652
    %v654 = vlaneseq
    %v655 = vshrl.u32 %v654, 7
    %v656 = vsub.s32 %v653, %v655
    %v657 = vrot.slane %v649, %v656
    %v659 = vunpack.c.l.s4 1934713408
    %v660 = vunpack.c.0.s8 %v659
    %v661 = vlaneseq
    %v662 = vshrl.u32 %v661, 7
    %v663 = vsub.s32 %v660, %v662
    %v664 = vrot.slane %v650, %v663
    %v665 = vcombine.low %v632, %v648
    %v666 = vcombine.high %v632, %v648
    %v668 = vunpack.c.l.s4 1934713408
    %v669 = vunpack.c.0.s8 %v668
    %v670 = vlaneseq
    %v671 = vshrl.u32 %v670, 7
    %v672 = vsub.s32 %v669, %v671
    %v673 = vrot.slane %v665, %v672
    %v675 = vunpack.c.l.s4 1934713408
    %v676 = vunpack.c.0.s8 %v675
    %v677 = vlaneseq
    %v678 = vshrl.u32 %v677, 7
    %v679 = vsub.s32 %v676, %v678
    %v680 = vrot.slane %v666, %v679
    %v681 = vcombine.high %v657, 0
    %v682 = vcombine.high %v664, 0
    %v683 = vcombine.high %v673, 0
    %v684 = vcombine.high %v680, 0
    %v685 = vcombine.low %v589, %v596
    %v687 = vunpack.c.l.s4 1983009808
    %v688 = vunpack.c.0.s8 %v687
    %v689 = vlaneseq
    %v690 = vshrl.u32 %v689, 7
    %v691 = vsub.s32 %v688, %v690
    %v692 = vrot.slane %v685, %v691
    %v693 = vcombine.low %v613, %v614
    %v695 = vunpack.c.l.s4 1983009808
    %v696 = vunpack.c.0.s8 %v695
    %v697 = vlaneseq
    %v698 = vshrl.u32 %v697, 7
    %v699 = vsub.s32 %v696, %v698
    %v700 = vrot.slane %v693, %v699
    %v701 = vcombine.low %v692, %v700
    %v702 = vcombine.high %v692, %v700
    %v704 = vunpack.c.l.s4 1934713408
    %v705 = vunpack.c.0.s8 %v704
    %v706 = vlaneseq
    %v707 = vshrl.u32 %v706, 7
    %v708 = vsub.s32 %v705, %v707
    %v709 = vrot.slane %v701, %v708
    %v711 = vunpack.c.l.s4 1934713408
    %v712 = vunpack.c.0.s8 %v711
    %v713 = vlaneseq
    %v714 = vshrl.u32 %v713, 7
    %v715 = vsub.s32 %v712, %v714
    %v716 = vrot.slane %v702, %v715
    %v717 = vcombine.high %v709, 0
    %v718 = vcombine.high %v716, 0
    %v719 = vcombine.low %v657, %v664
    %v721 = vunpack.c.l.s4 1983009808
    %v722 = vunpack.c.0.s8 %v721
    %v723 = vlaneseq
    %v724 = vshrl.u32 %v723, 7
    %v725 = vsub.s32 %v722, %v724
    %v726 = vrot.slane %v719, %v725
    %v727 = vcombine.low %v681, %v682
    %v729 = vunpack.c.l.s4 1983009808
    %v730 = vunpack.c.0.s8 %v729
    %v731 = vlaneseq
    %v732 = vshrl.u32 %v731, 7
    %v733 = vsub.s32 %v730, %v732
    %v734 = vrot.slane %v727, %v733
    %v735 = vcombine.low %v726, %v734
    %v736 = vcombine.high %v726, %v734
    %v738 = vunpack.c.l.s4 1934713408
    %v739 = vunpack.c.0.s8 %v738
    %v740 = vlaneseq
    %v741 = vshrl.u32 %v740, 7
    %v742 = vsub.s32 %v739, %v741
    %v743 = vrot.slane %v735, %v742
    %v745 = vunpack.c.l.s4 1934713408
    %v746 = vunpack.c.0.s8 %v745
    %v747 = vlaneseq
    %v748 = vshrl.u32 %v747, 7
    %v749 = vsub.s32 %v746, %v748
    %v750 = vrot.slane %v736, %v749
    %v751 = vcombine.high %v743, 0
    %v752 = vcombine.high %v750, 0
    %v753 = vcombine.low %v605, %v612
    %v755 = vunpack.c.l.s4 1983009808
    %v756 = vunpack.c.0.s8 %v755
    %v757 = vlaneseq
    %v758 = vshrl.u32 %v757, 7
    %v759 = vsub.s32 %v756, %v758
    %v760 = vrot.slane %v753, %v759
    %v761 = vcombine.low %v615, %v616
    %v763 = vunpack.c.l.s4 1983009808
    %v764 = vunpack.c.0.s8 %v763
    %v765 = vlaneseq
    %v766 = vshrl.u32 %v765, 7
    %v767 = vsub.s32 %v764, %v766
    %v768 = vrot.slane %v761, %v767
    %v769 = vcombine.low %v760, %v768
    %v770 = vcombine.high %v760, %v768
    %v772 = vunpack.c.l.s4 1934713408
    %v773 = vunpack.c.0.s8 %v772
    %v774 = vlaneseq
    %v775 = vshrl.u32 %v774, 7
    %v776 = vsub.s32 %v773, %v775
    %v777 = vrot.slane %v769, %v776
    %v779 = vunpack.c.l.s4 1934713408
    %v780 = vunpack.c.0.s8 %v779
    %v781 = vlaneseq
    %v782 = vshrl.u32 %v781, 7
    %v783 = vsub.s32 %v780, %v782
    %v784 = vrot.slane %v770, %v783
    %v785 = vcombine.high %v777, 0
    %v786 = vcombine.high %v784, 0
    %v787 = vcombine.low %v673, %v680
    %v789 = vunpack.c.l.s4 1983009808
    %v790 = vunpack.c.0.s8 %v789
    %v791 = vlaneseq
    %v792 = vshrl.u32 %v791, 7
    %v793 = vsub.s32 %v790, %v792
    %v794 = vrot.slane %v787, %v793
    %v795 = vcombine.low %v683, %v684
    %v797 = vunpack.c.l.s4 1983009808
    %v798 = vunpack.c.0.s8 %v797
    %v799 = vlaneseq
    %v800 = vshrl.u32 %v799, 7
    %v801 = vsub.s32 %v798, %v800
    %v802 = vrot.slane %v795, %v801
    %v803 = vcombine.low %v794, %v802
    %v804 = vcombine.high %v794, %v802
    %v806 = vunpack.c.l.s4 1934713408
    %v807 = vunpack.c.0.s8 %v806
    %v808 = vlaneseq
    %v809 = vshrl.u32 %v808, 7
    %v810 = vsub.s32 %v807, %v809
    %v811 = vrot.slane %v803, %v810
    %v813 = vunpack.c.l.s4 1934713408
    %v814 = vunpack.c.0.s8 %v813
    %v815 = vlaneseq
    %v816 = vshrl.u32 %v815, 7
    %v817 = vsub.s32 %v814, %v816
    %v818 = vrot.slane %v804, %v817
    %v819 = vcombine.high %v811, 0
    %v820 = vcombine.high %v818, 0
    %v823 = vpack.i.b16 %v743, %v709
    %v824 = vshrl.u32 %v709, 16
    %v825 = vshrl.u32 %v743, 16
    %v826 = vpack.i.b16 %v825, %v824
    %v829 = vpack.i.b16 %v751, %v717
    %v830 = vshrl.u32 %v717, 16
    %v831 = vshrl.u32 %v751, 16
    %v832 = vpack.i.b16 %v831, %v830
    %v835 = vpack.i.b16 %v750, %v716
    %v836 = vshrl.u32 %v716, 16
    %v837 = vshrl.u32 %v750, 16
    %v838 = vpack.i.b16 %v837, %v836
    %v841 = vpack.i.b16 %v752, %v718
    %v842 = vshrl.u32 %v718, 16
    %v843 = vshrl.u32 %v752, 16
    %v844 = vpack.i.b16 %v843, %v842
    %v847 = vpack.i.b16 %v811, %v777
    %v848 = vshrl.u32 %v777, 16
    %v849 = vshrl.u32 %v811, 16
    %v850 = vpack.i.b16 %v849, %v848
    %v853 = vpack.i.b16 %v819, %v785
    %v854 = vshrl.u32 %v785, 16
    %v855 = vshrl.u32 %v819, 16
    %v856 = vpack.i.b16 %v855, %v854
    %v859 = vpack.i.b16 %v818, %v784
    %v860 = vshrl.u32 %v784, 16
    %v861 = vshrl.u32 %v818, 16
    %v862 = vpack.i.b16 %v861, %v860
    %v865 = vpack.i.b16 %v820, %v786
    %v866 = vshrl.u32 %v786, 16
    %v867 = vshrl.u32 %v820, 16
    %v868 = vpack.i.b16 %v867, %v866
    %869 = vrot.lane.b32.xlu0 %v133, 64
    %v870 = vpop.permute.xlu0 %869
    %871 = vrot.lane.b32.xlu0 %v136, 64
    %v872 = vpop.permute.xlu0 %871
    %873 = vrot.lane.b32.xlu0 %v138, 64
    %v874 = vpop.permute.xlu0 %873
    %875 = vrot.lane.b32.xlu0 %v140, 64
    %v876 = vpop.permute.xlu0 %875
    %877 = vrot.lane.b32.xlu0 %v142, 64
    %v878 = vpop.permute.xlu0 %877
    %879 = vrot.lane.b32.xlu0 %v144, 64
    %v880 = vpop.permute.xlu0 %879
    %881 = vrot.lane.b32.xlu0 %v146, 64
    %v882 = vpop.permute.xlu0 %881
    %883 = vrot.lane.b32.xlu0 %v148, 64
    %v884 = vpop.permute.xlu0 %883
    %v887 = vpack.i.b16 %v872, %v870
    %v889 = vshrl.u32 %v870, 16
    %v890 = vshrl.u32 %v872, 16
    %v891 = vpack.i.b16 %v890, %v889
    %v895 = vpack.i.b16 %v876, %v874
    %v897 = vshrl.u32 %v874, 16
    %v898 = vshrl.u32 %v876, 16
    %v899 = vpack.i.b16 %v898, %v897
    %v903 = vpack.i.b16 %v880, %v878
    %v905 = vshrl.u32 %v878, 16
    %v906 = vshrl.u32 %v880, 16
    %v907 = vpack.i.b16 %v906, %v905
    %v911 = vpack.i.b16 %v884, %v882
    %v913 = vshrl.u32 %v882, 16
    %v914 = vshrl.u32 %v884, 16
    %v915 = vpack.i.b16 %v914, %v913
    %v917 = vcombine.low %v887, %v903
    %v918 = vcombine.high %v887, %v903
    %v920 = vunpack.c.l.s4 1983009808
    %v921 = vunpack.c.0.s8 %v920
    %v922 = vlaneseq
    %v923 = vshrl.u32 %v922, 7
    %v924 = vsub.s32 %v921, %v923
    %v925 = vrot.slane %v917, %v924
    %v927 = vunpack.c.l.s4 1983009808
    %v928 = vunpack.c.0.s8 %v927
    %v929 = vlaneseq
    %v930 = vshrl.u32 %v929, 7
    %v931 = vsub.s32 %v928, %v930
    %v932 = vrot.slane %v918, %v931
    %v933 = vcombine.low %v895, %v911
    %v934 = vcombine.high %v895, %v911
    %v936 = vunpack.c.l.s4 1983009808
    %v937 = vunpack.c.0.s8 %v936
    %v938 = vlaneseq
    %v939 = vshrl.u32 %v938, 7
    %v940 = vsub.s32 %v937, %v939
    %v941 = vrot.slane %v933, %v940
    %v943 = vunpack.c.l.s4 1983009808
    %v944 = vunpack.c.0.s8 %v943
    %v945 = vlaneseq
    %v946 = vshrl.u32 %v945, 7
    %v947 = vsub.s32 %v944, %v946
    %v948 = vrot.slane %v934, %v947
    %v949 = vcombine.low %v925, %v941
    %v950 = vcombine.high %v925, %v941
    %v952 = vunpack.c.l.s4 1934713408
    %v953 = vunpack.c.0.s8 %v952
    %v954 = vlaneseq
    %v955 = vshrl.u32 %v954, 7
    %v956 = vsub.s32 %v953, %v955
    %v957 = vrot.slane %v949, %v956
    %v959 = vunpack.c.l.s4 1934713408
    %v960 = vunpack.c.0.s8 %v959
    %v961 = vlaneseq
    %v962 = vshrl.u32 %v961, 7
    %v963 = vsub.s32 %v960, %v962
    %v964 = vrot.slane %v950, %v963
    %v965 = vcombine.low %v932, %v948
    %v966 = vcombine.high %v932, %v948
    %v968 = vunpack.c.l.s4 1934713408
    %v969 = vunpack.c.0.s8 %v968
    %v970 = vlaneseq
    %v971 = vshrl.u32 %v970, 7
    %v972 = vsub.s32 %v969, %v971
    %v973 = vrot.slane %v965, %v972
    %v975 = vunpack.c.l.s4 1934713408
    %v976 = vunpack.c.0.s8 %v975
    %v977 = vlaneseq
    %v978 = vshrl.u32 %v977, 7
    %v979 = vsub.s32 %v976, %v978
    %v980 = vrot.slane %v966, %v979
    %v981 = vcombine.high %v957, 0
    %v982 = vcombine.high %v964, 0
    %v983 = vcombine.high %v973, 0
    %v984 = vcombine.high %v980, 0
    %v985 = vcombine.low %v891, %v907
    %v986 = vcombine.high %v891, %v907
    %v988 = vunpack.c.l.s4 1983009808
    %v989 = vunpack.c.0.s8 %v988
    %v990 = vlaneseq
    %v991 = vshrl.u32 %v990, 7
    %v992 = vsub.s32 %v989, %v991
    %v993 = vrot.slane %v985, %v992
    %v995 = vunpack.c.l.s4 1983009808
    %v996 = vunpack.c.0.s8 %v995
    %v997 = vlaneseq
    %v998 = vshrl.u32 %v997, 7
    %v999 = vsub.s32 %v996, %v998
    %v1000 = vrot.slane %v986, %v999
    %v1001 = vcombine.low %v899, %v915
    %v1002 = vcombine.high %v899, %v915
    %v1004 = vunpack.c.l.s4 1983009808
    %v1005 = vunpack.c.0.s8 %v1004
    %v1006 = vlaneseq
    %v1007 = vshrl.u32 %v1006, 7
    %v1008 = vsub.s32 %v1005, %v1007
    %v1009 = vrot.slane %v1001, %v1008
    %v1011 = vunpack.c.l.s4 1983009808
    %v1012 = vunpack.c.0.s8 %v1011
    %v1013 = vlaneseq
    %v1014 = vshrl.u32 %v1013, 7
    %v1015 = vsub.s32 %v1012, %v1014
    %v1016 = vrot.slane %v1002, %v1015
    %v1017 = vcombine.low %v993, %v1009
    %v1018 = vcombine.high %v993, %v1009
    %v1020 = vunpack.c.l.s4 1934713408
    %v1021 = vunpack.c.0.s8 %v1020
    %v1022 = vlaneseq
    %v1023 = vshrl.u32 %v1022, 7
    %v1024 = vsub.s32 %v1021, %v1023
    %v1025 = vrot.slane %v1017, %v1024
    %v1027 = vunpack.c.l.s4 1934713408
    %v1028 = vunpack.c.0.s8 %v1027
    %v1029 = vlaneseq
    %v1030 = vshrl.u32 %v1029, 7
    %v1031 = vsub.s32 %v1028, %v1030
    %v1032 = vrot.slane %v1018, %v1031
    %v1033 = vcombine.low %v1000, %v1016
    %v1034 = vcombine.high %v1000, %v1016
    %v1036 = vunpack.c.l.s4 1934713408
    %v1037 = vunpack.c.0.s8 %v1036
    %v1038 = vlaneseq
    %v1039 = vshrl.u32 %v1038, 7
    %v1040 = vsub.s32 %v1037, %v1039
    %v1041 = vrot.slane %v1033, %v1040
    %v1043 = vunpack.c.l.s4 1934713408
    %v1044 = vunpack.c.0.s8 %v1043
    %v1045 = vlaneseq
    %v1046 = vshrl.u32 %v1045, 7
    %v1047 = vsub.s32 %v1044, %v1046
    %v1048 = vrot.slane %v1034, %v1047
    %v1049 = vcombine.high %v1025, 0
    %v1050 = vcombine.high %v1032, 0
    %v1051 = vcombine.high %v1041, 0
    %v1052 = vcombine.high %v1048, 0
    %v1053 = vcombine.low %v957, %v964
    %v1055 = vunpack.c.l.s4 1983009808
    %v1056 = vunpack.c.0.s8 %v1055
    %v1057 = vlaneseq
    %v1058 = vshrl.u32 %v1057, 7
    %v1059 = vsub.s32 %v1056, %v1058
    %v1060 = vrot.slane %v1053, %v1059
    %v1061 = vcombine.low %v981, %v982
    %v1063 = vunpack.c.l.s4 1983009808
    %v1064 = vunpack.c.0.s8 %v1063
    %v1065 = vlaneseq
    %v1066 = vshrl.u32 %v1065, 7
    %v1067 = vsub.s32 %v1064, %v1066
    %v1068 = vrot.slane %v1061, %v1067
    %v1069 = vcombine.low %v1060, %v1068
    %v1070 = vcombine.high %v1060, %v1068
    %v1072 = vunpack.c.l.s4 1934713408
    %v1073 = vunpack.c.0.s8 %v1072
    %v1074 = vlaneseq
    %v1075 = vshrl.u32 %v1074, 7
    %v1076 = vsub.s32 %v1073, %v1075
    %v1077 = vrot.slane %v1069, %v1076
    %v1079 = vunpack.c.l.s4 1934713408
    %v1080 = vunpack.c.0.s8 %v1079
    %v1081 = vlaneseq
    %v1082 = vshrl.u32 %v1081, 7
    %v1083 = vsub.s32 %v1080, %v1082
    %v1084 = vrot.slane %v1070, %v1083
    %v1085 = vcombine.high %v1077, 0
    %v1086 = vcombine.high %v1084, 0
    %v1087 = vcombine.low %v1025, %v1032
    %v1089 = vunpack.c.l.s4 1983009808
    %v1090 = vunpack.c.0.s8 %v1089
    %v1091 = vlaneseq
    %v1092 = vshrl.u32 %v1091, 7
    %v1093 = vsub.s32 %v1090, %v1092
    %v1094 = vrot.slane %v1087, %v1093
    %v1095 = vcombine.low %v1049, %v1050
    %v1097 = vunpack.c.l.s4 1983009808
    %v1098 = vunpack.c.0.s8 %v1097
    %v1099 = vlaneseq
    %v1100 = vshrl.u32 %v1099, 7
    %v1101 = vsub.s32 %v1098, %v1100
    %v1102 = vrot.slane %v1095, %v1101
    %v1103 = vcombine.low %v1094, %v1102
    %v1104 = vcombine.high %v1094, %v1102
    %v1106 = vunpack.c.l.s4 1934713408
    %v1107 = vunpack.c.0.s8 %v1106
    %v1108 = vlaneseq
    %v1109 = vshrl.u32 %v1108, 7
    %v1110 = vsub.s32 %v1107, %v1109
    %v1111 = vrot.slane %v1103, %v1110
    %v1113 = vunpack.c.l.s4 1934713408
    %v1114 = vunpack.c.0.s8 %v1113
    %v1115 = vlaneseq
    %v1116 = vshrl.u32 %v1115, 7
    %v1117 = vsub.s32 %v1114, %v1116
    %v1118 = vrot.slane %v1104, %v1117
    %v1119 = vcombine.high %v1111, 0
    %v1120 = vcombine.high %v1118, 0
    %v1121 = vcombine.low %v973, %v980
    %v1123 = vunpack.c.l.s4 1983009808
    %v1124 = vunpack.c.0.s8 %v1123
    %v1125 = vlaneseq
    %v1126 = vshrl.u32 %v1125, 7
    %v1127 = vsub.s32 %v1124, %v1126
    %v1128 = vrot.slane %v1121, %v1127
    %v1129 = vcombine.low %v983, %v984
    %v1131 = vunpack.c.l.s4 1983009808
    %v1132 = vunpack.c.0.s8 %v1131
    %v1133 = vlaneseq
    %v1134 = vshrl.u32 %v1133, 7
    %v1135 = vsub.s32 %v1132, %v1134
    %v1136 = vrot.slane %v1129, %v1135
    %v1137 = vcombine.low %v1128, %v1136
    %v1138 = vcombine.high %v1128, %v1136
    %v1140 = vunpack.c.l.s4 1934713408
    %v1141 = vunpack.c.0.s8 %v1140
    %v1142 = vlaneseq
    %v1143 = vshrl.u32 %v1142, 7
    %v1144 = vsub.s32 %v1141, %v1143
    %v1145 = vrot.slane %v1137, %v1144
    %v1147 = vunpack.c.l.s4 1934713408
    %v1148 = vunpack.c.0.s8 %v1147
    %v1149 = vlaneseq
    %v1150 = vshrl.u32 %v1149, 7
    %v1151 = vsub.s32 %v1148, %v1150
    %v1152 = vrot.slane %v1138, %v1151
    %v1153 = vcombine.high %v1145, 0
    %v1154 = vcombine.high %v1152, 0
    %v1155 = vcombine.low %v1041, %v1048
    %v1157 = vunpack.c.l.s4 1983009808
    %v1158 = vunpack.c.0.s8 %v1157
    %v1159 = vlaneseq
    %v1160 = vshrl.u32 %v1159, 7
    %v1161 = vsub.s32 %v1158, %v1160
    %v1162 = vrot.slane %v1155, %v1161
    %v1163 = vcombine.low %v1051, %v1052
    %v1165 = vunpack.c.l.s4 1983009808
    %v1166 = vunpack.c.0.s8 %v1165
    %v1167 = vlaneseq
    %v1168 = vshrl.u32 %v1167, 7
    %v1169 = vsub.s32 %v1166, %v1168
    %v1170 = vrot.slane %v1163, %v1169
    %v1171 = vcombine.low %v1162, %v1170
    %v1172 = vcombine.high %v1162, %v1170
    %v1174 = vunpack.c.l.s4 1934713408
    %v1175 = vunpack.c.0.s8 %v1174
    %v1176 = vlaneseq
    %v1177 = vshrl.u32 %v1176, 7
    %v1178 = vsub.s32 %v1175, %v1177
    %v1179 = vrot.slane %v1171, %v1178
    %v1181 = vunpack.c.l.s4 1934713408
    %v1182 = vunpack.c.0.s8 %v1181
    %v1183 = vlaneseq
    %v1184 = vshrl.u32 %v1183, 7
    %v1185 = vsub.s32 %v1182, %v1184
    %v1186 = vrot.slane %v1172, %v1185
    %v1187 = vcombine.high %v1179, 0
    %v1188 = vcombine.high %v1186, 0
    %v1191 = vpack.i.b16 %v1111, %v1077
    %v1192 = vshrl.u32 %v1077, 16
    %v1193 = vshrl.u32 %v1111, 16
    %v1194 = vpack.i.b16 %v1193, %v1192
    %v1197 = vpack.i.b16 %v1119, %v1085
    %v1198 = vshrl.u32 %v1085, 16
    %v1199 = vshrl.u32 %v1119, 16
    %v1200 = vpack.i.b16 %v1199, %v1198
    %v1203 = vpack.i.b16 %v1118, %v1084
    %v1204 = vshrl.u32 %v1084, 16
    %v1205 = vshrl.u32 %v1118, 16
    %v1206 = vpack.i.b16 %v1205, %v1204
    %v1209 = vpack.i.b16 %v1120, %v1086
    %v1210 = vshrl.u32 %v1086, 16
    %v1211 = vshrl.u32 %v1120, 16
    %v1212 = vpack.i.b16 %v1211, %v1210
    %v1215 = vpack.i.b16 %v1179, %v1145
    %v1216 = vshrl.u32 %v1145, 16
    %v1217 = vshrl.u32 %v1179, 16
    %v1218 = vpack.i.b16 %v1217, %v1216
    %v1221 = vpack.i.b16 %v1187, %v1153
    %v1222 = vshrl.u32 %v1153, 16
    %v1223 = vshrl.u32 %v1187, 16
    %v1224 = vpack.i.b16 %v1223, %v1222
    %v1227 = vpack.i.b16 %v1186, %v1152
    %v1228 = vshrl.u32 %v1152, 16
    %v1229 = vshrl.u32 %v1186, 16
    %v1230 = vpack.i.b16 %v1229, %v1228
    %v1233 = vpack.i.b16 %v1188, %v1154
    %v1234 = vshrl.u32 %v1154, 16
    %v1235 = vshrl.u32 %v1188, 16
    %v1236 = vpack.i.b16 %v1235, %v1234
    %vm1237 = vcmask 31744
    %v1239 = vsel %vm1237, %v455, 0
    %v1242 = vsel %vm1237, %v823, 0
    %1244 = vmatprep.subr.bf16.mxu0 0
    %1245 = vmatpush1.bf16.xpose.msra.mxu0 %v1242
    %1246 = vmatprep.subr.bf16.mxu0 0
    %1247 = vmatpush1.bf16.xpose.msra.mxu0 0
    %1248 = vmatprep.subr.bf16.mxu0 0
    %1249 = vmatpush1.bf16.xpose.msra.mxu0 0
    %1250 = vmatprep.subr.bf16.mxu0 0
    %1251 = vmatpush1.bf16.xpose.msra.mxu0 0
    %1252 = vmatprep.subr.bf16.mxu0 0
    %1253 = vmatpush1.bf16.xpose.msra.mxu0 0
    %1254 = vmatprep.subr.bf16.mxu0 0
    %1255 = vmatpush1.bf16.xpose.msra.mxu0 0
    %1256 = vmatprep.subr.bf16.mxu0 0
    %1257 = vmatpush1.bf16.xpose.msra.mxu0 0
    %1258 = vmatprep.subr.bf16.mxu0 0
    %1259 = vmatpush1.bf16.xpose.msra.mxu0 0
    %1260 = vmatprep.subr.bf16.mxu0 0
    %1261 = vmatpush1.bf16.xpose.msra.mxu0 0
    %1262 = vmatprep.subr.bf16.mxu0 0
    %1263 = vmatpush1.bf16.xpose.msra.mxu0 0
    %1264 = vmatprep.subr.bf16.mxu0 0
    %1265 = vmatpush1.bf16.xpose.msra.mxu0 0
    %1266 = vmatprep.subr.bf16.mxu0 0
    %1267 = vmatpush1.bf16.xpose.msra.mxu0 0
    %1268 = vmatprep.subr.bf16.mxu0 0
    %1269 = vmatpush1.bf16.xpose.msra.mxu0 0
    %1270 = vmatprep.subr.bf16.mxu0 0
    %1271 = vmatpush1.bf16.xpose.msra.mxu0 0
    %1272 = vmatprep.subr.bf16.mxu0 0
    %1273 = vmatpush1.bf16.xpose.msra.mxu0 0
    %1274 = vmatprep.subr.bf16.mxu0 0
    %1275 = vmatpush1.bf16.xpose.msra.mxu0 0
    %1276 = vmatprep.mubr.bf16.mxu0 0
    %1277 = vmatmul.mubr.bf16.gmra.mrb[0].mxu0 %v1239
    %v1278 = vpop.f32.mrb[0].mxu0
    %v1279 = vadd.f32 0.0, %v1278
    %v1280 = vpop.f32.mrb[0].mxu0
    %v1281 = vpop.f32.mrb[0].mxu0
    %v1282 = vpop.f32.mrb[0].mxu0
    %1283 = vdwg.mxu0
    %v1285 = vsel %vm1237, %v458, 0
    %v1288 = vsel %vm1237, %v826, 0
    %1290 = vmatprep.subr.bf16.mxu0 0
    %1291 = vmatpush1.bf16.xpose.msra.mxu0 %v1288
    %1292 = vmatprep.subr.bf16.mxu0 0
    %1293 = vmatpush1.bf16.xpose.msra.mxu0 0
    %1294 = vmatprep.subr.bf16.mxu0 0
    %1295 = vmatpush1.bf16.xpose.msra.mxu0 0
    %1296 = vmatprep.subr.bf16.mxu0 0
    %1297 = vmatpush1.bf16.xpose.msra.mxu0 0
    %1298 = vmatprep.subr.bf16.mxu0 0
    %1299 = vmatpush1.bf16.xpose.msra.mxu0 0
    %1300 = vmatprep.subr.bf16.mxu0 0
    %1301 = vmatpush1.bf16.xpose.msra.mxu0 0
    %1302 = vmatprep.subr.bf16.mxu0 0
    %1303 = vmatpush1.bf16.xpose.msra.mxu0 0
    %1304 = vmatprep.subr.bf16.mxu0 0
    %1305 = vmatpush1.bf16.xpose.msra.mxu0 0
    %1306 = vmatprep.subr.bf16.mxu0 0
    %1307 = vmatpush1.bf16.xpose.msra.mxu0 0
    %1308 = vmatprep.subr.bf16.mxu0 0
    %1309 = vmatpush1.bf16.xpose.msra.mxu0 0
    %1310 = vmatprep.subr.bf16.mxu0 0
    %1311 = vmatpush1.bf16.xpose.msra.mxu0 0
    %1312 = vmatprep.subr.bf16.mxu0 0
    %1313 = vmatpush1.bf16.xpose.msra.mxu0 0
    %1314 = vmatprep.subr.bf16.mxu0 0
    %1315 = vmatpush1.bf16.xpose.msra.mxu0 0
    %1316 = vmatprep.subr.bf16.mxu0 0
    %1317 = vmatpush1.bf16.xpose.msra.mxu0 0
    %1318 = vmatprep.subr.bf16.mxu0 0
    %1319 = vmatpush1.bf16.xpose.msra.mxu0 0
    %1320 = vmatprep.subr.bf16.mxu0 0
    %1321 = vmatpush1.bf16.xpose.msra.mxu0 0
    %1322 = vmatprep.mubr.bf16.mxu0 0
    %1323 = vmatmul.mubr.bf16.gmra.mrb[0].mxu0 %v1285
    %v1324 = vpop.f32.mrb[0].mxu0
    %v1325 = vadd.f32 0.0, %v1324
    %v1326 = vpop.f32.mrb[0].mxu0
    %v1327 = vpop.f32.mrb[0].mxu0
    %v1328 = vpop.f32.mrb[0].mxu0
    %1329 = vdwg.mxu0
    %v1331 = vsel %vm1237, %v461, 0
    %v1334 = vsel %vm1237, %v829, 0
    %1336 = vmatprep.subr.bf16.mxu0 0
    %1337 = vmatpush1.bf16.xpose.msra.mxu0 %v1334
    %1338 = vmatprep.subr.bf16.mxu0 0
    %1339 = vmatpush1.bf16.xpose.msra.mxu0 0
    %1340 = vmatprep.subr.bf16.mxu0 0
    %1341 = vmatpush1.bf16.xpose.msra.mxu0 0
    %1342 = vmatprep.subr.bf16.mxu0 0
    %1343 = vmatpush1.bf16.xpose.msra.mxu0 0
    %1344 = vmatprep.subr.bf16.mxu0 0
    %1345 = vmatpush1.bf16.xpose.msra.mxu0 0
    %1346 = vmatprep.subr.bf16.mxu0 0
    %1347 = vmatpush1.bf16.xpose.msra.mxu0 0
    %1348 = vmatprep.subr.bf16.mxu0 0
    %1349 = vmatpush1.bf16.xpose.msra.mxu0 0
    %1350 = vmatprep.subr.bf16.mxu0 0
    %1351 = vmatpush1.bf16.xpose.msra.mxu0 0
    %1352 = vmatprep.subr.bf16.mxu0 0
    %1353 = vmatpush1.bf16.xpose.msra.mxu0 0
    %1354 = vmatprep.subr.bf16.mxu0 0
    %1355 = vmatpush1.bf16.xpose.msra.mxu0 0
    %1356 = vmatprep.subr.bf16.mxu0 0
    %1357 = vmatpush1.bf16.xpose.msra.mxu0 0
    %1358 = vmatprep.subr.bf16.mxu0 0
    %1359 = vmatpush1.bf16.xpose.msra.mxu0 0
    %1360 = vmatprep.subr.bf16.mxu0 0
    %1361 = vmatpush1.bf16.xpose.msra.mxu0 0
    %1362 = vmatprep.subr.bf16.mxu0 0
    %1363 = vmatpush1.bf16.xpose.msra.mxu0 0
    %1364 = vmatprep.subr.bf16.mxu0 0
    %1365 = vmatpush1.bf16.xpose.msra.mxu0 0
    %1366 = vmatprep.subr.bf16.mxu0 0
    %1367 = vmatpush1.bf16.xpose.msra.mxu0 0
    %1368 = vmatprep.mubr.bf16.mxu0 0
    %1369 = vmatmul.mubr.bf16.gmra.mrb[0].mxu0 %v1331
    %v1370 = vpop.f32.mrb[0].mxu0
    %v1371 = vadd.f32 0.0, %v1370
    %v1372 = vpop.f32.mrb[0].mxu0
    %v1373 = vpop.f32.mrb[0].mxu0
    %v1374 = vpop.f32.mrb[0].mxu0
    %1375 = vdwg.mxu0
    %v1377 = vsel %vm1237, %v464, 0
    %v1380 = vsel %vm1237, %v832, 0
    %1382 = vmatprep.subr.bf16.mxu0 0
    %1383 = vmatpush1.bf16.xpose.msra.mxu0 %v1380
    %1384 = vmatprep.subr.bf16.mxu0 0
    %1385 = vmatpush1.bf16.xpose.msra.mxu0 0
    %1386 = vmatprep.subr.bf16.mxu0 0
    %1387 = vmatpush1.bf16.xpose.msra.mxu0 0
    %1388 = vmatprep.subr.bf16.mxu0 0
    %1389 = vmatpush1.bf16.xpose.msra.mxu0 0
    %1390 = vmatprep.subr.bf16.mxu0 0
    %1391 = vmatpush1.bf16.xpose.msra.mxu0 0
    %1392 = vmatprep.subr.bf16.mxu0 0
    %1393 = vmatpush1.bf16.xpose.msra.mxu0 0
    %1394 = vmatprep.subr.bf16.mxu0 0
    %1395 = vmatpush1.bf16.xpose.msra.mxu0 0
    %1396 = vmatprep.subr.bf16.mxu0 0
    %1397 = vmatpush1.bf16.xpose.msra.mxu0 0
    %1398 = vmatprep.subr.bf16.mxu0 0
    %1399 = vmatpush1.bf16.xpose.msra.mxu0 0
    %1400 = vmatprep.subr.bf16.mxu0 0
    %1401 = vmatpush1.bf16.xpose.msra.mxu0 0
    %1402 = vmatprep.subr.bf16.mxu0 0
    %1403 = vmatpush1.bf16.xpose.msra.mxu0 0
    %1404 = vmatprep.subr.bf16.mxu0 0
    %1405 = vmatpush1.bf16.xpose.msra.mxu0 0
    %1406 = vmatprep.subr.bf16.mxu0 0
    %1407 = vmatpush1.bf16.xpose.msra.mxu0 0
    %1408 = vmatprep.subr.bf16.mxu0 0
    %1409 = vmatpush1.bf16.xpose.msra.mxu0 0
    %1410 = vmatprep.subr.bf16.mxu0 0
    %1411 = vmatpush1.bf16.xpose.msra.mxu0 0
    %1412 = vmatprep.subr.bf16.mxu0 0
    %1413 = vmatpush1.bf16.xpose.msra.mxu0 0
    %1414 = vmatprep.mubr.bf16.mxu0 0
    %1415 = vmatmul.mubr.bf16.gmra.mrb[0].mxu0 %v1377
    %v1416 = vpop.f32.mrb[0].mxu0
    %v1417 = vadd.f32 0.0, %v1416
    %v1418 = vpop.f32.mrb[0].mxu0
    %v1419 = vpop.f32.mrb[0].mxu0
    %v1420 = vpop.f32.mrb[0].mxu0
    %1421 = vdwg.mxu0
    %v1423 = vsel %vm1237, %v467, 0
    %v1426 = vsel %vm1237, %v835, 0
    %1428 = vmatprep.subr.bf16.mxu0 0
    %1429 = vmatpush1.bf16.xpose.msra.mxu0 %v1426
    %1430 = vmatprep.subr.bf16.mxu0 0
    %1431 = vmatpush1.bf16.xpose.msra.mxu0 0
    %1432 = vmatprep.subr.bf16.mxu0 0
    %1433 = vmatpush1.bf16.xpose.msra.mxu0 0
    %1434 = vmatprep.subr.bf16.mxu0 0
    %1435 = vmatpush1.bf16.xpose.msra.mxu0 0
    %1436 = vmatprep.subr.bf16.mxu0 0
    %1437 = vmatpush1.bf16.xpose.msra.mxu0 0
    %1438 = vmatprep.subr.bf16.mxu0 0
    %1439 = vmatpush1.bf16.xpose.msra.mxu0 0
    %1440 = vmatprep.subr.bf16.mxu0 0
    %1441 = vmatpush1.bf16.xpose.msra.mxu0 0
    %1442 = vmatprep.subr.bf16.mxu0 0
    %1443 = vmatpush1.bf16.xpose.msra.mxu0 0
    %1444 = vmatprep.subr.bf16.mxu0 0
    %1445 = vmatpush1.bf16.xpose.msra.mxu0 0
    %1446 = vmatprep.subr.bf16.mxu0 0
    %1447 = vmatpush1.bf16.xpose.msra.mxu0 0
    %1448 = vmatprep.subr.bf16.mxu0 0
    %1449 = vmatpush1.bf16.xpose.msra.mxu0 0
    %1450 = vmatprep.subr.bf16.mxu0 0
    %1451 = vmatpush1.bf16.xpose.msra.mxu0 0
    %1452 = vmatprep.subr.bf16.mxu0 0
    %1453 = vmatpush1.bf16.xpose.msra.mxu0 0
    %1454 = vmatprep.subr.bf16.mxu0 0
    %1455 = vmatpush1.bf16.xpose.msra.mxu0 0
    %1456 = vmatprep.subr.bf16.mxu0 0
    %1457 = vmatpush1.bf16.xpose.msra.mxu0 0
    %1458 = vmatprep.subr.bf16.mxu0 0
    %1459 = vmatpush1.bf16.xpose.msra.mxu0 0
    %1460 = vmatprep.mubr.bf16.mxu0 0
    %1461 = vmatmul.mubr.bf16.gmra.mrb[0].mxu0 %v1423
    %v1462 = vpop.f32.mrb[0].mxu0
    %v1463 = vadd.f32 0.0, %v1462
    %v1464 = vpop.f32.mrb[0].mxu0
    %v1465 = vpop.f32.mrb[0].mxu0
    %v1466 = vpop.f32.mrb[0].mxu0
    %1467 = vdwg.mxu0
    %v1469 = vsel %vm1237, %v470, 0
    %v1472 = vsel %vm1237, %v838, 0
    %1474 = vmatprep.subr.bf16.mxu0 0
    %1475 = vmatpush1.bf16.xpose.msra.mxu0 %v1472
    %1476 = vmatprep.subr.bf16.mxu0 0
    %1477 = vmatpush1.bf16.xpose.msra.mxu0 0
    %1478 = vmatprep.subr.bf16.mxu0 0
    %1479 = vmatpush1.bf16.xpose.msra.mxu0 0
    %1480 = vmatprep.subr.bf16.mxu0 0
    %1481 = vmatpush1.bf16.xpose.msra.mxu0 0
    %1482 = vmatprep.subr.bf16.mxu0 0
    %1483 = vmatpush1.bf16.xpose.msra.mxu0 0
    %1484 = vmatprep.subr.bf16.mxu0 0
    %1485 = vmatpush1.bf16.xpose.msra.mxu0 0
    %1486 = vmatprep.subr.bf16.mxu0 0
    %1487 = vmatpush1.bf16.xpose.msra.mxu0 0
    %1488 = vmatprep.subr.bf16.mxu0 0
    %1489 = vmatpush1.bf16.xpose.msra.mxu0 0
    %1490 = vmatprep.subr.bf16.mxu0 0
    %1491 = vmatpush1.bf16.xpose.msra.mxu0 0
    %1492 = vmatprep.subr.bf16.mxu0 0
    %1493 = vmatpush1.bf16.xpose.msra.mxu0 0
    %1494 = vmatprep.subr.bf16.mxu0 0
    %1495 = vmatpush1.bf16.xpose.msra.mxu0 0
    %1496 = vmatprep.subr.bf16.mxu0 0
    %1497 = vmatpush1.bf16.xpose.msra.mxu0 0
    %1498 = vmatprep.subr.bf16.mxu0 0
    %1499 = vmatpush1.bf16.xpose.msra.mxu0 0
    %1500 = vmatprep.subr.bf16.mxu0 0
    %1501 = vmatpush1.bf16.xpose.msra.mxu0 0
    %1502 = vmatprep.subr.bf16.mxu0 0
    %1503 = vmatpush1.bf16.xpose.msra.mxu0 0
    %1504 = vmatprep.subr.bf16.mxu0 0
    %1505 = vmatpush1.bf16.xpose.msra.mxu0 0
    %1506 = vmatprep.mubr.bf16.mxu0 0
    %1507 = vmatmul.mubr.bf16.gmra.mrb[0].mxu0 %v1469
    %v1508 = vpop.f32.mrb[0].mxu0
    %v1509 = vadd.f32 0.0, %v1508
    %v1510 = vpop.f32.mrb[0].mxu0
    %v1511 = vpop.f32.mrb[0].mxu0
    %v1512 = vpop.f32.mrb[0].mxu0
    %1513 = vdwg.mxu0
    %v1515 = vsel %vm1237, %v473, 0
    %v1518 = vsel %vm1237, %v841, 0
    %1520 = vmatprep.subr.bf16.mxu0 0
    %1521 = vmatpush1.bf16.xpose.msra.mxu0 %v1518
    %1522 = vmatprep.subr.bf16.mxu0 0
    %1523 = vmatpush1.bf16.xpose.msra.mxu0 0
    %1524 = vmatprep.subr.bf16.mxu0 0
    %1525 = vmatpush1.bf16.xpose.msra.mxu0 0
    %1526 = vmatprep.subr.bf16.mxu0 0
    %1527 = vmatpush1.bf16.xpose.msra.mxu0 0
    %1528 = vmatprep.subr.bf16.mxu0 0
    %1529 = vmatpush1.bf16.xpose.msra.mxu0 0
    %1530 = vmatprep.subr.bf16.mxu0 0
    %1531 = vmatpush1.bf16.xpose.msra.mxu0 0
    %1532 = vmatprep.subr.bf16.mxu0 0
    %1533 = vmatpush1.bf16.xpose.msra.mxu0 0
    %1534 = vmatprep.subr.bf16.mxu0 0
    %1535 = vmatpush1.bf16.xpose.msra.mxu0 0
    %1536 = vmatprep.subr.bf16.mxu0 0
    %1537 = vmatpush1.bf16.xpose.msra.mxu0 0
    %1538 = vmatprep.subr.bf16.mxu0 0
    %1539 = vmatpush1.bf16.xpose.msra.mxu0 0
    %1540 = vmatprep.subr.bf16.mxu0 0
    %1541 = vmatpush1.bf16.xpose.msra.mxu0 0
    %1542 = vmatprep.subr.bf16.mxu0 0
    %1543 = vmatpush1.bf16.xpose.msra.mxu0 0
    %1544 = vmatprep.subr.bf16.mxu0 0
    %1545 = vmatpush1.bf16.xpose.msra.mxu0 0
    %1546 = vmatprep.subr.bf16.mxu0 0
    %1547 = vmatpush1.bf16.xpose.msra.mxu0 0
    %1548 = vmatprep.subr.bf16.mxu0 0
    %1549 = vmatpush1.bf16.xpose.msra.mxu0 0
    %1550 = vmatprep.subr.bf16.mxu0 0
    %1551 = vmatpush1.bf16.xpose.msra.mxu0 0
    %1552 = vmatprep.mubr.bf16.mxu0 0
    %1553 = vmatmul.mubr.bf16.gmra.mrb[0].mxu0 %v1515
    %v1554 = vpop.f32.mrb[0].mxu0
    %v1555 = vadd.f32 0.0, %v1554
    %v1556 = vpop.f32.mrb[0].mxu0
    %v1557 = vpop.f32.mrb[0].mxu0
    %v1558 = vpop.f32.mrb[0].mxu0
    %1559 = vdwg.mxu0
    %v1561 = vsel %vm1237, %v476, 0
    %v1564 = vsel %vm1237, %v844, 0
    %1566 = vmatprep.subr.bf16.mxu0 0
    %1567 = vmatpush1.bf16.xpose.msra.mxu0 %v1564
    %1568 = vmatprep.subr.bf16.mxu0 0
    %1569 = vmatpush1.bf16.xpose.msra.mxu0 0
    %1570 = vmatprep.subr.bf16.mxu0 0
    %1571 = vmatpush1.bf16.xpose.msra.mxu0 0
    %1572 = vmatprep.subr.bf16.mxu0 0
    %1573 = vmatpush1.bf16.xpose.msra.mxu0 0
    %1574 = vmatprep.subr.bf16.mxu0 0
    %1575 = vmatpush1.bf16.xpose.msra.mxu0 0
    %1576 = vmatprep.subr.bf16.mxu0 0
    %1577 = vmatpush1.bf16.xpose.msra.mxu0 0
    %1578 = vmatprep.subr.bf16.mxu0 0
    %1579 = vmatpush1.bf16.xpose.msra.mxu0 0
    %1580 = vmatprep.subr.bf16.mxu0 0
    %1581 = vmatpush1.bf16.xpose.msra.mxu0 0
    %1582 = vmatprep.subr.bf16.mxu0 0
    %1583 = vmatpush1.bf16.xpose.msra.mxu0 0
    %1584 = vmatprep.subr.bf16.mxu0 0
    %1585 = vmatpush1.bf16.xpose.msra.mxu0 0
    %1586 = vmatprep.subr.bf16.mxu0 0
    %1587 = vmatpush1.bf16.xpose.msra.mxu0 0
    %1588 = vmatprep.subr.bf16.mxu0 0
    %1589 = vmatpush1.bf16.xpose.msra.mxu0 0
    %1590 = vmatprep.subr.bf16.mxu0 0
    %1591 = vmatpush1.bf16.xpose.msra.mxu0 0
    %1592 = vmatprep.subr.bf16.mxu0 0
    %1593 = vmatpush1.bf16.xpose.msra.mxu0 0
    %1594 = vmatprep.subr.bf16.mxu0 0
    %1595 = vmatpush1.bf16.xpose.msra.mxu0 0
    %1596 = vmatprep.subr.bf16.mxu0 0
    %1597 = vmatpush1.bf16.xpose.msra.mxu0 0
    %1598 = vmatprep.mubr.bf16.mxu0 0
    %1599 = vmatmul.mubr.bf16.gmra.mrb[0].mxu0 %v1561
    %v1600 = vpop.f32.mrb[0].mxu0
    %v1601 = vadd.f32 0.0, %v1600
    %v1602 = vpop.f32.mrb[0].mxu0
    %v1603 = vpop.f32.mrb[0].mxu0
    %v1604 = vpop.f32.mrb[0].mxu0
    %1605 = vdwg.mxu0
    %v1607 = vsel %vm1237, %v479, 0
    %v1610 = vsel %vm1237, %v847, 0
    %1612 = vmatprep.subr.bf16.mxu0 0
    %1613 = vmatpush1.bf16.xpose.msra.mxu0 %v1610
    %1614 = vmatprep.subr.bf16.mxu0 0
    %1615 = vmatpush1.bf16.xpose.msra.mxu0 0
    %1616 = vmatprep.subr.bf16.mxu0 0
    %1617 = vmatpush1.bf16.xpose.msra.mxu0 0
    %1618 = vmatprep.subr.bf16.mxu0 0
    %1619 = vmatpush1.bf16.xpose.msra.mxu0 0
    %1620 = vmatprep.subr.bf16.mxu0 0
    %1621 = vmatpush1.bf16.xpose.msra.mxu0 0
    %1622 = vmatprep.subr.bf16.mxu0 0
    %1623 = vmatpush1.bf16.xpose.msra.mxu0 0
    %1624 = vmatprep.subr.bf16.mxu0 0
    %1625 = vmatpush1.bf16.xpose.msra.mxu0 0
    %1626 = vmatprep.subr.bf16.mxu0 0
    %1627 = vmatpush1.bf16.xpose.msra.mxu0 0
    %1628 = vmatprep.subr.bf16.mxu0 0
    %1629 = vmatpush1.bf16.xpose.msra.mxu0 0
    %1630 = vmatprep.subr.bf16.mxu0 0
    %1631 = vmatpush1.bf16.xpose.msra.mxu0 0
    %1632 = vmatprep.subr.bf16.mxu0 0
    %1633 = vmatpush1.bf16.xpose.msra.mxu0 0
    %1634 = vmatprep.subr.bf16.mxu0 0
    %1635 = vmatpush1.bf16.xpose.msra.mxu0 0
    %1636 = vmatprep.subr.bf16.mxu0 0
    %1637 = vmatpush1.bf16.xpose.msra.mxu0 0
    %1638 = vmatprep.subr.bf16.mxu0 0
    %1639 = vmatpush1.bf16.xpose.msra.mxu0 0
    %1640 = vmatprep.subr.bf16.mxu0 0
    %1641 = vmatpush1.bf16.xpose.msra.mxu0 0
    %1642 = vmatprep.subr.bf16.mxu0 0
    %1643 = vmatpush1.bf16.xpose.msra.mxu0 0
    %1644 = vmatprep.mubr.bf16.mxu0 0
    %1645 = vmatmul.mubr.bf16.gmra.mrb[0].mxu0 %v1607
    %v1646 = vpop.f32.mrb[0].mxu0
    %v1647 = vadd.f32 0.0, %v1646
    %v1648 = vpop.f32.mrb[0].mxu0
    %v1649 = vpop.f32.mrb[0].mxu0
    %v1650 = vpop.f32.mrb[0].mxu0
    %1651 = vdwg.mxu0
    %v1653 = vsel %vm1237, %v482, 0
    %v1656 = vsel %vm1237, %v850, 0
    %1658 = vmatprep.subr.bf16.mxu0 0
    %1659 = vmatpush1.bf16.xpose.msra.mxu0 %v1656
    %1660 = vmatprep.subr.bf16.mxu0 0
    %1661 = vmatpush1.bf16.xpose.msra.mxu0 0
    %1662 = vmatprep.subr.bf16.mxu0 0
    %1663 = vmatpush1.bf16.xpose.msra.mxu0 0
    %1664 = vmatprep.subr.bf16.mxu0 0
    %1665 = vmatpush1.bf16.xpose.msra.mxu0 0
    %1666 = vmatprep.subr.bf16.mxu0 0
    %1667 = vmatpush1.bf16.xpose.msra.mxu0 0
    %1668 = vmatprep.subr.bf16.mxu0 0
    %1669 = vmatpush1.bf16.xpose.msra.mxu0 0
    %1670 = vmatprep.subr.bf16.mxu0 0
    %1671 = vmatpush1.bf16.xpose.msra.mxu0 0
    %1672 = vmatprep.subr.bf16.mxu0 0
    %1673 = vmatpush1.bf16.xpose.msra.mxu0 0
    %1674 = vmatprep.subr.bf16.mxu0 0
    %1675 = vmatpush1.bf16.xpose.msra.mxu0 0
    %1676 = vmatprep.subr.bf16.mxu0 0
    %1677 = vmatpush1.bf16.xpose.msra.mxu0 0
    %1678 = vmatprep.subr.bf16.mxu0 0
    %1679 = vmatpush1.bf16.xpose.msra.mxu0 0
    %1680 = vmatprep.subr.bf16.mxu0 0
    %1681 = vmatpush1.bf16.xpose.msra.mxu0 0
    %1682 = vmatprep.subr.bf16.mxu0 0
    %1683 = vmatpush1.bf16.xpose.msra.mxu0 0
    %1684 = vmatprep.subr.bf16.mxu0 0
    %1685 = vmatpush1.bf16.xpose.msra.mxu0 0
    %1686 = vmatprep.subr.bf16.mxu0 0
    %1687 = vmatpush1.bf16.xpose.msra.mxu0 0
    %1688 = vmatprep.subr.bf16.mxu0 0
    %1689 = vmatpush1.bf16.xpose.msra.mxu0 0
    %1690 = vmatprep.mubr.bf16.mxu0 0
    %1691 = vmatmul.mubr.bf16.gmra.mrb[0].mxu0 %v1653
    %v1692 = vpop.f32.mrb[0].mxu0
    %v1693 = vadd.f32 0.0, %v1692
    %v1694 = vpop.f32.mrb[0].mxu0
    %v1695 = vpop.f32.mrb[0].mxu0
    %v1696 = vpop.f32.mrb[0].mxu0
    %1697 = vdwg.mxu0
    %v1699 = vsel %vm1237, %v485, 0
    %v1702 = vsel %vm1237, %v853, 0
    %1704 = vmatprep.subr.bf16.mxu0 0
    %1705 = vmatpush1.bf16.xpose.msra.mxu0 %v1702
    %1706 = vmatprep.subr.bf16.mxu0 0
    %1707 = vmatpush1.bf16.xpose.msra.mxu0 0
    %1708 = vmatprep.subr.bf16.mxu0 0
    %1709 = vmatpush1.bf16.xpose.msra.mxu0 0
    %1710 = vmatprep.subr.bf16.mxu0 0
    %1711 = vmatpush1.bf16.xpose.msra.mxu0 0
    %1712 = vmatprep.subr.bf16.mxu0 0
    %1713 = vmatpush1.bf16.xpose.msra.mxu0 0
    %1714 = vmatprep.subr.bf16.mxu0 0
    %1715 = vmatpush1.bf16.xpose.msra.mxu0 0
    %1716 = vmatprep.subr.bf16.mxu0 0
    %1717 = vmatpush1.bf16.xpose.msra.mxu0 0
    %1718 = vmatprep.subr.bf16.mxu0 0
    %1719 = vmatpush1.bf16.xpose.msra.mxu0 0
    %1720 = vmatprep.subr.bf16.mxu0 0
    %1721 = vmatpush1.bf16.xpose.msra.mxu0 0
    %1722 = vmatprep.subr.bf16.mxu0 0
    %1723 = vmatpush1.bf16.xpose.msra.mxu0 0
    %1724 = vmatprep.subr.bf16.mxu0 0
    %1725 = vmatpush1.bf16.xpose.msra.mxu0 0
    %1726 = vmatprep.subr.bf16.mxu0 0
    %1727 = vmatpush1.bf16.xpose.msra.mxu0 0
    %1728 = vmatprep.subr.bf16.mxu0 0
    %1729 = vmatpush1.bf16.xpose.msra.mxu0 0
    %1730 = vmatprep.subr.bf16.mxu0 0
    %1731 = vmatpush1.bf16.xpose.msra.mxu0 0
    %1732 = vmatprep.subr.bf16.mxu0 0
    %1733 = vmatpush1.bf16.xpose.msra.mxu0 0
    %1734 = vmatprep.subr.bf16.mxu0 0
    %1735 = vmatpush1.bf16.xpose.msra.mxu0 0
    %1736 = vmatprep.mubr.bf16.mxu0 0
    %1737 = vmatmul.mubr.bf16.gmra.mrb[0].mxu0 %v1699
    %v1738 = vpop.f32.mrb[0].mxu0
    %v1739 = vadd.f32 0.0, %v1738
    %v1740 = vpop.f32.mrb[0].mxu0
    %v1741 = vpop.f32.mrb[0].mxu0
    %v1742 = vpop.f32.mrb[0].mxu0
    %1743 = vdwg.mxu0
    %v1745 = vsel %vm1237, %v488, 0
    %v1748 = vsel %vm1237, %v856, 0
    %1750 = vmatprep.subr.bf16.mxu0 0
    %1751 = vmatpush1.bf16.xpose.msra.mxu0 %v1748
    %1752 = vmatprep.subr.bf16.mxu0 0
    %1753 = vmatpush1.bf16.xpose.msra.mxu0 0
    %1754 = vmatprep.subr.bf16.mxu0 0
    %1755 = vmatpush1.bf16.xpose.msra.mxu0 0
    %1756 = vmatprep.subr.bf16.mxu0 0
    %1757 = vmatpush1.bf16.xpose.msra.mxu0 0
    %1758 = vmatprep.subr.bf16.mxu0 0
    %1759 = vmatpush1.bf16.xpose.msra.mxu0 0
    %1760 = vmatprep.subr.bf16.mxu0 0
    %1761 = vmatpush1.bf16.xpose.msra.mxu0 0
    %1762 = vmatprep.subr.bf16.mxu0 0
    %1763 = vmatpush1.bf16.xpose.msra.mxu0 0
    %1764 = vmatprep.subr.bf16.mxu0 0
    %1765 = vmatpush1.bf16.xpose.msra.mxu0 0
    %1766 = vmatprep.subr.bf16.mxu0 0
    %1767 = vmatpush1.bf16.xpose.msra.mxu0 0
    %1768 = vmatprep.subr.bf16.mxu0 0
    %1769 = vmatpush1.bf16.xpose.msra.mxu0 0
    %1770 = vmatprep.subr.bf16.mxu0 0
    %1771 = vmatpush1.bf16.xpose.msra.mxu0 0
    %1772 = vmatprep.subr.bf16.mxu0 0
    %1773 = vmatpush1.bf16.xpose.msra.mxu0 0
    %1774 = vmatprep.subr.bf16.mxu0 0
    %1775 = vmatpush1.bf16.xpose.msra.mxu0 0
    %1776 = vmatprep.subr.bf16.mxu0 0
    %1777 = vmatpush1.bf16.xpose.msra.mxu0 0
    %1778 = vmatprep.subr.bf16.mxu0 0
    %1779 = vmatpush1.bf16.xpose.msra.mxu0 0
    %1780 = vmatprep.subr.bf16.mxu0 0
    %1781 = vmatpush1.bf16.xpose.msra.mxu0 0
    %1782 = vmatprep.mubr.bf16.mxu0 0
    %1783 = vmatmul.mubr.bf16.gmra.mrb[0].mxu0 %v1745
    %v1784 = vpop.f32.mrb[0].mxu0
    %v1785 = vadd.f32 0.0, %v1784
    %v1786 = vpop.f32.mrb[0].mxu0
    %v1787 = vpop.f32.mrb[0].mxu0
    %v1788 = vpop.f32.mrb[0].mxu0
    %1789 = vdwg.mxu0
    %v1791 = vsel %vm1237, %v491, 0
    %v1794 = vsel %vm1237, %v859, 0
    %1796 = vmatprep.subr.bf16.mxu0 0
    %1797 = vmatpush1.bf16.xpose.msra.mxu0 %v1794
    %1798 = vmatprep.subr.bf16.mxu0 0
    %1799 = vmatpush1.bf16.xpose.msra.mxu0 0
    %1800 = vmatprep.subr.bf16.mxu0 0
    %1801 = vmatpush1.bf16.xpose.msra.mxu0 0
    %1802 = vmatprep.subr.bf16.mxu0 0
    %1803 = vmatpush1.bf16.xpose.msra.mxu0 0
    %1804 = vmatprep.subr.bf16.mxu0 0
    %1805 = vmatpush1.bf16.xpose.msra.mxu0 0
    %1806 = vmatprep.subr.bf16.mxu0 0
    %1807 = vmatpush1.bf16.xpose.msra.mxu0 0
    %1808 = vmatprep.subr.bf16.mxu0 0
    %1809 = vmatpush1.bf16.xpose.msra.mxu0 0
    %1810 = vmatprep.subr.bf16.mxu0 0
    %1811 = vmatpush1.bf16.xpose.msra.mxu0 0
    %1812 = vmatprep.subr.bf16.mxu0 0
    %1813 = vmatpush1.bf16.xpose.msra.mxu0 0
    %1814 = vmatprep.subr.bf16.mxu0 0
    %1815 = vmatpush1.bf16.xpose.msra.mxu0 0
    %1816 = vmatprep.subr.bf16.mxu0 0
    %1817 = vmatpush1.bf16.xpose.msra.mxu0 0
    %1818 = vmatprep.subr.bf16.mxu0 0
    %1819 = vmatpush1.bf16.xpose.msra.mxu0 0
    %1820 = vmatprep.subr.bf16.mxu0 0
    %1821 = vmatpush1.bf16.xpose.msra.mxu0 0
    %1822 = vmatprep.subr.bf16.mxu0 0
    %1823 = vmatpush1.bf16.xpose.msra.mxu0 0
    %1824 = vmatprep.subr.bf16.mxu0 0
    %1825 = vmatpush1.bf16.xpose.msra.mxu0 0
    %1826 = vmatprep.subr.bf16.mxu0 0
    %1827 = vmatpush1.bf16.xpose.msra.mxu0 0
    %1828 = vmatprep.mubr.bf16.mxu0 0
    %1829 = vmatmul.mubr.bf16.gmra.mrb[0].mxu0 %v1791
    %v1830 = vpop.f32.mrb[0].mxu0
    %v1831 = vadd.f32 0.0, %v1830
    %v1832 = vpop.f32.mrb[0].mxu0
    %v1833 = vpop.f32.mrb[0].mxu0
    %v1834 = vpop.f32.mrb[0].mxu0
    %1835 = vdwg.mxu0
    %v1837 = vsel %vm1237, %v494, 0
    %v1840 = vsel %vm1237, %v862, 0
    %1842 = vmatprep.subr.bf16.mxu0 0
    %1843 = vmatpush1.bf16.xpose.msra.mxu0 %v1840
    %1844 = vmatprep.subr.bf16.mxu0 0
    %1845 = vmatpush1.bf16.xpose.msra.mxu0 0
    %1846 = vmatprep.subr.bf16.mxu0 0
    %1847 = vmatpush1.bf16.xpose.msra.mxu0 0
    %1848 = vmatprep.subr.bf16.mxu0 0
    %1849 = vmatpush1.bf16.xpose.msra.mxu0 0
    %1850 = vmatprep.subr.bf16.mxu0 0
    %1851 = vmatpush1.bf16.xpose.msra.mxu0 0
    %1852 = vmatprep.subr.bf16.mxu0 0
    %1853 = vmatpush1.bf16.xpose.msra.mxu0 0
    %1854 = vmatprep.subr.bf16.mxu0 0
    %1855 = vmatpush1.bf16.xpose.msra.mxu0 0
    %1856 = vmatprep.subr.bf16.mxu0 0
    %1857 = vmatpush1.bf16.xpose.msra.mxu0 0
    %1858 = vmatprep.subr.bf16.mxu0 0
    %1859 = vmatpush1.bf16.xpose.msra.mxu0 0
    %1860 = vmatprep.subr.bf16.mxu0 0
    %1861 = vmatpush1.bf16.xpose.msra.mxu0 0
    %1862 = vmatprep.subr.bf16.mxu0 0
    %1863 = vmatpush1.bf16.xpose.msra.mxu0 0
    %1864 = vmatprep.subr.bf16.mxu0 0
    %1865 = vmatpush1.bf16.xpose.msra.mxu0 0
    %1866 = vmatprep.subr.bf16.mxu0 0
    %1867 = vmatpush1.bf16.xpose.msra.mxu0 0
    %1868 = vmatprep.subr.bf16.mxu0 0
    %1869 = vmatpush1.bf16.xpose.msra.mxu0 0
    %1870 = vmatprep.subr.bf16.mxu0 0
    %1871 = vmatpush1.bf16.xpose.msra.mxu0 0
    %1872 = vmatprep.subr.bf16.mxu0 0
    %1873 = vmatpush1.bf16.xpose.msra.mxu0 0
    %1874 = vmatprep.mubr.bf16.mxu0 0
    %1875 = vmatmul.mubr.bf16.gmra.mrb[0].mxu0 %v1837
    %v1876 = vpop.f32.mrb[0].mxu0
    %v1877 = vadd.f32 0.0, %v1876
    %v1878 = vpop.f32.mrb[0].mxu0
    %v1879 = vpop.f32.mrb[0].mxu0
    %v1880 = vpop.f32.mrb[0].mxu0
    %1881 = vdwg.mxu0
    %v1883 = vsel %vm1237, %v497, 0
    %v1886 = vsel %vm1237, %v865, 0
    %1888 = vmatprep.subr.bf16.mxu0 0
    %1889 = vmatpush1.bf16.xpose.msra.mxu0 %v1886
    %1890 = vmatprep.subr.bf16.mxu0 0
    %1891 = vmatpush1.bf16.xpose.msra.mxu0 0
    %1892 = vmatprep.subr.bf16.mxu0 0
    %1893 = vmatpush1.bf16.xpose.msra.mxu0 0
    %1894 = vmatprep.subr.bf16.mxu0 0
    %1895 = vmatpush1.bf16.xpose.msra.mxu0 0
    %1896 = vmatprep.subr.bf16.mxu0 0
    %1897 = vmatpush1.bf16.xpose.msra.mxu0 0
    %1898 = vmatprep.subr.bf16.mxu0 0
    %1899 = vmatpush1.bf16.xpose.msra.mxu0 0
    %1900 = vmatprep.subr.bf16.mxu0 0
    %1901 = vmatpush1.bf16.xpose.msra.mxu0 0
    %1902 = vmatprep.subr.bf16.mxu0 0
    %1903 = vmatpush1.bf16.xpose.msra.mxu0 0
    %1904 = vmatprep.subr.bf16.mxu0 0
    %1905 = vmatpush1.bf16.xpose.msra.mxu0 0
    %1906 = vmatprep.subr.bf16.mxu0 0
    %1907 = vmatpush1.bf16.xpose.msra.mxu0 0
    %1908 = vmatprep.subr.bf16.mxu0 0
    %1909 = vmatpush1.bf16.xpose.msra.mxu0 0
    %1910 = vmatprep.subr.bf16.mxu0 0
    %1911 = vmatpush1.bf16.xpose.msra.mxu0 0
    %1912 = vmatprep.subr.bf16.mxu0 0
    %1913 = vmatpush1.bf16.xpose.msra.mxu0 0
    %1914 = vmatprep.subr.bf16.mxu0 0
    %1915 = vmatpush1.bf16.xpose.msra.mxu0 0
    %1916 = vmatprep.subr.bf16.mxu0 0
    %1917 = vmatpush1.bf16.xpose.msra.mxu0 0
    %1918 = vmatprep.subr.bf16.mxu0 0
    %1919 = vmatpush1.bf16.xpose.msra.mxu0 0
    %1920 = vmatprep.mubr.bf16.mxu0 0
    %1921 = vmatmul.mubr.bf16.gmra.mrb[0].mxu0 %v1883
    %v1922 = vpop.f32.mrb[0].mxu0
    %v1923 = vadd.f32 0.0, %v1922
    %v1924 = vpop.f32.mrb[0].mxu0
    %v1925 = vpop.f32.mrb[0].mxu0
    %v1926 = vpop.f32.mrb[0].mxu0
    %1927 = vdwg.mxu0
    %v1929 = vsel %vm1237, %v500, 0
    %v1932 = vsel %vm1237, %v868, 0
    %1934 = vmatprep.subr.bf16.mxu0 0
    %1935 = vmatpush1.bf16.xpose.msra.mxu0 %v1932
    %1936 = vmatprep.subr.bf16.mxu0 0
    %1937 = vmatpush1.bf16.xpose.msra.mxu0 0
    %1938 = vmatprep.subr.bf16.mxu0 0
    %1939 = vmatpush1.bf16.xpose.msra.mxu0 0
    %1940 = vmatprep.subr.bf16.mxu0 0
    %1941 = vmatpush1.bf16.xpose.msra.mxu0 0
    %1942 = vmatprep.subr.bf16.mxu0 0
    %1943 = vmatpush1.bf16.xpose.msra.mxu0 0
    %1944 = vmatprep.subr.bf16.mxu0 0
    %1945 = vmatpush1.bf16.xpose.msra.mxu0 0
    %1946 = vmatprep.subr.bf16.mxu0 0
    %1947 = vmatpush1.bf16.xpose.msra.mxu0 0
    %1948 = vmatprep.subr.bf16.mxu0 0
    %1949 = vmatpush1.bf16.xpose.msra.mxu0 0
    %1950 = vmatprep.subr.bf16.mxu0 0
    %1951 = vmatpush1.bf16.xpose.msra.mxu0 0
    %1952 = vmatprep.subr.bf16.mxu0 0
    %1953 = vmatpush1.bf16.xpose.msra.mxu0 0
    %1954 = vmatprep.subr.bf16.mxu0 0
    %1955 = vmatpush1.bf16.xpose.msra.mxu0 0
    %1956 = vmatprep.subr.bf16.mxu0 0
    %1957 = vmatpush1.bf16.xpose.msra.mxu0 0
    %1958 = vmatprep.subr.bf16.mxu0 0
    %1959 = vmatpush1.bf16.xpose.msra.mxu0 0
    %1960 = vmatprep.subr.bf16.mxu0 0
    %1961 = vmatpush1.bf16.xpose.msra.mxu0 0
    %1962 = vmatprep.subr.bf16.mxu0 0
    %1963 = vmatpush1.bf16.xpose.msra.mxu0 0
    %1964 = vmatprep.subr.bf16.mxu0 0
    %1965 = vmatpush1.bf16.xpose.msra.mxu0 0
    %1966 = vmatprep.mubr.bf16.mxu0 0
    %1967 = vmatmul.mubr.bf16.gmra.mrb[0].mxu0 %v1929
    %v1968 = vpop.f32.mrb[0].mxu0
    %v1969 = vadd.f32 0.0, %v1968
    %v1970 = vpop.f32.mrb[0].mxu0
    %v1971 = vpop.f32.mrb[0].mxu0
    %v1972 = vpop.f32.mrb[0].mxu0
    %1973 = vdwg.mxu0
    %vm1974 = vcmask 64512
    %v1975 = vsel %vm1974, %v1279, -inf
    %1976 = vmax.xlane.f32.xlu0 %v1975
    %v1977 = vpop.xlane.xlu0 %1976
    %v1978 = vsel %vm1974, %v1325, -inf
    %1979 = vmax.xlane.f32.xlu0 %v1978
    %v1980 = vpop.xlane.xlu0 %1979
    %v1981 = vsel %vm1974, %v1371, -inf
    %1982 = vmax.xlane.f32.xlu0 %v1981
    %v1983 = vpop.xlane.xlu0 %1982
    %v1984 = vsel %vm1974, %v1417, -inf
    %1985 = vmax.xlane.f32.xlu0 %v1984
    %v1986 = vpop.xlane.xlu0 %1985
    %v1987 = vsel %vm1974, %v1463, -inf
    %1988 = vmax.xlane.f32.xlu0 %v1987
    %v1989 = vpop.xlane.xlu0 %1988
    %v1990 = vsel %vm1974, %v1509, -inf
    %1991 = vmax.xlane.f32.xlu0 %v1990
    %v1992 = vpop.xlane.xlu0 %1991
    %v1993 = vsel %vm1974, %v1555, -inf
    %1994 = vmax.xlane.f32.xlu0 %v1993
    %v1995 = vpop.xlane.xlu0 %1994
    %v1996 = vsel %vm1974, %v1601, -inf
    %1997 = vmax.xlane.f32.xlu0 %v1996
    %v1998 = vpop.xlane.xlu0 %1997
    %v1999 = vsel %vm1974, %v1647, -inf
    %2000 = vmax.xlane.f32.xlu0 %v1999
    %v2001 = vpop.xlane.xlu0 %2000
    %v2002 = vsel %vm1974, %v1693, -inf
    %2003 = vmax.xlane.f32.xlu0 %v2002
    %v2004 = vpop.xlane.xlu0 %2003
    %v2005 = vsel %vm1974, %v1739, -inf
    %2006 = vmax.xlane.f32.xlu0 %v2005
    %v2007 = vpop.xlane.xlu0 %2006
    %v2008 = vsel %vm1974, %v1785, -inf
    %2009 = vmax.xlane.f32.xlu0 %v2008
    %v2010 = vpop.xlane.xlu0 %2009
    %v2011 = vsel %vm1974, %v1831, -inf
    %2012 = vmax.xlane.f32.xlu0 %v2011
    %v2013 = vpop.xlane.xlu0 %2012
    %v2014 = vsel %vm1974, %v1877, -inf
    %2015 = vmax.xlane.f32.xlu0 %v2014
    %v2016 = vpop.xlane.xlu0 %2015
    %v2017 = vsel %vm1974, %v1923, -inf
    %2018 = vmax.xlane.f32.xlu0 %v2017
    %v2019 = vpop.xlane.xlu0 %2018
    %v2020 = vsel %vm1974, %v1969, -inf
    %2021 = vmax.xlane.f32.xlu0 %v2020
    %v2022 = vpop.xlane.xlu0 %2021
    %v2023 = vsub.f32 %v1279, %v1977
    %v2024 = vsub.f32 %v1325, %v1980
    %v2025 = vsub.f32 %v1371, %v1983
    %v2026 = vsub.f32 %v1417, %v1986
    %v2027 = vsub.f32 %v1463, %v1989
    %v2028 = vsub.f32 %v1509, %v1992
    %v2029 = vsub.f32 %v1555, %v1995
    %v2030 = vsub.f32 %v1601, %v1998
    %v2031 = vsub.f32 %v1647, %v2001
    %v2032 = vsub.f32 %v1693, %v2004
    %v2033 = vsub.f32 %v1739, %v2007
    %v2034 = vsub.f32 %v1785, %v2010
    %v2035 = vsub.f32 %v1831, %v2013
    %v2036 = vsub.f32 %v1877, %v2016
    %v2037 = vsub.f32 %v1923, %v2019
    %v2038 = vsub.f32 %v1969, %v2022
    %v2039 = vmul.f32 %v2023, 1.442695
    %v2040 = vpow.pop %v2039
    %v2041 = vmul.f32 %v2024, 1.442695
    %v2042 = vpow.pop %v2041
    %v2043 = vmul.f32 %v2025, 1.442695
    %v2044 = vpow.pop %v2043
    %v2045 = vmul.f32 %v2026, 1.442695
    %v2046 = vpow.pop %v2045
    %v2047 = vmul.f32 %v2027, 1.442695
    %v2048 = vpow.pop %v2047
    %v2049 = vmul.f32 %v2028, 1.442695
    %v2050 = vpow.pop %v2049
    %v2051 = vmul.f32 %v2029, 1.442695
    %v2052 = vpow.pop %v2051
    %v2053 = vmul.f32 %v2030, 1.442695
    %v2054 = vpow.pop %v2053
    %v2055 = vmul.f32 %v2031, 1.442695
    %v2056 = vpow.pop %v2055
    %v2057 = vmul.f32 %v2032, 1.442695
    %v2058 = vpow.pop %v2057
    %v2059 = vmul.f32 %v2033, 1.442695
    %v2060 = vpow.pop %v2059
    %v2061 = vmul.f32 %v2034, 1.442695
    %v2062 = vpow.pop %v2061
    %v2063 = vmul.f32 %v2035, 1.442695
    %v2064 = vpow.pop %v2063
    %v2065 = vmul.f32 %v2036, 1.442695
    %v2066 = vpow.pop %v2065
    %v2067 = vmul.f32 %v2037, 1.442695
    %v2068 = vpow.pop %v2067
    %v2069 = vmul.f32 %v2038, 1.442695
    %v2070 = vpow.pop %v2069
    %v2071 = vsel %vm1974, %v2040, 0.0
    %2072 = vadd.xlane.f32.xlu0 %v2071
    %v2073 = vpop.xlane.xlu0 %2072
    %v2074 = vsel %vm1974, %v2042, 0.0
    %2075 = vadd.xlane.f32.xlu0 %v2074
    %v2076 = vpop.xlane.xlu0 %2075
    %v2077 = vsel %vm1974, %v2044, 0.0
    %2078 = vadd.xlane.f32.xlu0 %v2077
    %v2079 = vpop.xlane.xlu0 %2078
    %v2080 = vsel %vm1974, %v2046, 0.0
    %2081 = vadd.xlane.f32.xlu0 %v2080
    %v2082 = vpop.xlane.xlu0 %2081
    %v2083 = vsel %vm1974, %v2048, 0.0
    %2084 = vadd.xlane.f32.xlu0 %v2083
    %v2085 = vpop.xlane.xlu0 %2084
    %v2086 = vsel %vm1974, %v2050, 0.0
    %2087 = vadd.xlane.f32.xlu0 %v2086
    %v2088 = vpop.xlane.xlu0 %2087
    %v2089 = vsel %vm1974, %v2052, 0.0
    %2090 = vadd.xlane.f32.xlu0 %v2089
    %v2091 = vpop.xlane.xlu0 %2090
    %v2092 = vsel %vm1974, %v2054, 0.0
    %2093 = vadd.xlane.f32.xlu0 %v2092
    %v2094 = vpop.xlane.xlu0 %2093
    %v2095 = vsel %vm1974, %v2056, 0.0
    %2096 = vadd.xlane.f32.xlu0 %v2095
    %v2097 = vpop.xlane.xlu0 %2096
    %v2098 = vsel %vm1974, %v2058, 0.0
    %2099 = vadd.xlane.f32.xlu0 %v2098
    %v2100 = vpop.xlane.xlu0 %2099
    %v2101 = vsel %vm1974, %v2060, 0.0
    %2102 = vadd.xlane.f32.xlu0 %v2101
    %v2103 = vpop.xlane.xlu0 %2102
    %v2104 = vsel %vm1974, %v2062, 0.0
    %2105 = vadd.xlane.f32.xlu0 %v2104
    %v2106 = vpop.xlane.xlu0 %2105
    %v2107 = vsel %vm1974, %v2064, 0.0
    %2108 = vadd.xlane.f32.xlu0 %v2107
    %v2109 = vpop.xlane.xlu0 %2108
    %v2110 = vsel %vm1974, %v2066, 0.0
    %2111 = vadd.xlane.f32.xlu0 %v2110
    %v2112 = vpop.xlane.xlu0 %2111
    %v2113 = vsel %vm1974, %v2068, 0.0
    %2114 = vadd.xlane.f32.xlu0 %v2113
    %v2115 = vpop.xlane.xlu0 %2114
    %v2116 = vsel %vm1974, %v2070, 0.0
    %2117 = vadd.xlane.f32.xlu0 %v2116
    %v2118 = vpop.xlane.xlu0 %2117
    %v2119 = vrcp.pop %v2073
    %v2120 = vrcp.pop %v2076
    %v2121 = vrcp.pop %v2079
    %v2122 = vrcp.pop %v2082
    %v2123 = vrcp.pop %v2085
    %v2124 = vrcp.pop %v2088
    %v2125 = vrcp.pop %v2091
    %v2126 = vrcp.pop %v2094
    %v2127 = vrcp.pop %v2097
    %v2128 = vrcp.pop %v2100
    %v2129 = vrcp.pop %v2103
    %v2130 = vrcp.pop %v2106
    %v2131 = vrcp.pop %v2109
    %v2132 = vrcp.pop %v2112
    %v2133 = vrcp.pop %v2115
    %v2134 = vrcp.pop %v2118
    %v2135 = vmul.f32 %v2040, %v2119
    %v2136 = vmul.f32 %v2042, %v2120
    %v2137 = vmul.f32 %v2044, %v2121
    %v2138 = vmul.f32 %v2046, %v2122
    %v2139 = vmul.f32 %v2048, %v2123
    %v2140 = vmul.f32 %v2050, %v2124
    %v2141 = vmul.f32 %v2052, %v2125
    %v2142 = vmul.f32 %v2054, %v2126
    %v2143 = vmul.f32 %v2056, %v2127
    %v2144 = vmul.f32 %v2058, %v2128
    %v2145 = vmul.f32 %v2060, %v2129
    %v2146 = vmul.f32 %v2062, %v2130
    %v2147 = vmul.f32 %v2064, %v2131
    %v2148 = vmul.f32 %v2066, %v2132
    %v2149 = vmul.f32 %v2068, %v2133
    %v2150 = vmul.f32 %v2070, %v2134
    %v2151 = vpack.c.bf16 %v2135, %v2135
    %v2152 = vpack.c.bf16 %v2136, %v2136
    %v2153 = vpack.c.bf16 %v2137, %v2137
    %v2154 = vpack.c.bf16 %v2138, %v2138
    %v2155 = vpack.c.bf16 %v2139, %v2139
    %v2156 = vpack.c.bf16 %v2140, %v2140
    %v2157 = vpack.c.bf16 %v2141, %v2141
    %v2158 = vpack.c.bf16 %v2142, %v2142
    %v2159 = vpack.c.bf16 %v2143, %v2143
    %v2160 = vpack.c.bf16 %v2144, %v2144
    %v2161 = vpack.c.bf16 %v2145, %v2145
    %v2162 = vpack.c.bf16 %v2146, %v2146
    %v2163 = vpack.c.bf16 %v2147, %v2147
    %v2164 = vpack.c.bf16 %v2148, %v2148
    %v2165 = vpack.c.bf16 %v2149, %v2149
    %v2166 = vpack.c.bf16 %v2150, %v2150
    %v2168 = vsel %vm1974, %v2151, 0
    %vm2170 = vcmask 1043456
    %v2172 = vsel %vm2170, %v1191, 0
    %2174 = vmatprep.subr.bf16.mxu0 0
    %2175 = vmatpush1.bf16.msra.mxu0 %v2172
    %2176 = vmatprep.subr.bf16.mxu0 0
    %2177 = vmatpush1.bf16.msra.mxu0 0
    %2178 = vmatprep.subr.bf16.mxu0 0
    %2179 = vmatpush1.bf16.msra.mxu0 0
    %2180 = vmatprep.subr.bf16.mxu0 0
    %2181 = vmatpush1.bf16.msra.mxu0 0
    %2182 = vmatprep.subr.bf16.mxu0 0
    %2183 = vmatpush1.bf16.msra.mxu0 0
    %2184 = vmatprep.subr.bf16.mxu0 0
    %2185 = vmatpush1.bf16.msra.mxu0 0
    %2186 = vmatprep.subr.bf16.mxu0 0
    %2187 = vmatpush1.bf16.msra.mxu0 0
    %2188 = vmatprep.subr.bf16.mxu0 0
    %2189 = vmatpush1.bf16.msra.mxu0 0
    %2190 = vmatprep.subr.bf16.mxu0 0
    %2191 = vmatpush1.bf16.msra.mxu0 0
    %2192 = vmatprep.subr.bf16.mxu0 0
    %2193 = vmatpush1.bf16.msra.mxu0 0
    %2194 = vmatprep.subr.bf16.mxu0 0
    %2195 = vmatpush1.bf16.msra.mxu0 0
    %2196 = vmatprep.subr.bf16.mxu0 0
    %2197 = vmatpush1.bf16.msra.mxu0 0
    %2198 = vmatprep.subr.bf16.mxu0 0
    %2199 = vmatpush1.bf16.msra.mxu0 0
    %2200 = vmatprep.subr.bf16.mxu0 0
    %2201 = vmatpush1.bf16.msra.mxu0 0
    %2202 = vmatprep.subr.bf16.mxu0 0
    %2203 = vmatpush1.bf16.msra.mxu0 0
    %2204 = vmatprep.subr.bf16.mxu0 0
    %2205 = vmatpush1.bf16.msra.mxu0 0
    %2206 = vmatprep.mubr.bf16.mxu0 0
    %2207 = vmatmul.mubr.bf16.gmra.mrb[0].mxu0 %v2168
    %v2208 = vpop.f32.mrb[0].mxu0
    %v2209 = vadd.f32 0.0, %v2208
    %v2210 = vpop.f32.mrb[0].mxu0
    %v2211 = vpop.f32.mrb[0].mxu0
    %v2212 = vpop.f32.mrb[0].mxu0
    %2213 = vdwg.mxu0
    %v2215 = vsel %vm1974, %v2152, 0
    %v2218 = vsel %vm2170, %v1194, 0
    %2220 = vmatprep.subr.bf16.mxu0 0
    %2221 = vmatpush1.bf16.msra.mxu0 %v2218
    %2222 = vmatprep.subr.bf16.mxu0 0
    %2223 = vmatpush1.bf16.msra.mxu0 0
    %2224 = vmatprep.subr.bf16.mxu0 0
    %2225 = vmatpush1.bf16.msra.mxu0 0
    %2226 = vmatprep.subr.bf16.mxu0 0
    %2227 = vmatpush1.bf16.msra.mxu0 0
    %2228 = vmatprep.subr.bf16.mxu0 0
    %2229 = vmatpush1.bf16.msra.mxu0 0
    %2230 = vmatprep.subr.bf16.mxu0 0
    %2231 = vmatpush1.bf16.msra.mxu0 0
    %2232 = vmatprep.subr.bf16.mxu0 0
    %2233 = vmatpush1.bf16.msra.mxu0 0
    %2234 = vmatprep.subr.bf16.mxu0 0
    %2235 = vmatpush1.bf16.msra.mxu0 0
    %2236 = vmatprep.subr.bf16.mxu0 0
    %2237 = vmatpush1.bf16.msra.mxu0 0
    %2238 = vmatprep.subr.bf16.mxu0 0
    %2239 = vmatpush1.bf16.msra.mxu0 0
    %2240 = vmatprep.subr.bf16.mxu0 0
    %2241 = vmatpush1.bf16.msra.mxu0 0
    %2242 = vmatprep.subr.bf16.mxu0 0
    %2243 = vmatpush1.bf16.msra.mxu0 0
    %2244 = vmatprep.subr.bf16.mxu0 0
    %2245 = vmatpush1.bf16.msra.mxu0 0
    %2246 = vmatprep.subr.bf16.mxu0 0
    %2247 = vmatpush1.bf16.msra.mxu0 0
    %2248 = vmatprep.subr.bf16.mxu0 0
    %2249 = vmatpush1.bf16.msra.mxu0 0
    %2250 = vmatprep.subr.bf16.mxu0 0
    %2251 = vmatpush1.bf16.msra.mxu0 0
    %2252 = vmatprep.mubr.bf16.mxu0 0
    %2253 = vmatmul.mubr.bf16.gmra.mrb[0].mxu0 %v2215
    %v2254 = vpop.f32.mrb[0].mxu0
    %v2255 = vadd.f32 0.0, %v2254
    %v2256 = vpop.f32.mrb[0].mxu0
    %v2257 = vpop.f32.mrb[0].mxu0
    %v2258 = vpop.f32.mrb[0].mxu0
    %2259 = vdwg.mxu0
    %v2261 = vsel %vm1974, %v2153, 0
    %v2264 = vsel %vm2170, %v1197, 0
    %2266 = vmatprep.subr.bf16.mxu0 0
    %2267 = vmatpush1.bf16.msra.mxu0 %v2264
    %2268 = vmatprep.subr.bf16.mxu0 0
    %2269 = vmatpush1.bf16.msra.mxu0 0
    %2270 = vmatprep.subr.bf16.mxu0 0
    %2271 = vmatpush1.bf16.msra.mxu0 0
    %2272 = vmatprep.subr.bf16.mxu0 0
    %2273 = vmatpush1.bf16.msra.mxu0 0
    %2274 = vmatprep.subr.bf16.mxu0 0
    %2275 = vmatpush1.bf16.msra.mxu0 0
    %2276 = vmatprep.subr.bf16.mxu0 0
    %2277 = vmatpush1.bf16.msra.mxu0 0
    %2278 = vmatprep.subr.bf16.mxu0 0
    %2279 = vmatpush1.bf16.msra.mxu0 0
    %2280 = vmatprep.subr.bf16.mxu0 0
    %2281 = vmatpush1.bf16.msra.mxu0 0
    %2282 = vmatprep.subr.bf16.mxu0 0
    %2283 = vmatpush1.bf16.msra.mxu0 0
    %2284 = vmatprep.subr.bf16.mxu0 0
    %2285 = vmatpush1.bf16.msra.mxu0 0
    %2286 = vmatprep.subr.bf16.mxu0 0
    %2287 = vmatpush1.bf16.msra.mxu0 0
    %2288 = vmatprep.subr.bf16.mxu0 0
    %2289 = vmatpush1.bf16.msra.mxu0 0
    %2290 = vmatprep.subr.bf16.mxu0 0
    %2291 = vmatpush1.bf16.msra.mxu0 0
    %2292 = vmatprep.subr.bf16.mxu0 0
    %2293 = vmatpush1.bf16.msra.mxu0 0
    %2294 = vmatprep.subr.bf16.mxu0 0
    %2295 = vmatpush1.bf16.msra.mxu0 0
    %2296 = vmatprep.subr.bf16.mxu0 0
    %2297 = vmatpush1.bf16.msra.mxu0 0
    %2298 = vmatprep.mubr.bf16.mxu0 0
    %2299 = vmatmul.mubr.bf16.gmra.mrb[0].mxu0 %v2261
    %v2300 = vpop.f32.mrb[0].mxu0
    %v2301 = vadd.f32 0.0, %v2300
    %v2302 = vpop.f32.mrb[0].mxu0
    %v2303 = vpop.f32.mrb[0].mxu0
    %v2304 = vpop.f32.mrb[0].mxu0
    %2305 = vdwg.mxu0
    %v2307 = vsel %vm1974, %v2154, 0
    %v2310 = vsel %vm2170, %v1200, 0
    %2312 = vmatprep.subr.bf16.mxu0 0
    %2313 = vmatpush1.bf16.msra.mxu0 %v2310
    %2314 = vmatprep.subr.bf16.mxu0 0
    %2315 = vmatpush1.bf16.msra.mxu0 0
    %2316 = vmatprep.subr.bf16.mxu0 0
    %2317 = vmatpush1.bf16.msra.mxu0 0
    %2318 = vmatprep.subr.bf16.mxu0 0
    %2319 = vmatpush1.bf16.msra.mxu0 0
    %2320 = vmatprep.subr.bf16.mxu0 0
    %2321 = vmatpush1.bf16.msra.mxu0 0
    %2322 = vmatprep.subr.bf16.mxu0 0
    %2323 = vmatpush1.bf16.msra.mxu0 0
    %2324 = vmatprep.subr.bf16.mxu0 0
    %2325 = vmatpush1.bf16.msra.mxu0 0
    %2326 = vmatprep.subr.bf16.mxu0 0
    %2327 = vmatpush1.bf16.msra.mxu0 0
    %2328 = vmatprep.subr.bf16.mxu0 0
    %2329 = vmatpush1.bf16.msra.mxu0 0
    %2330 = vmatprep.subr.bf16.mxu0 0
    %2331 = vmatpush1.bf16.msra.mxu0 0
    %2332 = vmatprep.subr.bf16.mxu0 0
    %2333 = vmatpush1.bf16.msra.mxu0 0
    %2334 = vmatprep.subr.bf16.mxu0 0
    %2335 = vmatpush1.bf16.msra.mxu0 0
    %2336 = vmatprep.subr.bf16.mxu0 0
    %2337 = vmatpush1.bf16.msra.mxu0 0
    %2338 = vmatprep.subr.bf16.mxu0 0
    %2339 = vmatpush1.bf16.msra.mxu0 0
    %2340 = vmatprep.subr.bf16.mxu0 0
    %2341 = vmatpush1.bf16.msra.mxu0 0
    %2342 = vmatprep.subr.bf16.mxu0 0
    %2343 = vmatpush1.bf16.msra.mxu0 0
    %2344 = vmatprep.mubr.bf16.mxu0 0
    %2345 = vmatmul.mubr.bf16.gmra.mrb[0].mxu0 %v2307
    %v2346 = vpop.f32.mrb[0].mxu0
    %v2347 = vadd.f32 0.0, %v2346
    %v2348 = vpop.f32.mrb[0].mxu0
    %v2349 = vpop.f32.mrb[0].mxu0
    %v2350 = vpop.f32.mrb[0].mxu0
    %2351 = vdwg.mxu0
    %v2353 = vsel %vm1974, %v2155, 0
    %v2356 = vsel %vm2170, %v1203, 0
    %2358 = vmatprep.subr.bf16.mxu0 0
    %2359 = vmatpush1.bf16.msra.mxu0 %v2356
    %2360 = vmatprep.subr.bf16.mxu0 0
    %2361 = vmatpush1.bf16.msra.mxu0 0
    %2362 = vmatprep.subr.bf16.mxu0 0
    %2363 = vmatpush1.bf16.msra.mxu0 0
    %2364 = vmatprep.subr.bf16.mxu0 0
    %2365 = vmatpush1.bf16.msra.mxu0 0
    %2366 = vmatprep.subr.bf16.mxu0 0
    %2367 = vmatpush1.bf16.msra.mxu0 0
    %2368 = vmatprep.subr.bf16.mxu0 0
    %2369 = vmatpush1.bf16.msra.mxu0 0
    %2370 = vmatprep.subr.bf16.mxu0 0
    %2371 = vmatpush1.bf16.msra.mxu0 0
    %2372 = vmatprep.subr.bf16.mxu0 0
    %2373 = vmatpush1.bf16.msra.mxu0 0
    %2374 = vmatprep.subr.bf16.mxu0 0
    %2375 = vmatpush1.bf16.msra.mxu0 0
    %2376 = vmatprep.subr.bf16.mxu0 0
    %2377 = vmatpush1.bf16.msra.mxu0 0
    %2378 = vmatprep.subr.bf16.mxu0 0
    %2379 = vmatpush1.bf16.msra.mxu0 0
    %2380 = vmatprep.subr.bf16.mxu0 0
    %2381 = vmatpush1.bf16.msra.mxu0 0
    %2382 = vmatprep.subr.bf16.mxu0 0
    %2383 = vmatpush1.bf16.msra.mxu0 0
    %2384 = vmatprep.subr.bf16.mxu0 0
    %2385 = vmatpush1.bf16.msra.mxu0 0
    %2386 = vmatprep.subr.bf16.mxu0 0
    %2387 = vmatpush1.bf16.msra.mxu0 0
    %2388 = vmatprep.subr.bf16.mxu0 0
    %2389 = vmatpush1.bf16.msra.mxu0 0
    %2390 = vmatprep.mubr.bf16.mxu0 0
    %2391 = vmatmul.mubr.bf16.gmra.mrb[0].mxu0 %v2353
    %v2392 = vpop.f32.mrb[0].mxu0
    %v2393 = vadd.f32 0.0, %v2392
    %v2394 = vpop.f32.mrb[0].mxu0
    %v2395 = vpop.f32.mrb[0].mxu0
    %v2396 = vpop.f32.mrb[0].mxu0
    %2397 = vdwg.mxu0
    %v2399 = vsel %vm1974, %v2156, 0
    %v2402 = vsel %vm2170, %v1206, 0
    %2404 = vmatprep.subr.bf16.mxu0 0
    %2405 = vmatpush1.bf16.msra.mxu0 %v2402
    %2406 = vmatprep.subr.bf16.mxu0 0
    %2407 = vmatpush1.bf16.msra.mxu0 0
    %2408 = vmatprep.subr.bf16.mxu0 0
    %2409 = vmatpush1.bf16.msra.mxu0 0
    %2410 = vmatprep.subr.bf16.mxu0 0
    %2411 = vmatpush1.bf16.msra.mxu0 0
    %2412 = vmatprep.subr.bf16.mxu0 0
    %2413 = vmatpush1.bf16.msra.mxu0 0
    %2414 = vmatprep.subr.bf16.mxu0 0
    %2415 = vmatpush1.bf16.msra.mxu0 0
    %2416 = vmatprep.subr.bf16.mxu0 0
    %2417 = vmatpush1.bf16.msra.mxu0 0
    %2418 = vmatprep.subr.bf16.mxu0 0
    %2419 = vmatpush1.bf16.msra.mxu0 0
    %2420 = vmatprep.subr.bf16.mxu0 0
    %2421 = vmatpush1.bf16.msra.mxu0 0
    %2422 = vmatprep.subr.bf16.mxu0 0
    %2423 = vmatpush1.bf16.msra.mxu0 0
    %2424 = vmatprep.subr.bf16.mxu0 0
    %2425 = vmatpush1.bf16.msra.mxu0 0
    %2426 = vmatprep.subr.bf16.mxu0 0
    %2427 = vmatpush1.bf16.msra.mxu0 0
    %2428 = vmatprep.subr.bf16.mxu0 0
    %2429 = vmatpush1.bf16.msra.mxu0 0
    %2430 = vmatprep.subr.bf16.mxu0 0
    %2431 = vmatpush1.bf16.msra.mxu0 0
    %2432 = vmatprep.subr.bf16.mxu0 0
    %2433 = vmatpush1.bf16.msra.mxu0 0
    %2434 = vmatprep.subr.bf16.mxu0 0
    %2435 = vmatpush1.bf16.msra.mxu0 0
    %2436 = vmatprep.mubr.bf16.mxu0 0
    %2437 = vmatmul.mubr.bf16.gmra.mrb[0].mxu0 %v2399
    %v2438 = vpop.f32.mrb[0].mxu0
    %v2439 = vadd.f32 0.0, %v2438
    %v2440 = vpop.f32.mrb[0].mxu0
    %v2441 = vpop.f32.mrb[0].mxu0
    %v2442 = vpop.f32.mrb[0].mxu0
    %2443 = vdwg.mxu0
    %v2445 = vsel %vm1974, %v2157, 0
    %v2448 = vsel %vm2170, %v1209, 0
    %2450 = vmatprep.subr.bf16.mxu0 0
    %2451 = vmatpush1.bf16.msra.mxu0 %v2448
    %2452 = vmatprep.subr.bf16.mxu0 0
    %2453 = vmatpush1.bf16.msra.mxu0 0
    %2454 = vmatprep.subr.bf16.mxu0 0
    %2455 = vmatpush1.bf16.msra.mxu0 0
    %2456 = vmatprep.subr.bf16.mxu0 0
    %2457 = vmatpush1.bf16.msra.mxu0 0
    %2458 = vmatprep.subr.bf16.mxu0 0
    %2459 = vmatpush1.bf16.msra.mxu0 0
    %2460 = vmatprep.subr.bf16.mxu0 0
    %2461 = vmatpush1.bf16.msra.mxu0 0
    %2462 = vmatprep.subr.bf16.mxu0 0
    %2463 = vmatpush1.bf16.msra.mxu0 0
    %2464 = vmatprep.subr.bf16.mxu0 0
    %2465 = vmatpush1.bf16.msra.mxu0 0
    %2466 = vmatprep.subr.bf16.mxu0 0
    %2467 = vmatpush1.bf16.msra.mxu0 0
    %2468 = vmatprep.subr.bf16.mxu0 0
    %2469 = vmatpush1.bf16.msra.mxu0 0
    %2470 = vmatprep.subr.bf16.mxu0 0
    %2471 = vmatpush1.bf16.msra.mxu0 0
    %2472 = vmatprep.subr.bf16.mxu0 0
    %2473 = vmatpush1.bf16.msra.mxu0 0
    %2474 = vmatprep.subr.bf16.mxu0 0
    %2475 = vmatpush1.bf16.msra.mxu0 0
    %2476 = vmatprep.subr.bf16.mxu0 0
    %2477 = vmatpush1.bf16.msra.mxu0 0
    %2478 = vmatprep.subr.bf16.mxu0 0
    %2479 = vmatpush1.bf16.msra.mxu0 0
    %2480 = vmatprep.subr.bf16.mxu0 0
    %2481 = vmatpush1.bf16.msra.mxu0 0
    %2482 = vmatprep.mubr.bf16.mxu0 0
    %2483 = vmatmul.mubr.bf16.gmra.mrb[0].mxu0 %v2445
    %v2484 = vpop.f32.mrb[0].mxu0
    %v2485 = vadd.f32 0.0, %v2484
    %v2486 = vpop.f32.mrb[0].mxu0
    %v2487 = vpop.f32.mrb[0].mxu0
    %v2488 = vpop.f32.mrb[0].mxu0
    %2489 = vdwg.mxu0
    %v2491 = vsel %vm1974, %v2158, 0
    %v2494 = vsel %vm2170, %v1212, 0
    %2496 = vmatprep.subr.bf16.mxu0 0
    %2497 = vmatpush1.bf16.msra.mxu0 %v2494
    %2498 = vmatprep.subr.bf16.mxu0 0
    %2499 = vmatpush1.bf16.msra.mxu0 0
    %2500 = vmatprep.subr.bf16.mxu0 0
    %2501 = vmatpush1.bf16.msra.mxu0 0
    %2502 = vmatprep.subr.bf16.mxu0 0
    %2503 = vmatpush1.bf16.msra.mxu0 0
    %2504 = vmatprep.subr.bf16.mxu0 0
    %2505 = vmatpush1.bf16.msra.mxu0 0
    %2506 = vmatprep.subr.bf16.mxu0 0
    %2507 = vmatpush1.bf16.msra.mxu0 0
    %2508 = vmatprep.subr.bf16.mxu0 0
    %2509 = vmatpush1.bf16.msra.mxu0 0
    %2510 = vmatprep.subr.bf16.mxu0 0
    %2511 = vmatpush1.bf16.msra.mxu0 0
    %2512 = vmatprep.subr.bf16.mxu0 0
    %2513 = vmatpush1.bf16.msra.mxu0 0
    %2514 = vmatprep.subr.bf16.mxu0 0
    %2515 = vmatpush1.bf16.msra.mxu0 0
    %2516 = vmatprep.subr.bf16.mxu0 0
    %2517 = vmatpush1.bf16.msra.mxu0 0
    %2518 = vmatprep.subr.bf16.mxu0 0
    %2519 = vmatpush1.bf16.msra.mxu0 0
    %2520 = vmatprep.subr.bf16.mxu0 0
    %2521 = vmatpush1.bf16.msra.mxu0 0
    %2522 = vmatprep.subr.bf16.mxu0 0
    %2523 = vmatpush1.bf16.msra.mxu0 0
    %2524 = vmatprep.subr.bf16.mxu0 0
    %2525 = vmatpush1.bf16.msra.mxu0 0
    %2526 = vmatprep.subr.bf16.mxu0 0
    %2527 = vmatpush1.bf16.msra.mxu0 0
    %2528 = vmatprep.mubr.bf16.mxu0 0
    %2529 = vmatmul.mubr.bf16.gmra.mrb[0].mxu0 %v2491
    %v2530 = vpop.f32.mrb[0].mxu0
    %v2531 = vadd.f32 0.0, %v2530
    %v2532 = vpop.f32.mrb[0].mxu0
    %v2533 = vpop.f32.mrb[0].mxu0
    %v2534 = vpop.f32.mrb[0].mxu0
    %2535 = vdwg.mxu0
    %v2537 = vsel %vm1974, %v2159, 0
    %v2540 = vsel %vm2170, %v1215, 0
    %2542 = vmatprep.subr.bf16.mxu0 0
    %2543 = vmatpush1.bf16.msra.mxu0 %v2540
    %2544 = vmatprep.subr.bf16.mxu0 0
    %2545 = vmatpush1.bf16.msra.mxu0 0
    %2546 = vmatprep.subr.bf16.mxu0 0
    %2547 = vmatpush1.bf16.msra.mxu0 0
    %2548 = vmatprep.subr.bf16.mxu0 0
    %2549 = vmatpush1.bf16.msra.mxu0 0
    %2550 = vmatprep.subr.bf16.mxu0 0
    %2551 = vmatpush1.bf16.msra.mxu0 0
    %2552 = vmatprep.subr.bf16.mxu0 0
    %2553 = vmatpush1.bf16.msra.mxu0 0
    %2554 = vmatprep.subr.bf16.mxu0 0
    %2555 = vmatpush1.bf16.msra.mxu0 0
    %2556 = vmatprep.subr.bf16.mxu0 0
    %2557 = vmatpush1.bf16.msra.mxu0 0
    %2558 = vmatprep.subr.bf16.mxu0 0
    %2559 = vmatpush1.bf16.msra.mxu0 0
    %2560 = vmatprep.subr.bf16.mxu0 0
    %2561 = vmatpush1.bf16.msra.mxu0 0
    %2562 = vmatprep.subr.bf16.mxu0 0
    %2563 = vmatpush1.bf16.msra.mxu0 0
    %2564 = vmatprep.subr.bf16.mxu0 0
    %2565 = vmatpush1.bf16.msra.mxu0 0
    %2566 = vmatprep.subr.bf16.mxu0 0
    %2567 = vmatpush1.bf16.msra.mxu0 0
    %2568 = vmatprep.subr.bf16.mxu0 0
    %2569 = vmatpush1.bf16.msra.mxu0 0
    %2570 = vmatprep.subr.bf16.mxu0 0
    %2571 = vmatpush1.bf16.msra.mxu0 0
    %2572 = vmatprep.subr.bf16.mxu0 0
    %2573 = vmatpush1.bf16.msra.mxu0 0
    %2574 = vmatprep.mubr.bf16.mxu0 0
    %2575 = vmatmul.mubr.bf16.gmra.mrb[0].mxu0 %v2537
    %v2576 = vpop.f32.mrb[0].mxu0
    %v2577 = vadd.f32 0.0, %v2576
    %v2578 = vpop.f32.mrb[0].mxu0
    %v2579 = vpop.f32.mrb[0].mxu0
    %v2580 = vpop.f32.mrb[0].mxu0
    %2581 = vdwg.mxu0
    %v2583 = vsel %vm1974, %v2160, 0
    %v2586 = vsel %vm2170, %v1218, 0
    %2588 = vmatprep.subr.bf16.mxu0 0
    %2589 = vmatpush1.bf16.msra.mxu0 %v2586
    %2590 = vmatprep.subr.bf16.mxu0 0
    %2591 = vmatpush1.bf16.msra.mxu0 0
    %2592 = vmatprep.subr.bf16.mxu0 0
    %2593 = vmatpush1.bf16.msra.mxu0 0
    %2594 = vmatprep.subr.bf16.mxu0 0
    %2595 = vmatpush1.bf16.msra.mxu0 0
    %2596 = vmatprep.subr.bf16.mxu0 0
    %2597 = vmatpush1.bf16.msra.mxu0 0
    %2598 = vmatprep.subr.bf16.mxu0 0
    %2599 = vmatpush1.bf16.msra.mxu0 0
    %2600 = vmatprep.subr.bf16.mxu0 0
    %2601 = vmatpush1.bf16.msra.mxu0 0
    %2602 = vmatprep.subr.bf16.mxu0 0
    %2603 = vmatpush1.bf16.msra.mxu0 0
    %2604 = vmatprep.subr.bf16.mxu0 0
    %2605 = vmatpush1.bf16.msra.mxu0 0
    %2606 = vmatprep.subr.bf16.mxu0 0
    %2607 = vmatpush1.bf16.msra.mxu0 0
    %2608 = vmatprep.subr.bf16.mxu0 0
    %2609 = vmatpush1.bf16.msra.mxu0 0
    %2610 = vmatprep.subr.bf16.mxu0 0
    %2611 = vmatpush1.bf16.msra.mxu0 0
    %2612 = vmatprep.subr.bf16.mxu0 0
    %2613 = vmatpush1.bf16.msra.mxu0 0
    %2614 = vmatprep.subr.bf16.mxu0 0
    %2615 = vmatpush1.bf16.msra.mxu0 0
    %2616 = vmatprep.subr.bf16.mxu0 0
    %2617 = vmatpush1.bf16.msra.mxu0 0
    %2618 = vmatprep.subr.bf16.mxu0 0
    %2619 = vmatpush1.bf16.msra.mxu0 0
    %2620 = vmatprep.mubr.bf16.mxu0 0
    %2621 = vmatmul.mubr.bf16.gmra.mrb[0].mxu0 %v2583
    %v2622 = vpop.f32.mrb[0].mxu0
    %v2623 = vadd.f32 0.0, %v2622
    %v2624 = vpop.f32.mrb[0].mxu0
    %v2625 = vpop.f32.mrb[0].mxu0
    %v2626 = vpop.f32.mrb[0].mxu0
    %2627 = vdwg.mxu0
    %v2629 = vsel %vm1974, %v2161, 0
    %v2632 = vsel %vm2170, %v1221, 0
    %2634 = vmatprep.subr.bf16.mxu0 0
    %2635 = vmatpush1.bf16.msra.mxu0 %v2632
    %2636 = vmatprep.subr.bf16.mxu0 0
    %2637 = vmatpush1.bf16.msra.mxu0 0
    %2638 = vmatprep.subr.bf16.mxu0 0
    %2639 = vmatpush1.bf16.msra.mxu0 0
    %2640 = vmatprep.subr.bf16.mxu0 0
    %2641 = vmatpush1.bf16.msra.mxu0 0
    %2642 = vmatprep.subr.bf16.mxu0 0
    %2643 = vmatpush1.bf16.msra.mxu0 0
    %2644 = vmatprep.subr.bf16.mxu0 0
    %2645 = vmatpush1.bf16.msra.mxu0 0
    %2646 = vmatprep.subr.bf16.mxu0 0
    %2647 = vmatpush1.bf16.msra.mxu0 0
    %2648 = vmatprep.subr.bf16.mxu0 0
    %2649 = vmatpush1.bf16.msra.mxu0 0
    %2650 = vmatprep.subr.bf16.mxu0 0
    %2651 = vmatpush1.bf16.msra.mxu0 0
    %2652 = vmatprep.subr.bf16.mxu0 0
    %2653 = vmatpush1.bf16.msra.mxu0 0
    %2654 = vmatprep.subr.bf16.mxu0 0
    %2655 = vmatpush1.bf16.msra.mxu0 0
    %2656 = vmatprep.subr.bf16.mxu0 0
    %2657 = vmatpush1.bf16.msra.mxu0 0
    %2658 = vmatprep.subr.bf16.mxu0 0
    %2659 = vmatpush1.bf16.msra.mxu0 0
    %2660 = vmatprep.subr.bf16.mxu0 0
    %2661 = vmatpush1.bf16.msra.mxu0 0
    %2662 = vmatprep.subr.bf16.mxu0 0
    %2663 = vmatpush1.bf16.msra.mxu0 0
    %2664 = vmatprep.subr.bf16.mxu0 0
    %2665 = vmatpush1.bf16.msra.mxu0 0
    %2666 = vmatprep.mubr.bf16.mxu0 0
    %2667 = vmatmul.mubr.bf16.gmra.mrb[0].mxu0 %v2629
    %v2668 = vpop.f32.mrb[0].mxu0
    %v2669 = vadd.f32 0.0, %v2668
    %v2670 = vpop.f32.mrb[0].mxu0
    %v2671 = vpop.f32.mrb[0].mxu0
    %v2672 = vpop.f32.mrb[0].mxu0
    %2673 = vdwg.mxu0
    %v2675 = vsel %vm1974, %v2162, 0
    %v2678 = vsel %vm2170, %v1224, 0
    %2680 = vmatprep.subr.bf16.mxu0 0
    %2681 = vmatpush1.bf16.msra.mxu0 %v2678
    %2682 = vmatprep.subr.bf16.mxu0 0
    %2683 = vmatpush1.bf16.msra.mxu0 0
    %2684 = vmatprep.subr.bf16.mxu0 0
    %2685 = vmatpush1.bf16.msra.mxu0 0
    %2686 = vmatprep.subr.bf16.mxu0 0
    %2687 = vmatpush1.bf16.msra.mxu0 0
    %2688 = vmatprep.subr.bf16.mxu0 0
    %2689 = vmatpush1.bf16.msra.mxu0 0
    %2690 = vmatprep.subr.bf16.mxu0 0
    %2691 = vmatpush1.bf16.msra.mxu0 0
    %2692 = vmatprep.subr.bf16.mxu0 0
    %2693 = vmatpush1.bf16.msra.mxu0 0
    %2694 = vmatprep.subr.bf16.mxu0 0
    %2695 = vmatpush1.bf16.msra.mxu0 0
    %2696 = vmatprep.subr.bf16.mxu0 0
    %2697 = vmatpush1.bf16.msra.mxu0 0
    %2698 = vmatprep.subr.bf16.mxu0 0
    %2699 = vmatpush1.bf16.msra.mxu0 0
    %2700 = vmatprep.subr.bf16.mxu0 0
    %2701 = vmatpush1.bf16.msra.mxu0 0
    %2702 = vmatprep.subr.bf16.mxu0 0
    %2703 = vmatpush1.bf16.msra.mxu0 0
    %2704 = vmatprep.subr.bf16.mxu0 0
    %2705 = vmatpush1.bf16.msra.mxu0 0
    %2706 = vmatprep.subr.bf16.mxu0 0
    %2707 = vmatpush1.bf16.msra.mxu0 0
    %2708 = vmatprep.subr.bf16.mxu0 0
    %2709 = vmatpush1.bf16.msra.mxu0 0
    %2710 = vmatprep.subr.bf16.mxu0 0
    %2711 = vmatpush1.bf16.msra.mxu0 0
    %2712 = vmatprep.mubr.bf16.mxu0 0
    %2713 = vmatmul.mubr.bf16.gmra.mrb[0].mxu0 %v2675
    %v2714 = vpop.f32.mrb[0].mxu0
    %v2715 = vadd.f32 0.0, %v2714
    %v2716 = vpop.f32.mrb[0].mxu0
    %v2717 = vpop.f32.mrb[0].mxu0
    %v2718 = vpop.f32.mrb[0].mxu0
    %2719 = vdwg.mxu0
    %v2721 = vsel %vm1974, %v2163, 0
    %v2724 = vsel %vm2170, %v1227, 0
    %2726 = vmatprep.subr.bf16.mxu0 0
    %2727 = vmatpush1.bf16.msra.mxu0 %v2724
    %2728 = vmatprep.subr.bf16.mxu0 0
    %2729 = vmatpush1.bf16.msra.mxu0 0
    %2730 = vmatprep.subr.bf16.mxu0 0
    %2731 = vmatpush1.bf16.msra.mxu0 0
    %2732 = vmatprep.subr.bf16.mxu0 0
    %2733 = vmatpush1.bf16.msra.mxu0 0
    %2734 = vmatprep.subr.bf16.mxu0 0
    %2735 = vmatpush1.bf16.msra.mxu0 0
    %2736 = vmatprep.subr.bf16.mxu0 0
    %2737 = vmatpush1.bf16.msra.mxu0 0
    %2738 = vmatprep.subr.bf16.mxu0 0
    %2739 = vmatpush1.bf16.msra.mxu0 0
    %2740 = vmatprep.subr.bf16.mxu0 0
    %2741 = vmatpush1.bf16.msra.mxu0 0
    %2742 = vmatprep.subr.bf16.mxu0 0
    %2743 = vmatpush1.bf16.msra.mxu0 0
    %2744 = vmatprep.subr.bf16.mxu0 0
    %2745 = vmatpush1.bf16.msra.mxu0 0
    %2746 = vmatprep.subr.bf16.mxu0 0
    %2747 = vmatpush1.bf16.msra.mxu0 0
    %2748 = vmatprep.subr.bf16.mxu0 0
    %2749 = vmatpush1.bf16.msra.mxu0 0
    %2750 = vmatprep.subr.bf16.mxu0 0
    %2751 = vmatpush1.bf16.msra.mxu0 0
    %2752 = vmatprep.subr.bf16.mxu0 0
    %2753 = vmatpush1.bf16.msra.mxu0 0
    %2754 = vmatprep.subr.bf16.mxu0 0
    %2755 = vmatpush1.bf16.msra.mxu0 0
    %2756 = vmatprep.subr.bf16.mxu0 0
    %2757 = vmatpush1.bf16.msra.mxu0 0
    %2758 = vmatprep.mubr.bf16.mxu0 0
    %2759 = vmatmul.mubr.bf16.gmra.mrb[0].mxu0 %v2721
    %v2760 = vpop.f32.mrb[0].mxu0
    %v2761 = vadd.f32 0.0, %v2760
    %v2762 = vpop.f32.mrb[0].mxu0
    %v2763 = vpop.f32.mrb[0].mxu0
    %v2764 = vpop.f32.mrb[0].mxu0
    %2765 = vdwg.mxu0
    %v2767 = vsel %vm1974, %v2164, 0
    %v2770 = vsel %vm2170, %v1230, 0
    %2772 = vmatprep.subr.bf16.mxu0 0
    %2773 = vmatpush1.bf16.msra.mxu0 %v2770
    %2774 = vmatprep.subr.bf16.mxu0 0
    %2775 = vmatpush1.bf16.msra.mxu0 0
    %2776 = vmatprep.subr.bf16.mxu0 0
    %2777 = vmatpush1.bf16.msra.mxu0 0
    %2778 = vmatprep.subr.bf16.mxu0 0
    %2779 = vmatpush1.bf16.msra.mxu0 0
    %2780 = vmatprep.subr.bf16.mxu0 0
    %2781 = vmatpush1.bf16.msra.mxu0 0
    %2782 = vmatprep.subr.bf16.mxu0 0
    %2783 = vmatpush1.bf16.msra.mxu0 0
    %2784 = vmatprep.subr.bf16.mxu0 0
    %2785 = vmatpush1.bf16.msra.mxu0 0
    %2786 = vmatprep.subr.bf16.mxu0 0
    %2787 = vmatpush1.bf16.msra.mxu0 0
    %2788 = vmatprep.subr.bf16.mxu0 0
    %2789 = vmatpush1.bf16.msra.mxu0 0
    %2790 = vmatprep.subr.bf16.mxu0 0
    %2791 = vmatpush1.bf16.msra.mxu0 0
    %2792 = vmatprep.subr.bf16.mxu0 0
    %2793 = vmatpush1.bf16.msra.mxu0 0
    %2794 = vmatprep.subr.bf16.mxu0 0
    %2795 = vmatpush1.bf16.msra.mxu0 0
    %2796 = vmatprep.subr.bf16.mxu0 0
    %2797 = vmatpush1.bf16.msra.mxu0 0
    %2798 = vmatprep.subr.bf16.mxu0 0
    %2799 = vmatpush1.bf16.msra.mxu0 0
    %2800 = vmatprep.subr.bf16.mxu0 0
    %2801 = vmatpush1.bf16.msra.mxu0 0
    %2802 = vmatprep.subr.bf16.mxu0 0
    %2803 = vmatpush1.bf16.msra.mxu0 0
    %2804 = vmatprep.mubr.bf16.mxu0 0
    %2805 = vmatmul.mubr.bf16.gmra.mrb[0].mxu0 %v2767
    %v2806 = vpop.f32.mrb[0].mxu0
    %v2807 = vadd.f32 0.0, %v2806
    %v2808 = vpop.f32.mrb[0].mxu0
    %v2809 = vpop.f32.mrb[0].mxu0
    %v2810 = vpop.f32.mrb[0].mxu0
    %2811 = vdwg.mxu0
    %v2813 = vsel %vm1974, %v2165, 0
    %v2816 = vsel %vm2170, %v1233, 0
    %2818 = vmatprep.subr.bf16.mxu0 0
    %2819 = vmatpush1.bf16.msra.mxu0 %v2816
    %2820 = vmatprep.subr.bf16.mxu0 0
    %2821 = vmatpush1.bf16.msra.mxu0 0
    %2822 = vmatprep.subr.bf16.mxu0 0
    %2823 = vmatpush1.bf16.msra.mxu0 0
    %2824 = vmatprep.subr.bf16.mxu0 0
    %2825 = vmatpush1.bf16.msra.mxu0 0
    %2826 = vmatprep.subr.bf16.mxu0 0
    %2827 = vmatpush1.bf16.msra.mxu0 0
    %2828 = vmatprep.subr.bf16.mxu0 0
    %2829 = vmatpush1.bf16.msra.mxu0 0
    %2830 = vmatprep.subr.bf16.mxu0 0
    %2831 = vmatpush1.bf16.msra.mxu0 0
    %2832 = vmatprep.subr.bf16.mxu0 0
    %2833 = vmatpush1.bf16.msra.mxu0 0
    %2834 = vmatprep.subr.bf16.mxu0 0
    %2835 = vmatpush1.bf16.msra.mxu0 0
    %2836 = vmatprep.subr.bf16.mxu0 0
    %2837 = vmatpush1.bf16.msra.mxu0 0
    %2838 = vmatprep.subr.bf16.mxu0 0
    %2839 = vmatpush1.bf16.msra.mxu0 0
    %2840 = vmatprep.subr.bf16.mxu0 0
    %2841 = vmatpush1.bf16.msra.mxu0 0
    %2842 = vmatprep.subr.bf16.mxu0 0
    %2843 = vmatpush1.bf16.msra.mxu0 0
    %2844 = vmatprep.subr.bf16.mxu0 0
    %2845 = vmatpush1.bf16.msra.mxu0 0
    %2846 = vmatprep.subr.bf16.mxu0 0
    %2847 = vmatpush1.bf16.msra.mxu0 0
    %2848 = vmatprep.subr.bf16.mxu0 0
    %2849 = vmatpush1.bf16.msra.mxu0 0
    %2850 = vmatprep.mubr.bf16.mxu0 0
    %2851 = vmatmul.mubr.bf16.gmra.mrb[0].mxu0 %v2813
    %v2852 = vpop.f32.mrb[0].mxu0
    %v2853 = vadd.f32 0.0, %v2852
    %v2854 = vpop.f32.mrb[0].mxu0
    %v2855 = vpop.f32.mrb[0].mxu0
    %v2856 = vpop.f32.mrb[0].mxu0
    %2857 = vdwg.mxu0
    %v2859 = vsel %vm1974, %v2166, 0
    %v2862 = vsel %vm2170, %v1236, 0
    %2864 = vmatprep.subr.bf16.mxu0 0
    %2865 = vmatpush1.bf16.msra.mxu0 %v2862
    %2866 = vmatprep.subr.bf16.mxu0 0
    %2867 = vmatpush1.bf16.msra.mxu0 0
    %2868 = vmatprep.subr.bf16.mxu0 0
    %2869 = vmatpush1.bf16.msra.mxu0 0
    %2870 = vmatprep.subr.bf16.mxu0 0
    %2871 = vmatpush1.bf16.msra.mxu0 0
    %2872 = vmatprep.subr.bf16.mxu0 0
    %2873 = vmatpush1.bf16.msra.mxu0 0
    %2874 = vmatprep.subr.bf16.mxu0 0
    %2875 = vmatpush1.bf16.msra.mxu0 0
    %2876 = vmatprep.subr.bf16.mxu0 0
    %2877 = vmatpush1.bf16.msra.mxu0 0
    %2878 = vmatprep.subr.bf16.mxu0 0
    %2879 = vmatpush1.bf16.msra.mxu0 0
    %2880 = vmatprep.subr.bf16.mxu0 0
    %2881 = vmatpush1.bf16.msra.mxu0 0
    %2882 = vmatprep.subr.bf16.mxu0 0
    %2883 = vmatpush1.bf16.msra.mxu0 0
    %2884 = vmatprep.subr.bf16.mxu0 0
    %2885 = vmatpush1.bf16.msra.mxu0 0
    %2886 = vmatprep.subr.bf16.mxu0 0
    %2887 = vmatpush1.bf16.msra.mxu0 0
    %2888 = vmatprep.subr.bf16.mxu0 0
    %2889 = vmatpush1.bf16.msra.mxu0 0
    %2890 = vmatprep.subr.bf16.mxu0 0
    %2891 = vmatpush1.bf16.msra.mxu0 0
    %2892 = vmatprep.subr.bf16.mxu0 0
    %2893 = vmatpush1.bf16.msra.mxu0 0
    %2894 = vmatprep.subr.bf16.mxu0 0
    %2895 = vmatpush1.bf16.msra.mxu0 0
    %2896 = vmatprep.mubr.bf16.mxu0 0
    %2897 = vmatmul.mubr.bf16.gmra.mrb[0].mxu0 %v2859
    %v2898 = vpop.f32.mrb[0].mxu0
    %v2899 = vadd.f32 0.0, %v2898
    %v2900 = vpop.f32.mrb[0].mxu0
    %v2901 = vpop.f32.mrb[0].mxu0
    %v2902 = vpop.f32.mrb[0].mxu0
    %2903 = vdwg.mxu0
    %v2904 = vcombine.low %v2209, %v2301
    %v2905 = vcombine.high %v2209, %v2301
    %v2907 = vunpack.c.l.s4 1983009808
    %v2908 = vunpack.c.0.s8 %v2907
    %v2909 = vlaneseq
    %v2910 = vshrl.u32 %v2909, 7
    %v2911 = vsub.s32 %v2908, %v2910
    %v2912 = vrot.slane %v2904, %v2911
    %v2914 = vunpack.c.l.s4 1983009808
    %v2915 = vunpack.c.0.s8 %v2914
    %v2916 = vlaneseq
    %v2917 = vshrl.u32 %v2916, 7
    %v2918 = vsub.s32 %v2915, %v2917
    %v2919 = vrot.slane %v2905, %v2918
    %v2920 = vcombine.low %v2255, %v2347
    %v2921 = vcombine.high %v2255, %v2347
    %v2923 = vunpack.c.l.s4 1983009808
    %v2924 = vunpack.c.0.s8 %v2923
    %v2925 = vlaneseq
    %v2926 = vshrl.u32 %v2925, 7
    %v2927 = vsub.s32 %v2924, %v2926
    %v2928 = vrot.slane %v2920, %v2927
    %v2930 = vunpack.c.l.s4 1983009808
    %v2931 = vunpack.c.0.s8 %v2930
    %v2932 = vlaneseq
    %v2933 = vshrl.u32 %v2932, 7
    %v2934 = vsub.s32 %v2931, %v2933
    %v2935 = vrot.slane %v2921, %v2934
    %v2936 = vcombine.low %v2393, %v2485
    %v2937 = vcombine.high %v2393, %v2485
    %v2939 = vunpack.c.l.s4 1983009808
    %v2940 = vunpack.c.0.s8 %v2939
    %v2941 = vlaneseq
    %v2942 = vshrl.u32 %v2941, 7
    %v2943 = vsub.s32 %v2940, %v2942
    %v2944 = vrot.slane %v2936, %v2943
    %v2946 = vunpack.c.l.s4 1983009808
    %v2947 = vunpack.c.0.s8 %v2946
    %v2948 = vlaneseq
    %v2949 = vshrl.u32 %v2948, 7
    %v2950 = vsub.s32 %v2947, %v2949
    %v2951 = vrot.slane %v2937, %v2950
    %v2952 = vcombine.low %v2439, %v2531
    %v2953 = vcombine.high %v2439, %v2531
    %v2955 = vunpack.c.l.s4 1983009808
    %v2956 = vunpack.c.0.s8 %v2955
    %v2957 = vlaneseq
    %v2958 = vshrl.u32 %v2957, 7
    %v2959 = vsub.s32 %v2956, %v2958
    %v2960 = vrot.slane %v2952, %v2959
    %v2962 = vunpack.c.l.s4 1983009808
    %v2963 = vunpack.c.0.s8 %v2962
    %v2964 = vlaneseq
    %v2965 = vshrl.u32 %v2964, 7
    %v2966 = vsub.s32 %v2963, %v2965
    %v2967 = vrot.slane %v2953, %v2966
    %v2968 = vcombine.low %v2912, %v2928
    %v2969 = vcombine.high %v2912, %v2928
    %v2971 = vunpack.c.l.s4 1934713408
    %v2972 = vunpack.c.0.s8 %v2971
    %v2973 = vlaneseq
    %v2974 = vshrl.u32 %v2973, 7
    %v2975 = vsub.s32 %v2972, %v2974
    %v2976 = vrot.slane %v2968, %v2975
    %v2978 = vunpack.c.l.s4 1934713408
    %v2979 = vunpack.c.0.s8 %v2978
    %v2980 = vlaneseq
    %v2981 = vshrl.u32 %v2980, 7
    %v2982 = vsub.s32 %v2979, %v2981
    %v2983 = vrot.slane %v2969, %v2982
    %v2984 = vcombine.low %v2919, %v2935
    %v2985 = vcombine.high %v2919, %v2935
    %v2987 = vunpack.c.l.s4 1934713408
    %v2988 = vunpack.c.0.s8 %v2987
    %v2989 = vlaneseq
    %v2990 = vshrl.u32 %v2989, 7
    %v2991 = vsub.s32 %v2988, %v2990
    %v2992 = vrot.slane %v2984, %v2991
    %v2994 = vunpack.c.l.s4 1934713408
    %v2995 = vunpack.c.0.s8 %v2994
    %v2996 = vlaneseq
    %v2997 = vshrl.u32 %v2996, 7
    %v2998 = vsub.s32 %v2995, %v2997
    %v2999 = vrot.slane %v2985, %v2998
    %v3000 = vcombine.low %v2944, %v2960
    %v3001 = vcombine.high %v2944, %v2960
    %v3003 = vunpack.c.l.s4 1934713408
    %v3004 = vunpack.c.0.s8 %v3003
    %v3005 = vlaneseq
    %v3006 = vshrl.u32 %v3005, 7
    %v3007 = vsub.s32 %v3004, %v3006
    %v3008 = vrot.slane %v3000, %v3007
    %v3010 = vunpack.c.l.s4 1934713408
    %v3011 = vunpack.c.0.s8 %v3010
    %v3012 = vlaneseq
    %v3013 = vshrl.u32 %v3012, 7
    %v3014 = vsub.s32 %v3011, %v3013
    %v3015 = vrot.slane %v3001, %v3014
    %v3016 = vcombine.low %v2951, %v2967
    %v3017 = vcombine.high %v2951, %v2967
    %v3019 = vunpack.c.l.s4 1934713408
    %v3020 = vunpack.c.0.s8 %v3019
    %v3021 = vlaneseq
    %v3022 = vshrl.u32 %v3021, 7
    %v3023 = vsub.s32 %v3020, %v3022
    %v3024 = vrot.slane %v3016, %v3023
    %v3026 = vunpack.c.l.s4 1934713408
    %v3027 = vunpack.c.0.s8 %v3026
    %v3028 = vlaneseq
    %v3029 = vshrl.u32 %v3028, 7
    %v3030 = vsub.s32 %v3027, %v3029
    %v3031 = vrot.slane %v3017, %v3030
    %v3032 = vcombine.low %v2976, %v3008
    %v3033 = vcombine.high %v2976, %v3008
    %v3034 = vcombine.low %v2983, %v3015
    %v3035 = vcombine.high %v2983, %v3015
    %v3036 = vcombine.low %v2992, %v3024
    %v3037 = vcombine.high %v2992, %v3024
    %v3038 = vcombine.low %v2999, %v3031
    %v3039 = vcombine.high %v2999, %v3031
    %v3040 = vcombine.low %v2577, %v2669
    %v3041 = vcombine.high %v2577, %v2669
    %v3043 = vunpack.c.l.s4 1983009808
    %v3044 = vunpack.c.0.s8 %v3043
    %v3045 = vlaneseq
    %v3046 = vshrl.u32 %v3045, 7
    %v3047 = vsub.s32 %v3044, %v3046
    %v3048 = vrot.slane %v3040, %v3047
    %v3050 = vunpack.c.l.s4 1983009808
    %v3051 = vunpack.c.0.s8 %v3050
    %v3052 = vlaneseq
    %v3053 = vshrl.u32 %v3052, 7
    %v3054 = vsub.s32 %v3051, %v3053
    %v3055 = vrot.slane %v3041, %v3054
    %v3056 = vcombine.low %v2623, %v2715
    %v3057 = vcombine.high %v2623, %v2715
    %v3059 = vunpack.c.l.s4 1983009808
    %v3060 = vunpack.c.0.s8 %v3059
    %v3061 = vlaneseq
    %v3062 = vshrl.u32 %v3061, 7
    %v3063 = vsub.s32 %v3060, %v3062
    %v3064 = vrot.slane %v3056, %v3063
    %v3066 = vunpack.c.l.s4 1983009808
    %v3067 = vunpack.c.0.s8 %v3066
    %v3068 = vlaneseq
    %v3069 = vshrl.u32 %v3068, 7
    %v3070 = vsub.s32 %v3067, %v3069
    %v3071 = vrot.slane %v3057, %v3070
    %v3072 = vcombine.low %v2761, %v2853
    %v3073 = vcombine.high %v2761, %v2853
    %v3075 = vunpack.c.l.s4 1983009808
    %v3076 = vunpack.c.0.s8 %v3075
    %v3077 = vlaneseq
    %v3078 = vshrl.u32 %v3077, 7
    %v3079 = vsub.s32 %v3076, %v3078
    %v3080 = vrot.slane %v3072, %v3079
    %v3082 = vunpack.c.l.s4 1983009808
    %v3083 = vunpack.c.0.s8 %v3082
    %v3084 = vlaneseq
    %v3085 = vshrl.u32 %v3084, 7
    %v3086 = vsub.s32 %v3083, %v3085
    %v3087 = vrot.slane %v3073, %v3086
    %v3088 = vcombine.low %v2807, %v2899
    %v3089 = vcombine.high %v2807, %v2899
    %v3091 = vunpack.c.l.s4 1983009808
    %v3092 = vunpack.c.0.s8 %v3091
    %v3093 = vlaneseq
    %v3094 = vshrl.u32 %v3093, 7
    %v3095 = vsub.s32 %v3092, %v3094
    %v3096 = vrot.slane %v3088, %v3095
    %v3098 = vunpack.c.l.s4 1983009808
    %v3099 = vunpack.c.0.s8 %v3098
    %v3100 = vlaneseq
    %v3101 = vshrl.u32 %v3100, 7
    %v3102 = vsub.s32 %v3099, %v3101
    %v3103 = vrot.slane %v3089, %v3102
    %v3104 = vcombine.low %v3048, %v3064
    %v3105 = vcombine.high %v3048, %v3064
    %v3107 = vunpack.c.l.s4 1934713408
    %v3108 = vunpack.c.0.s8 %v3107
    %v3109 = vlaneseq
    %v3110 = vshrl.u32 %v3109, 7
    %v3111 = vsub.s32 %v3108, %v3110
    %v3112 = vrot.slane %v3104, %v3111
    %v3114 = vunpack.c.l.s4 1934713408
    %v3115 = vunpack.c.0.s8 %v3114
    %v3116 = vlaneseq
    %v3117 = vshrl.u32 %v3116, 7
    %v3118 = vsub.s32 %v3115, %v3117
    %v3119 = vrot.slane %v3105, %v3118
    %v3120 = vcombine.low %v3055, %v3071
    %v3121 = vcombine.high %v3055, %v3071
    %v3123 = vunpack.c.l.s4 1934713408
    %v3124 = vunpack.c.0.s8 %v3123
    %v3125 = vlaneseq
    %v3126 = vshrl.u32 %v3125, 7
    %v3127 = vsub.s32 %v3124, %v3126
    %v3128 = vrot.slane %v3120, %v3127
    %v3130 = vunpack.c.l.s4 1934713408
    %v3131 = vunpack.c.0.s8 %v3130
    %v3132 = vlaneseq
    %v3133 = vshrl.u32 %v3132, 7
    %v3134 = vsub.s32 %v3131, %v3133
    %v3135 = vrot.slane %v3121, %v3134
    %v3136 = vcombine.low %v3080, %v3096
    %v3137 = vcombine.high %v3080, %v3096
    %v3139 = vunpack.c.l.s4 1934713408
    %v3140 = vunpack.c.0.s8 %v3139
    %v3141 = vlaneseq
    %v3142 = vshrl.u32 %v3141, 7
    %v3143 = vsub.s32 %v3140, %v3142
    %v3144 = vrot.slane %v3136, %v3143
    %v3146 = vunpack.c.l.s4 1934713408
    %v3147 = vunpack.c.0.s8 %v3146
    %v3148 = vlaneseq
    %v3149 = vshrl.u32 %v3148, 7
    %v3150 = vsub.s32 %v3147, %v3149
    %v3151 = vrot.slane %v3137, %v3150
    %v3152 = vcombine.low %v3087, %v3103
    %v3153 = vcombine.high %v3087, %v3103
    %v3155 = vunpack.c.l.s4 1934713408
    %v3156 = vunpack.c.0.s8 %v3155
    %v3157 = vlaneseq
    %v3158 = vshrl.u32 %v3157, 7
    %v3159 = vsub.s32 %v3156, %v3158
    %v3160 = vrot.slane %v3152, %v3159
    %v3162 = vunpack.c.l.s4 1934713408
    %v3163 = vunpack.c.0.s8 %v3162
    %v3164 = vlaneseq
    %v3165 = vshrl.u32 %v3164, 7
    %v3166 = vsub.s32 %v3163, %v3165
    %v3167 = vrot.slane %v3153, %v3166
    %v3168 = vcombine.low %v3112, %v3144
    %v3169 = vcombine.high %v3112, %v3144
    %v3170 = vcombine.low %v3119, %v3151
    %v3171 = vcombine.high %v3119, %v3151
    %v3172 = vcombine.low %v3128, %v3160
    %v3173 = vcombine.high %v3128, %v3160
    %v3174 = vcombine.low %v3135, %v3167
    %v3175 = vcombine.high %v3135, %v3167
    %v3176 = vcombine.low %v3032, %v3034
    %v3177 = vcombine.high %v3032, %v3034
    %v3179 = vunpack.c.l.s4 1983009808
    %v3180 = vunpack.c.0.s8 %v3179
    %v3181 = vlaneseq
    %v3182 = vshrl.u32 %v3181, 7
    %v3183 = vsub.s32 %v3180, %v3182
    %v3184 = vrot.slane %v3176, %v3183
    %v3186 = vunpack.c.l.s4 1983009808
    %v3187 = vunpack.c.0.s8 %v3186
    %v3188 = vlaneseq
    %v3189 = vshrl.u32 %v3188, 7
    %v3190 = vsub.s32 %v3187, %v3189
    %v3191 = vrot.slane %v3177, %v3190
    %v3192 = vcombine.low %v3033, %v3035
    %v3193 = vcombine.high %v3033, %v3035
    %v3195 = vunpack.c.l.s4 1983009808
    %v3196 = vunpack.c.0.s8 %v3195
    %v3197 = vlaneseq
    %v3198 = vshrl.u32 %v3197, 7
    %v3199 = vsub.s32 %v3196, %v3198
    %v3200 = vrot.slane %v3192, %v3199
    %v3202 = vunpack.c.l.s4 1983009808
    %v3203 = vunpack.c.0.s8 %v3202
    %v3204 = vlaneseq
    %v3205 = vshrl.u32 %v3204, 7
    %v3206 = vsub.s32 %v3203, %v3205
    %v3207 = vrot.slane %v3193, %v3206
    %v3208 = vcombine.low %v3036, %v3038
    %v3209 = vcombine.high %v3036, %v3038
    %v3211 = vunpack.c.l.s4 1983009808
    %v3212 = vunpack.c.0.s8 %v3211
    %v3213 = vlaneseq
    %v3214 = vshrl.u32 %v3213, 7
    %v3215 = vsub.s32 %v3212, %v3214
    %v3216 = vrot.slane %v3208, %v3215
    %v3218 = vunpack.c.l.s4 1983009808
    %v3219 = vunpack.c.0.s8 %v3218
    %v3220 = vlaneseq
    %v3221 = vshrl.u32 %v3220, 7
    %v3222 = vsub.s32 %v3219, %v3221
    %v3223 = vrot.slane %v3209, %v3222
    %v3224 = vcombine.low %v3037, %v3039
    %v3225 = vcombine.high %v3037, %v3039
    %v3227 = vunpack.c.l.s4 1983009808
    %v3228 = vunpack.c.0.s8 %v3227
    %v3229 = vlaneseq
    %v3230 = vshrl.u32 %v3229, 7
    %v3231 = vsub.s32 %v3228, %v3230
    %v3232 = vrot.slane %v3224, %v3231
    %v3234 = vunpack.c.l.s4 1983009808
    %v3235 = vunpack.c.0.s8 %v3234
    %v3236 = vlaneseq
    %v3237 = vshrl.u32 %v3236, 7
    %v3238 = vsub.s32 %v3235, %v3237
    %v3239 = vrot.slane %v3225, %v3238
    %v3240 = vcombine.low %v3184, %v3200
    %v3241 = vcombine.high %v3184, %v3200
    %v3243 = vunpack.c.l.s4 1934713408
    %v3244 = vunpack.c.0.s8 %v3243
    %v3245 = vlaneseq
    %v3246 = vshrl.u32 %v3245, 7
    %v3247 = vsub.s32 %v3244, %v3246
    %v3248 = vrot.slane %v3240, %v3247
    %v3250 = vunpack.c.l.s4 1934713408
    %v3251 = vunpack.c.0.s8 %v3250
    %v3252 = vlaneseq
    %v3253 = vshrl.u32 %v3252, 7
    %v3254 = vsub.s32 %v3251, %v3253
    %v3255 = vrot.slane %v3241, %v3254
    %v3256 = vcombine.low %v3191, %v3207
    %v3257 = vcombine.high %v3191, %v3207
    %v3259 = vunpack.c.l.s4 1934713408
    %v3260 = vunpack.c.0.s8 %v3259
    %v3261 = vlaneseq
    %v3262 = vshrl.u32 %v3261, 7
    %v3263 = vsub.s32 %v3260, %v3262
    %v3264 = vrot.slane %v3256, %v3263
    %v3266 = vunpack.c.l.s4 1934713408
    %v3267 = vunpack.c.0.s8 %v3266
    %v3268 = vlaneseq
    %v3269 = vshrl.u32 %v3268, 7
    %v3270 = vsub.s32 %v3267, %v3269
    %v3271 = vrot.slane %v3257, %v3270
    %v3272 = vcombine.low %v3216, %v3232
    %v3273 = vcombine.high %v3216, %v3232
    %v3275 = vunpack.c.l.s4 1934713408
    %v3276 = vunpack.c.0.s8 %v3275
    %v3277 = vlaneseq
    %v3278 = vshrl.u32 %v3277, 7
    %v3279 = vsub.s32 %v3276, %v3278
    %v3280 = vrot.slane %v3272, %v3279
    %v3282 = vunpack.c.l.s4 1934713408
    %v3283 = vunpack.c.0.s8 %v3282
    %v3284 = vlaneseq
    %v3285 = vshrl.u32 %v3284, 7
    %v3286 = vsub.s32 %v3283, %v3285
    %v3287 = vrot.slane %v3273, %v3286
    %v3288 = vcombine.low %v3223, %v3239
    %v3289 = vcombine.high %v3223, %v3239
    %v3291 = vunpack.c.l.s4 1934713408
    %v3292 = vunpack.c.0.s8 %v3291
    %v3293 = vlaneseq
    %v3294 = vshrl.u32 %v3293, 7
    %v3295 = vsub.s32 %v3292, %v3294
    %v3296 = vrot.slane %v3288, %v3295
    %v3298 = vunpack.c.l.s4 1934713408
    %v3299 = vunpack.c.0.s8 %v3298
    %v3300 = vlaneseq
    %v3301 = vshrl.u32 %v3300, 7
    %v3302 = vsub.s32 %v3299, %v3301
    %v3303 = vrot.slane %v3289, %v3302
    %v3304 = vcombine.low %v3248, %v3280
    %v3305 = vcombine.high %v3248, %v3280
    %v3306 = vcombine.low %v3255, %v3287
    %v3307 = vcombine.high %v3255, %v3287
    %v3308 = vcombine.low %v3264, %v3296
    %v3309 = vcombine.high %v3264, %v3296
    %v3310 = vcombine.low %v3271, %v3303
    %v3311 = vcombine.high %v3271, %v3303
    %v3312 = vcombine.low %v3168, %v3170
    %v3313 = vcombine.high %v3168, %v3170
    %v3315 = vunpack.c.l.s4 1983009808
    %v3316 = vunpack.c.0.s8 %v3315
    %v3317 = vlaneseq
    %v3318 = vshrl.u32 %v3317, 7
    %v3319 = vsub.s32 %v3316, %v3318
    %v3320 = vrot.slane %v3312, %v3319
    %v3322 = vunpack.c.l.s4 1983009808
    %v3323 = vunpack.c.0.s8 %v3322
    %v3324 = vlaneseq
    %v3325 = vshrl.u32 %v3324, 7
    %v3326 = vsub.s32 %v3323, %v3325
    %v3327 = vrot.slane %v3313, %v3326
    %v3328 = vcombine.low %v3169, %v3171
    %v3329 = vcombine.high %v3169, %v3171
    %v3331 = vunpack.c.l.s4 1983009808
    %v3332 = vunpack.c.0.s8 %v3331
    %v3333 = vlaneseq
    %v3334 = vshrl.u32 %v3333, 7
    %v3335 = vsub.s32 %v3332, %v3334
    %v3336 = vrot.slane %v3328, %v3335
    %v3338 = vunpack.c.l.s4 1983009808
    %v3339 = vunpack.c.0.s8 %v3338
    %v3340 = vlaneseq
    %v3341 = vshrl.u32 %v3340, 7
    %v3342 = vsub.s32 %v3339, %v3341
    %v3343 = vrot.slane %v3329, %v3342
    %v3344 = vcombine.low %v3172, %v3174
    %v3345 = vcombine.high %v3172, %v3174
    %v3347 = vunpack.c.l.s4 1983009808
    %v3348 = vunpack.c.0.s8 %v3347
    %v3349 = vlaneseq
    %v3350 = vshrl.u32 %v3349, 7
    %v3351 = vsub.s32 %v3348, %v3350
    %v3352 = vrot.slane %v3344, %v3351
    %v3354 = vunpack.c.l.s4 1983009808
    %v3355 = vunpack.c.0.s8 %v3354
    %v3356 = vlaneseq
    %v3357 = vshrl.u32 %v3356, 7
    %v3358 = vsub.s32 %v3355, %v3357
    %v3359 = vrot.slane %v3345, %v3358
    %v3360 = vcombine.low %v3173, %v3175
    %v3361 = vcombine.high %v3173, %v3175
    %v3363 = vunpack.c.l.s4 1983009808
    %v3364 = vunpack.c.0.s8 %v3363
    %v3365 = vlaneseq
    %v3366 = vshrl.u32 %v3365, 7
    %v3367 = vsub.s32 %v3364, %v3366
    %v3368 = vrot.slane %v3360, %v3367
    %v3370 = vunpack.c.l.s4 1983009808
    %v3371 = vunpack.c.0.s8 %v3370
    %v3372 = vlaneseq
    %v3373 = vshrl.u32 %v3372, 7
    %v3374 = vsub.s32 %v3371, %v3373
    %v3375 = vrot.slane %v3361, %v3374
    %v3376 = vcombine.low %v3320, %v3336
    %v3377 = vcombine.high %v3320, %v3336
    %v3379 = vunpack.c.l.s4 1934713408
    %v3380 = vunpack.c.0.s8 %v3379
    %v3381 = vlaneseq
    %v3382 = vshrl.u32 %v3381, 7
    %v3383 = vsub.s32 %v3380, %v3382
    %v3384 = vrot.slane %v3376, %v3383
    %v3386 = vunpack.c.l.s4 1934713408
    %v3387 = vunpack.c.0.s8 %v3386
    %v3388 = vlaneseq
    %v3389 = vshrl.u32 %v3388, 7
    %v3390 = vsub.s32 %v3387, %v3389
    %v3391 = vrot.slane %v3377, %v3390
    %v3392 = vcombine.low %v3327, %v3343
    %v3393 = vcombine.high %v3327, %v3343
    %v3395 = vunpack.c.l.s4 1934713408
    %v3396 = vunpack.c.0.s8 %v3395
    %v3397 = vlaneseq
    %v3398 = vshrl.u32 %v3397, 7
    %v3399 = vsub.s32 %v3396, %v3398
    %v3400 = vrot.slane %v3392, %v3399
    %v3402 = vunpack.c.l.s4 1934713408
    %v3403 = vunpack.c.0.s8 %v3402
    %v3404 = vlaneseq
    %v3405 = vshrl.u32 %v3404, 7
    %v3406 = vsub.s32 %v3403, %v3405
    %v3407 = vrot.slane %v3393, %v3406
    %v3408 = vcombine.low %v3352, %v3368
    %v3409 = vcombine.high %v3352, %v3368
    %v3411 = vunpack.c.l.s4 1934713408
    %v3412 = vunpack.c.0.s8 %v3411
    %v3413 = vlaneseq
    %v3414 = vshrl.u32 %v3413, 7
    %v3415 = vsub.s32 %v3412, %v3414
    %v3416 = vrot.slane %v3408, %v3415
    %v3418 = vunpack.c.l.s4 1934713408
    %v3419 = vunpack.c.0.s8 %v3418
    %v3420 = vlaneseq
    %v3421 = vshrl.u32 %v3420, 7
    %v3422 = vsub.s32 %v3419, %v3421
    %v3423 = vrot.slane %v3409, %v3422
    %v3424 = vcombine.low %v3359, %v3375
    %v3425 = vcombine.high %v3359, %v3375
    %v3427 = vunpack.c.l.s4 1934713408
    %v3428 = vunpack.c.0.s8 %v3427
    %v3429 = vlaneseq
    %v3430 = vshrl.u32 %v3429, 7
    %v3431 = vsub.s32 %v3428, %v3430
    %v3432 = vrot.slane %v3424, %v3431
    %v3434 = vunpack.c.l.s4 1934713408
    %v3435 = vunpack.c.0.s8 %v3434
    %v3436 = vlaneseq
    %v3437 = vshrl.u32 %v3436, 7
    %v3438 = vsub.s32 %v3435, %v3437
    %v3439 = vrot.slane %v3425, %v3438
    %v3440 = vcombine.low %v3384, %v3416
    %v3441 = vcombine.high %v3384, %v3416
    %v3442 = vcombine.low %v3391, %v3423
    %v3443 = vcombine.high %v3391, %v3423
    %v3444 = vcombine.low %v3400, %v3432
    %v3445 = vcombine.high %v3400, %v3432
    %v3446 = vcombine.low %v3407, %v3439
    %v3447 = vcombine.high %v3407, %v3439
    %3450 = vrot.lane.b32.xlu0 %v3305, 4
    %v3451 = vpop.permute.xlu0 %3450
    %3452 = vrot.lane.b32.xlu0 %v3441, 4
    %v3453 = vpop.permute.xlu0 %3452
    %3458 = vrot.lane.b32.xlu0 %v3306, 8
    %v3459 = vpop.permute.xlu0 %3458
    %3460 = vrot.lane.b32.xlu0 %v3442, 8
    %v3461 = vpop.permute.xlu0 %3460
    %3466 = vrot.lane.b32.xlu0 %v3307, 12
    %v3467 = vpop.permute.xlu0 %3466
    %3468 = vrot.lane.b32.xlu0 %v3443, 12
    %v3469 = vpop.permute.xlu0 %3468
    %3474 = vrot.lane.b32.xlu0 %v3308, 16
    %v3475 = vpop.permute.xlu0 %3474
    %3476 = vrot.lane.b32.xlu0 %v3444, 16
    %v3477 = vpop.permute.xlu0 %3476
    %3482 = vrot.lane.b32.xlu0 %v3309, 20
    %v3483 = vpop.permute.xlu0 %3482
    %3484 = vrot.lane.b32.xlu0 %v3445, 20
    %v3485 = vpop.permute.xlu0 %3484
    %3490 = vrot.lane.b32.xlu0 %v3310, 24
    %v3491 = vpop.permute.xlu0 %3490
    %3492 = vrot.lane.b32.xlu0 %v3446, 24
    %v3493 = vpop.permute.xlu0 %3492
    %3498 = vrot.lane.b32.xlu0 %v3311, 28
    %v3499 = vpop.permute.xlu0 %3498
    %3500 = vrot.lane.b32.xlu0 %v3447, 28
    %v3501 = vpop.permute.xlu0 %3500
    %v3504 = vsel %vm1237, %v3304, %v3451
    %v3505 = vsel %vm1237, %v3440, %v3453
    %v3506 = vsel %vm1974, %v3504, %v3459
    %v3507 = vsel %vm1974, %v3505, %v3461
    %vm3508 = vcmask 97280
    %v3509 = vsel %vm3508, %v3506, %v3467
    %v3510 = vsel %vm3508, %v3507, %v3469
    %vm3511 = vcmask 130048
    %v3512 = vsel %vm3511, %v3509, %v3475
    %v3513 = vsel %vm3511, %v3510, %v3477
    %vm3514 = vcmask 162816
    %v3515 = vsel %vm3514, %v3512, %v3483
    %v3516 = vsel %vm3514, %v3513, %v3485
    %vm3517 = vcmask 195584
    %v3518 = vsel %vm3517, %v3515, %v3491
    %v3519 = vsel %vm3517, %v3516, %v3493
    %vm3520 = vcmask 228352
    %v3521 = vsel %vm3520, %v3518, %v3499
    %v3522 = vsel %vm3520, %v3519, %v3501
    %v3523 = vpack.c.bf16 %v3522, %v3521
    %v3525 = vlaneseq
    %v3526 = vshrl.u32 %v3525, 7
    %v3527 = vsub.s32 0, %v3526
    %v3528 = vrot.slane %v70, %v3527
    %v3534 = vunpack.c.l.b16 %v66
    %v3535 = vunpack.c.l.b16 %v67
    %v3536 = vunpack.c.l.b16 %v68
    %v3537 = vunpack.c.l.b16 %v69
    %v3538 = vpack.c.b16 %v3535, %v3534
    %v3539 = vpack.c.b16 %v3537, %v3536
    %v3543 = vsel %vm88, %v3523, 0
    %3545 = vmatprep.subr.bf16.mxu0 0
    %3546 = vmatpush1.bf16.msra.mxu0 %v3538
    %3547 = vmatprep.subr.bf16.mxu0 0
    %3548 = vmatpush1.bf16.msra.mxu0 %v3539
    %3549 = vmatprep.subr.bf16.mxu0 0
    %3550 = vmatpush1.bf16.msra.mxu0 0
    %3551 = vmatprep.subr.bf16.mxu0 0
    %3552 = vmatpush1.bf16.msra.mxu0 0
    %3553 = vmatprep.subr.bf16.mxu0 0
    %3554 = vmatpush1.bf16.msra.mxu0 0
    %3555 = vmatprep.subr.bf16.mxu0 0
    %3556 = vmatpush1.bf16.msra.mxu0 0
    %3557 = vmatprep.subr.bf16.mxu0 0
    %3558 = vmatpush1.bf16.msra.mxu0 0
    %3559 = vmatprep.subr.bf16.mxu0 0
    %3560 = vmatpush1.bf16.msra.mxu0 0
    %3561 = vmatprep.subr.bf16.mxu0 0
    %3562 = vmatpush1.bf16.msra.mxu0 0
    %3563 = vmatprep.subr.bf16.mxu0 0
    %3564 = vmatpush1.bf16.msra.mxu0 0
    %3565 = vmatprep.subr.bf16.mxu0 0
    %3566 = vmatpush1.bf16.msra.mxu0 0
    %3567 = vmatprep.subr.bf16.mxu0 0
    %3568 = vmatpush1.bf16.msra.mxu0 0
    %3569 = vmatprep.subr.bf16.mxu0 0
    %3570 = vmatpush1.bf16.msra.mxu0 0
    %3571 = vmatprep.subr.bf16.mxu0 0
    %3572 = vmatpush1.bf16.msra.mxu0 0
    %3573 = vmatprep.subr.bf16.mxu0 0
    %3574 = vmatpush1.bf16.msra.mxu0 0
    %3575 = vmatprep.subr.bf16.mxu0 0
    %3576 = vmatpush1.bf16.msra.mxu0 0
    %3577 = vmatprep.mubr.bf16.mxu0 0
    %3578 = vmatmul.mubr.bf16.gmra.mrb[0].mxu0 %v3543
    %v3579 = vpop.f32.mrb[0].mxu0
    %v3580 = vadd.f32 %v3528, %v3579
    %v3581 = vpop.f32.mrb[0].mxu0
    %v3582 = vpop.f32.mrb[0].mxu0
    %v3583 = vadd.f32 %v3528, %v3582
    %v3584 = vpop.f32.mrb[0].mxu0
    %3585 = vdwg.mxu0
    %3586 = vst [vmem:[#allocation8] sm:$0xff] %v3580
    %3587 = vst [vmem:[#allocation8 + $0x8] sm:$0xff] %v3583
    // Predicated region
    $region30: #{tpu_custom_call.1} parent=1 // pred_check
      _
    $region31: #{tpu_custom_call.1} parent=1 // pred_check_branch
      %3589 = sbr.rel (0) target = $region33
    $region32: #{tpu_custom_call.1} parent=1 // pred_region
      %s3591 = ssub.s32 256, 256
      %3592 = vsyncadd [#allocation4], %s3591
      %s3593 = sshll.u32 [#allocation8], 4
      %s3594 = int_to_ptr.vmem [resolvable:$true] %s3593
      %3599 = dma.vmem_to_hbm [thread:$0]  %s3594, 256, %s4, [#allocation4], 128, 128, 8
    $region33: #{tpu_custom_call.1} parent=1 // pred_fallthru
      _
    // Predicated region
    $region34: #{tpu_custom_call.1} parent=1 // pred_check
      _
    $region35: #{tpu_custom_call.1} parent=1 // pred_check_branch
      %3601 = sbr.rel (0) target = $region37
    $region36: #{tpu_custom_call.1} parent=1 // pred_region
      %3602 = dma.done [#allocation4], 256
    $region37: #{tpu_custom_call.1} parent=1 // pred_fallthru
      _
    %3603 = vsyncpa [#allocation3], 1
    %3604 = vsyncpa [#allocation6], 1
    %3605 = vsyncpa [#allocation4], 1

</llo_original>
